<compile_context>
chip_gen: v7x
topology: tpu7x:2x2x1
jax: 0.10.0
libtpu: 0.0.40
codegen_flags: <defaults>
</compile_context>

<pallas_src>
import functools

import jax
import jax.numpy as jnp
from jax.experimental import pallas as pl
from jax.experimental.pallas import tpu as pltpu

MIN_RATING = 1
MAX_RATING = 5
N_RATINGS = MAX_RATING - MIN_RATING + 1


def _round_up(x, m):
    return (x + m - 1) // m * m


def _nrt_kernel(n_layers,
                # inputs
                u_ids_ref, i_ids_ref,              # (tm, 1) int32
                u_tab_ref, i_tab_ref,              # (nU_pad, 2d) / (nI_pad, 2d) bf16, VMEM-resident
                w0_ref, b0_ref,                    # (2d, hidden) bf16 / (1, hidden) f32
                wh_ref, bh_ref,                    # (L, hidden, hidden) bf16 / (L, 1, hidden) f32
                wout_ref, bout_ref,                # (1, hidden) f32 / (1, 1) f32
                wenc_ref, wenc_r_ref, benc_ref,    # (2d, hidden) bf16 / (5, hidden) f32 / (1, hidden) f32
                # outputs
                rating_ref, enc_ref):
    tm = u_ids_ref.shape[0]
    n_users_pad = u_tab_ref.shape[0]
    n_items_pad = i_tab_ref.shape[0]

    # ---- fused embedding gather: one-hot MXU matmuls (no per-row DMAs, no scalar-slot work).
    # Wide tables => the sum of the two gathers equals torch.cat([U_emb, I_emb], dim=1).
    u_oh = (jax.lax.broadcasted_iota(jnp.int32, (tm, n_users_pad), 1)
            == u_ids_ref[...]).astype(jnp.bfloat16)
    i_oh = (jax.lax.broadcasted_iota(jnp.int32, (tm, n_items_pad), 1)
            == i_ids_ref[...]).astype(jnp.bfloat16)
    ui = (jnp.dot(u_oh, u_tab_ref[...], preferred_element_type=jnp.float32)
          + jnp.dot(i_oh, i_tab_ref[...], preferred_element_type=jnp.float32))
    ui_bf = ui.astype(jnp.bfloat16)   # exact: one-hot selection of bf16 rows

    # ---- rating MLP: single K=2*d_model contraction, then n_layers hidden x hidden layers.
    h = jax.nn.sigmoid(
        jnp.dot(ui_bf, w0_ref[...], preferred_element_type=jnp.float32) + b0_ref[...])
    for l in range(n_layers):   # static unroll
        h = jax.nn.sigmoid(
            jnp.dot(h.astype(jnp.bfloat16), wh_ref[l],
                    preferred_element_type=jnp.float32) + bh_ref[l])

    # final Linear(hidden, 1) as a lane reduction (keep the N=1 output off the MXU)
    rating = jnp.sum(h * wout_ref[...], axis=-1, keepdims=True) + bout_ref[...]
    rating_ref[...] = rating          # (tm, 1): tiny masked 1-lane store (accepted)

    # ---- clamp -> int -> implicit one-hot contracted on the VPU (5 select-FMAs, no K=5 MXU op).
    r_int = jnp.clip(rating, MIN_RATING, MAX_RATING).astype(jnp.int32)   # trunc-toward-zero == torch
    enc = jnp.dot(ui_bf, wenc_ref[...], preferred_element_type=jnp.float32) + benc_ref[...]
    for k in range(N_RATINGS):
        sel = (r_int == (k + MIN_RATING)).astype(jnp.float32)            # (tm, 1)
        enc = enc + sel * wenc_r_ref[pl.ds(k, 1), :]                     # (1, hidden)
    enc_ref[...] = jnp.tanh(enc)


def init_params(key, n_users, n_items, d_model, hidden_size, n_layers):
    """Mirror NRTEncoder.init_weights: uniform(-0.1, 0.1) weights, zero biases."""
    ks = jax.random.split(key, 7)
    u = lambda k, shape: jax.random.uniform(k, shape, jnp.float32, -0.1, 0.1)
    return dict(
        user_emb=u(ks[0], (n_users, d_model)),
        item_emb=u(ks[1], (n_items, d_model)),
        w0=u(ks[2], (2 * d_model, hidden_size)),          # layers[0].weight.T
        b0=jnp.zeros((1, hidden_size), jnp.float32),
        wh=u(ks[3], (n_layers, hidden_size, hidden_size)),
        bh=jnp.zeros((n_layers, 1, hidden_size), jnp.float32),
        wout=u(ks[4], (1, hidden_size)),                   # Linear(hidden, 1) weight
        bout=jnp.zeros((1, 1), jnp.float32),
        wenc_ui=u(ks[5], (2 * d_model, hidden_size)),      # encoder[0].weight.T, U/I rows
        wenc_r=u(ks[6], (N_RATINGS, hidden_size)),         # encoder[0].weight.T, rating rows
        benc=jnp.zeros((1, hidden_size), jnp.float32),
    )


def nrt_encoder_forward(params, U_ids, I_ids, *, n_layers, tm=256):
    B = U_ids.shape[0]
    n_users, d_model = params["user_emb"].shape
    n_items = params["item_emb"].shape[0]
    hidden = params["b0"].shape[1]

    tm = max(8, min(tm, _round_up(B, 8)))     # multiple of 8 sublanes
    B_pad = _round_up(B, tm)
    n_tiles = B_pad // tm

    u_ids = jnp.pad(U_ids.astype(jnp.int32), (0, B_pad - B)).reshape(B_pad, 1)
    i_ids = jnp.pad(I_ids.astype(jnp.int32), (0, B_pad - B)).reshape(B_pad, 1)

    # VMEM-resident "wide" bf16 embedding tables (user cols [0:d], item cols [d:2d]),
    # zero-padded to lane-friendly row counts (pad rows are never selected by valid ids).
    nU_pad = _round_up(n_users, 128)
    nI_pad = _round_up(n_items, 128)
    z = lambda n: jnp.zeros((n, d_model), jnp.float32)
    u_tab = jnp.concatenate([params["user_emb"], z(n_users)], axis=1)
    i_tab = jnp.concatenate([z(n_items), params["item_emb"]], axis=1)
    u_tab = jnp.pad(u_tab, ((0, nU_pad - n_users), (0, 0))).astype(jnp.bfloat16)
    i_tab = jnp.pad(i_tab, ((0, nI_pad - n_items), (0, 0))).astype(jnp.bfloat16)

    bf16 = lambda x: x.astype(jnp.bfloat16)
    w0, wh, wenc = bf16(params["w0"]), bf16(params["wh"]), bf16(params["wenc_ui"])

    const2 = lambda i: (0, 0)      # weights/tables: VMEM-resident, fetched once
    const3 = lambda i: (0, 0, 0)
    row = lambda i: (i, 0)

    in_specs = [
        pl.BlockSpec((tm, 1), row),            # u_ids
        pl.BlockSpec((tm, 1), row),            # i_ids
        pl.BlockSpec(u_tab.shape, const2),     # user table (wide, bf16)
        pl.BlockSpec(i_tab.shape, const2),     # item table (wide, bf16)
        pl.BlockSpec(w0.shape, const2),
        pl.BlockSpec(params["b0"].shape, const2),
        pl.BlockSpec(wh.shape, const3),
        pl.BlockSpec(params["bh"].shape, const3),
        pl.BlockSpec(params["wout"].shape, const2),
        pl.BlockSpec(params["bout"].shape, const2),
        pl.BlockSpec(wenc.shape, const2),
        pl.BlockSpec(params["wenc_r"].shape, const2),
        pl.BlockSpec(params["benc"].shape, const2),
    ]
    out_specs = (pl.BlockSpec((tm, 1), row),
                 pl.BlockSpec((tm, hidden), row))

    flops = 2 * B_pad * ((nU_pad + nI_pad) * 2 * d_model       # one-hot gathers
                         + 2 * (2 * d_model) * hidden          # layer0 + encoder
                         + n_layers * hidden * hidden          # hidden layers
                         + hidden * (N_RATINGS + 1))           # rating FMAs + out reduction
    transcendentals = B_pad * hidden * (n_layers + 2)
    bytes_accessed = (
        2 * ((nU_pad + nI_pad) * 2 * d_model                   # bf16 tables
             + 2 * (2 * d_model) * hidden                      # w0 + wenc bf16
             + n_layers * hidden * hidden)                     # wh bf16
        + 4 * (hidden * (n_layers + 3 + N_RATINGS) + 2)        # f32 biases / wout / bout
        + B_pad * 2 * 4                                        # ids
        + B_pad * (hidden + 1) * 4)                            # outputs

    rating, enc = pl.pallas_call(
        functools.partial(_nrt_kernel, n_layers),
        out_shape=(jax.ShapeDtypeStruct((B_pad, 1), jnp.float32),
                   jax.ShapeDtypeStruct((B_pad, hidden), jnp.float32)),
        grid=(n_tiles,),
        in_specs=in_specs,
        out_specs=out_specs,
        compiler_params=pltpu.CompilerParams(
            dimension_semantics=("parallel",),     # v7x: shard batch tiles across both TCs
            vmem_limit_bytes=32 * 1024 * 1024),
        cost_estimate=pl.CostEstimate(flops=flops,
                                      transcendentals=transcendentals,
                                      bytes_accessed=bytes_accessed),
    )(u_ids, i_ids, u_tab, i_tab,
      w0, params["b0"], wh, params["bh"],
      params["wout"], params["bout"],
      wenc, params["wenc_r"], params["benc"])

    return rating[:B, 0], enc[None, :B, :]           # (B,), (1, B, hidden)


def nrt_reference(params, U_ids, I_ids, *, n_layers):
    """Pure-JAX reference with the same bf16-matmul / f32-accumulate precision."""
    bf16 = lambda x: x.astype(jnp.bfloat16)
    U = bf16(params["user_emb"])[U_ids]
    I = bf16(params["item_emb"])[I_ids]
    ui = jnp.concatenate([U, I], axis=1)
    h = jax.nn.sigmoid(jnp.dot(ui, bf16(params["w0"]),
                               preferred_element_type=jnp.float32) + params["b0"])
    for l in range(n_layers):
        h = jax.nn.sigmoid(jnp.dot(bf16(h), bf16(params["wh"][l]),
                                   preferred_element_type=jnp.float32) + params["bh"][l])
    rating = jnp.sum(h * params["wout"], axis=-1) + params["bout"][0, 0]
    r_int = jnp.clip(rating, MIN_RATING, MAX_RATING).astype(jnp.int32)
    one_hot = jax.nn.one_hot(r_int - MIN_RATING, N_RATINGS, dtype=jnp.float32)
    enc = (jnp.dot(ui, bf16(params["wenc_ui"]), preferred_element_type=jnp.float32)
           + one_hot @ params["wenc_r"] + params["benc"])
    return rating, jnp.tanh(enc)[None]


if __name__ == "__main__":
    n_users, n_items = 100, 120
    d_model, hidden_size, n_layers = 32, 128, 4   # hidden=128 -> lane-dense enc output
    batch = 512                                    # 2 batch tiles of tm=256

    key = jax.random.PRNGKey(0)
    k_params, k_u, k_i = jax.random.split(key, 3)

    params = init_params(k_params, n_users, n_items, d_model, hidden_size, n_layers)
    U_ids = jax.random.randint(k_u, (batch,), 0, n_users, dtype=jnp.int32)
    I_ids = jax.random.randint(k_i, (batch,), 0, n_items, dtype=jnp.int32)

    fwd = jax.jit(functools.partial(nrt_encoder_forward, n_layers=n_layers, tm=256))
    rating, encoder_state = fwd(params, U_ids, I_ids)
    rating = jax.block_until_ready(rating)
    encoder_state = jax.block_until_ready(encoder_state)

    assert rating.shape == (batch,)
    assert encoder_state.shape == (1, batch, hidden_size)
    assert bool(jnp.all(jnp.isfinite(rating)))
    assert bool(jnp.all(jnp.isfinite(encoder_state)))

    rating_ref, enc_ref = nrt_reference(params, U_ids, I_ids, n_layers=n_layers)
    assert bool(jnp.allclose(rating, rating_ref, atol=2e-2, rtol=2e-2)), \
        float(jnp.max(jnp.abs(rating - rating_ref)))
    assert bool(jnp.allclose(encoder_state, enc_ref, atol=2e-2, rtol=2e-2)), \
        float(jnp.max(jnp.abs(encoder_state - enc_ref)))

    print("KERNEL_OK")
</pallas_src>

<mosaic_0001>
module attributes {stable_mosaic.version = 11 : i64} {
  func.func @_nrt_kernel(%arg0: i32, %arg1: memref<256x1xi32, #tpu.memory_space<vmem>>, %arg2: memref<256x1xi32, #tpu.memory_space<vmem>>, %arg3: memref<128x64xbf16, #tpu.memory_space<vmem>>, %arg4: memref<128x64xbf16, #tpu.memory_space<vmem>>, %arg5: memref<64x128xbf16, #tpu.memory_space<vmem>>, %arg6: memref<1x128xf32, #tpu.memory_space<vmem>>, %arg7: memref<4x128x128xbf16, #tpu.memory_space<vmem>>, %arg8: memref<4x1x128xf32, #tpu.memory_space<vmem>>, %arg9: memref<1x128xf32, #tpu.memory_space<vmem>>, %arg10: memref<1x1xf32, #tpu.memory_space<vmem>>, %arg11: memref<64x128xbf16, #tpu.memory_space<vmem>>, %arg12: memref<5x128xf32, #tpu.memory_space<vmem>>, %arg13: memref<1x128xf32, #tpu.memory_space<vmem>>, %arg14: memref<256x1xf32, #tpu.memory_space<vmem>>, %arg15: memref<256x128xf32, #tpu.memory_space<vmem>>) attributes {dimension_semantics = [#tpu.dimension_semantics<parallel>], iteration_bounds = array<i64: 2>, scalar_prefetch = 0 : i64, scratch_operands = 0 : i64, tpu.core_type = #tpu.core_type<tc>, window_params = [{transform_indices = @transform_0, window_bounds = array<i64: 256, 1>}, {transform_indices = @transform_1, window_bounds = array<i64: 256, 1>}, {pipeline_mode = #tpu.pipeline_mode<synchronous>, transform_indices = @transform_2, window_bounds = array<i64: 128, 64>}, {pipeline_mode = #tpu.pipeline_mode<synchronous>, transform_indices = @transform_3, window_bounds = array<i64: 128, 64>}, {pipeline_mode = #tpu.pipeline_mode<synchronous>, transform_indices = @transform_4, window_bounds = array<i64: 64, 128>}, {pipeline_mode = #tpu.pipeline_mode<synchronous>, transform_indices = @transform_5, window_bounds = array<i64: 1, 128>}, {pipeline_mode = #tpu.pipeline_mode<synchronous>, transform_indices = @transform_6, window_bounds = array<i64: 4, 128, 128>}, {pipeline_mode = #tpu.pipeline_mode<synchronous>, transform_indices = @transform_7, window_bounds = array<i64: 4, 1, 128>}, {pipeline_mode = #tpu.pipeline_mode<synchronous>, transform_indices = @transform_8, window_bounds = array<i64: 1, 128>}, {pipeline_mode = #tpu.pipeline_mode<synchronous>, transform_indices = @transform_9, window_bounds = array<i64: 1, 1>}, {pipeline_mode = #tpu.pipeline_mode<synchronous>, transform_indices = @transform_10, window_bounds = array<i64: 64, 128>}, {pipeline_mode = #tpu.pipeline_mode<synchronous>, transform_indices = @transform_11, window_bounds = array<i64: 5, 128>}, {pipeline_mode = #tpu.pipeline_mode<synchronous>, transform_indices = @transform_12, window_bounds = array<i64: 1, 128>}, {transform_indices = @transform_13, window_bounds = array<i64: 256, 1>}, {transform_indices = @transform_14, window_bounds = array<i64: 256, 128>}]} {
    %0 = tpu.iota {dimensions = array<i32: 1>} : vector<256x128xi32>
    %c0 = arith.constant 0 : index
    %c0_0 = arith.constant 0 : index
    %1 = vector.load %arg1[%c0, %c0_0] : memref<256x1xi32, #tpu.memory_space<vmem>>, vector<256x1xi32>
    %2 = vector.broadcast %1 : vector<256x1xi32> to vector<256x128xi32>
    %3 = arith.cmpi eq, %0, %2 : vector<256x128xi32>
    %4 = arith.extui %3 : vector<256x128xi1> to vector<256x128xi32>
    %5 = arith.sitofp %4 : vector<256x128xi32> to vector<256x128xf32>
    %6 = arith.truncf %5 : vector<256x128xf32> to vector<256x128xbf16>
    %7 = tpu.iota {dimensions = array<i32: 1>} : vector<256x128xi32>
    %c0_1 = arith.constant 0 : index
    %c0_2 = arith.constant 0 : index
    %8 = vector.load %arg2[%c0_1, %c0_2] : memref<256x1xi32, #tpu.memory_space<vmem>>, vector<256x1xi32>
    %9 = vector.broadcast %8 : vector<256x1xi32> to vector<256x128xi32>
    %10 = arith.cmpi eq, %7, %9 : vector<256x128xi32>
    %11 = arith.extui %10 : vector<256x128xi1> to vector<256x128xi32>
    %12 = arith.sitofp %11 : vector<256x128xi32> to vector<256x128xf32>
    %13 = arith.truncf %12 : vector<256x128xf32> to vector<256x128xbf16>
    %c0_3 = arith.constant 0 : index
    %c0_4 = arith.constant 0 : index
    %14 = vector.load %arg3[%c0_3, %c0_4] : memref<128x64xbf16, #tpu.memory_space<vmem>>, vector<128x64xbf16>
    %cst = arith.constant dense<0.000000e+00> : vector<256x64xf32>
    %15 = tpu.matmul %6, %14, %cst {dimension_numbers = #tpu.dot_dimension_numbers<[1], [0], [0], [1], [0, 0, 1, 1], [], []>} : vector<256x128xbf16>, vector<128x64xbf16>, vector<256x64xf32> -> vector<256x64xf32>
    %c0_5 = arith.constant 0 : index
    %c0_6 = arith.constant 0 : index
    %16 = vector.load %arg4[%c0_5, %c0_6] : memref<128x64xbf16, #tpu.memory_space<vmem>>, vector<128x64xbf16>
    %cst_7 = arith.constant dense<0.000000e+00> : vector<256x64xf32>
    %17 = tpu.matmul %13, %16, %cst_7 {dimension_numbers = #tpu.dot_dimension_numbers<[1], [0], [0], [1], [0, 0, 1, 1], [], []>} : vector<256x128xbf16>, vector<128x64xbf16>, vector<256x64xf32> -> vector<256x64xf32>
    %18 = arith.addf %15, %17 : vector<256x64xf32>
    %19 = arith.truncf %18 : vector<256x64xf32> to vector<256x64xbf16>
    %c0_8 = arith.constant 0 : index
    %c0_9 = arith.constant 0 : index
    %20 = vector.load %arg5[%c0_8, %c0_9] : memref<64x128xbf16, #tpu.memory_space<vmem>>, vector<64x128xbf16>
    %cst_10 = arith.constant dense<0.000000e+00> : vector<256x128xf32>
    %21 = tpu.matmul %19, %20, %cst_10 {dimension_numbers = #tpu.dot_dimension_numbers<[1], [0], [0], [1], [0, 0, 1, 1], [], []>} : vector<256x64xbf16>, vector<64x128xbf16>, vector<256x128xf32> -> vector<256x128xf32>
    %c0_11 = arith.constant 0 : index
    %c0_12 = arith.constant 0 : index
    %22 = vector.load %arg6[%c0_11, %c0_12] : memref<1x128xf32, #tpu.memory_space<vmem>>, vector<1x128xf32>
    %23 = vector.broadcast %22 : vector<1x128xf32> to vector<256x128xf32>
    %24 = arith.addf %21, %23 : vector<256x128xf32>
    %25 = arith.negf %24 : vector<256x128xf32>
    %26 = math.exp %25 : vector<256x128xf32>
    %cst_13 = arith.constant 1.000000e+00 : f32
    %27 = vector.broadcast %cst_13 : f32 to vector<256x128xf32>
    %28 = arith.addf %27, %26 : vector<256x128xf32>
    %29 = arith.divf %27, %28 : vector<256x128xf32>
    %30 = arith.truncf %29 : vector<256x128xf32> to vector<256x128xbf16>
    %c0_14 = arith.constant 0 : index
    %c0_15 = arith.constant 0 : index
    %c0_16 = arith.constant 0 : index
    %31 = vector.load %arg7[%c0_14, %c0_15, %c0_16] : memref<4x128x128xbf16, #tpu.memory_space<vmem>>, vector<1x128x128xbf16>
    %32 = vector.shape_cast %31 : vector<1x128x128xbf16> to vector<128x128xbf16>
    %cst_17 = arith.constant dense<0.000000e+00> : vector<256x128xf32>
    %33 = tpu.matmul %30, %32, %cst_17 {dimension_numbers = #tpu.dot_dimension_numbers<[1], [0], [0], [1], [0, 0, 1, 1], [], []>} : vector<256x128xbf16>, vector<128x128xbf16>, vector<256x128xf32> -> vector<256x128xf32>
    %c0_18 = arith.constant 0 : index
    %c0_19 = arith.constant 0 : index
    %c0_20 = arith.constant 0 : index
    %34 = vector.load %arg8[%c0_18, %c0_19, %c0_20] : memref<4x1x128xf32, #tpu.memory_space<vmem>>, vector<1x1x128xf32>
    %35 = vector.shape_cast %34 : vector<1x1x128xf32> to vector<1x128xf32>
    %36 = vector.broadcast %35 : vector<1x128xf32> to vector<256x128xf32>
    %37 = arith.addf %33, %36 : vector<256x128xf32>
    %38 = arith.negf %37 : vector<256x128xf32>
    %39 = math.exp %38 : vector<256x128xf32>
    %cst_21 = arith.constant 1.000000e+00 : f32
    %40 = vector.broadcast %cst_21 : f32 to vector<256x128xf32>
    %41 = arith.addf %40, %39 : vector<256x128xf32>
    %42 = arith.divf %40, %41 : vector<256x128xf32>
    %43 = arith.truncf %42 : vector<256x128xf32> to vector<256x128xbf16>
    %c1 = arith.constant 1 : index
    %c0_22 = arith.constant 0 : index
    %c0_23 = arith.constant 0 : index
    %44 = vector.load %arg7[%c1, %c0_22, %c0_23] : memref<4x128x128xbf16, #tpu.memory_space<vmem>>, vector<1x128x128xbf16>
    %45 = vector.shape_cast %44 : vector<1x128x128xbf16> to vector<128x128xbf16>
    %cst_24 = arith.constant dense<0.000000e+00> : vector<256x128xf32>
    %46 = tpu.matmul %43, %45, %cst_24 {dimension_numbers = #tpu.dot_dimension_numbers<[1], [0], [0], [1], [0, 0, 1, 1], [], []>} : vector<256x128xbf16>, vector<128x128xbf16>, vector<256x128xf32> -> vector<256x128xf32>
    %c1_25 = arith.constant 1 : index
    %c0_26 = arith.constant 0 : index
    %c0_27 = arith.constant 0 : index
    %47 = vector.load %arg8[%c1_25, %c0_26, %c0_27] : memref<4x1x128xf32, #tpu.memory_space<vmem>>, vector<1x1x128xf32>
    %48 = vector.shape_cast %47 : vector<1x1x128xf32> to vector<1x128xf32>
    %49 = vector.broadcast %48 : vector<1x128xf32> to vector<256x128xf32>
    %50 = arith.addf %46, %49 : vector<256x128xf32>
    %51 = arith.negf %50 : vector<256x128xf32>
    %52 = math.exp %51 : vector<256x128xf32>
    %cst_28 = arith.constant 1.000000e+00 : f32
    %53 = vector.broadcast %cst_28 : f32 to vector<256x128xf32>
    %54 = arith.addf %53, %52 : vector<256x128xf32>
    %55 = arith.divf %53, %54 : vector<256x128xf32>
    %56 = arith.truncf %55 : vector<256x128xf32> to vector<256x128xbf16>
    %c2 = arith.constant 2 : index
    %c0_29 = arith.constant 0 : index
    %c0_30 = arith.constant 0 : index
    %57 = vector.load %arg7[%c2, %c0_29, %c0_30] : memref<4x128x128xbf16, #tpu.memory_space<vmem>>, vector<1x128x128xbf16>
    %58 = vector.shape_cast %57 : vector<1x128x128xbf16> to vector<128x128xbf16>
    %cst_31 = arith.constant dense<0.000000e+00> : vector<256x128xf32>
    %59 = tpu.matmul %56, %58, %cst_31 {dimension_numbers = #tpu.dot_dimension_numbers<[1], [0], [0], [1], [0, 0, 1, 1], [], []>} : vector<256x128xbf16>, vector<128x128xbf16>, vector<256x128xf32> -> vector<256x128xf32>
    %c2_32 = arith.constant 2 : index
    %c0_33 = arith.constant 0 : index
    %c0_34 = arith.constant 0 : index
    %60 = vector.load %arg8[%c2_32, %c0_33, %c0_34] : memref<4x1x128xf32, #tpu.memory_space<vmem>>, vector<1x1x128xf32>
    %61 = vector.shape_cast %60 : vector<1x1x128xf32> to vector<1x128xf32>
    %62 = vector.broadcast %61 : vector<1x128xf32> to vector<256x128xf32>
    %63 = arith.addf %59, %62 : vector<256x128xf32>
    %64 = arith.negf %63 : vector<256x128xf32>
    %65 = math.exp %64 : vector<256x128xf32>
    %cst_35 = arith.constant 1.000000e+00 : f32
    %66 = vector.broadcast %cst_35 : f32 to vector<256x128xf32>
    %67 = arith.addf %66, %65 : vector<256x128xf32>
    %68 = arith.divf %66, %67 : vector<256x128xf32>
    %69 = arith.truncf %68 : vector<256x128xf32> to vector<256x128xbf16>
    %c3 = arith.constant 3 : index
    %c0_36 = arith.constant 0 : index
    %c0_37 = arith.constant 0 : index
    %70 = vector.load %arg7[%c3, %c0_36, %c0_37] : memref<4x128x128xbf16, #tpu.memory_space<vmem>>, vector<1x128x128xbf16>
    %71 = vector.shape_cast %70 : vector<1x128x128xbf16> to vector<128x128xbf16>
    %cst_38 = arith.constant dense<0.000000e+00> : vector<256x128xf32>
    %72 = tpu.matmul %69, %71, %cst_38 {dimension_numbers = #tpu.dot_dimension_numbers<[1], [0], [0], [1], [0, 0, 1, 1], [], []>} : vector<256x128xbf16>, vector<128x128xbf16>, vector<256x128xf32> -> vector<256x128xf32>
    %c3_39 = arith.constant 3 : index
    %c0_40 = arith.constant 0 : index
    %c0_41 = arith.constant 0 : index
    %73 = vector.load %arg8[%c3_39, %c0_40, %c0_41] : memref<4x1x128xf32, #tpu.memory_space<vmem>>, vector<1x1x128xf32>
    %74 = vector.shape_cast %73 : vector<1x1x128xf32> to vector<1x128xf32>
    %75 = vector.broadcast %74 : vector<1x128xf32> to vector<256x128xf32>
    %76 = arith.addf %72, %75 : vector<256x128xf32>
    %77 = arith.negf %76 : vector<256x128xf32>
    %78 = math.exp %77 : vector<256x128xf32>
    %cst_42 = arith.constant 1.000000e+00 : f32
    %79 = vector.broadcast %cst_42 : f32 to vector<256x128xf32>
    %80 = arith.addf %79, %78 : vector<256x128xf32>
    %81 = arith.divf %79, %80 : vector<256x128xf32>
    %c0_43 = arith.constant 0 : index
    %c0_44 = arith.constant 0 : index
    %82 = vector.load %arg9[%c0_43, %c0_44] : memref<1x128xf32, #tpu.memory_space<vmem>>, vector<1x128xf32>
    %83 = vector.broadcast %82 : vector<1x128xf32> to vector<256x128xf32>
    %84 = arith.mulf %81, %83 : vector<256x128xf32>
    %cst_45 = arith.constant dense<0.000000e+00> : vector<256xf32>
    %85 = vector.multi_reduction <add>, %84, %cst_45 [1] : vector<256x128xf32> to vector<256xf32>
    %86 = vector.shape_cast %85 : vector<256xf32> to vector<256x1xf32>
    %c0_46 = arith.constant 0 : index
    %c0_47 = arith.constant 0 : index
    %87 = vector.load %arg10[%c0_46, %c0_47] : memref<1x1xf32, #tpu.memory_space<vmem>>, vector<1x1xf32>
    %88 = vector.broadcast %87 : vector<1x1xf32> to vector<256x1xf32>
    %89 = arith.addf %86, %88 : vector<256x1xf32>
    %c0_48 = arith.constant 0 : index
    %c0_49 = arith.constant 0 : index
    %90 = vector.load %arg14[%c0_48, %c0_49] : memref<256x1xf32, #tpu.memory_space<vmem>>, vector<256x1xf32>
    tpu.vector_store %arg14[%c0_48, %c0_49], %89 {strides = array<i32>} : memref<256x1xf32, #tpu.memory_space<vmem>>, vector<256x1xf32>,
    %c1_i32 = arith.constant 1 : i32
    %c5_i32 = arith.constant 5 : i32
    %91 = arith.sitofp %c1_i32 : i32 to f32
    %92 = vector.broadcast %91 : f32 to vector<256x1xf32>
    %93 = arith.maximumf %92, %89 : vector<256x1xf32>
    %94 = arith.sitofp %c5_i32 : i32 to f32
    %95 = vector.broadcast %94 : f32 to vector<256x1xf32>
    %96 = arith.minimumf %95, %93 : vector<256x1xf32>
    %97 = arith.fptosi %96 : vector<256x1xf32> to vector<256x1xi32>
    %c0_50 = arith.constant 0 : index
    %c0_51 = arith.constant 0 : index
    %98 = vector.load %arg11[%c0_50, %c0_51] : memref<64x128xbf16, #tpu.memory_space<vmem>>, vector<64x128xbf16>
    %cst_52 = arith.constant dense<0.000000e+00> : vector<256x128xf32>
    %99 = tpu.matmul %19, %98, %cst_52 {dimension_numbers = #tpu.dot_dimension_numbers<[1], [0], [0], [1], [0, 0, 1, 1], [], []>} : vector<256x64xbf16>, vector<64x128xbf16>, vector<256x128xf32> -> vector<256x128xf32>
    %c0_53 = arith.constant 0 : index
    %c0_54 = arith.constant 0 : index
    %100 = vector.load %arg13[%c0_53, %c0_54] : memref<1x128xf32, #tpu.memory_space<vmem>>, vector<1x128xf32>
    %101 = vector.broadcast %100 : vector<1x128xf32> to vector<256x128xf32>
    %102 = arith.addf %99, %101 : vector<256x128xf32>
    %c1_i32_55 = arith.constant 1 : i32
    %103 = vector.broadcast %c1_i32_55 : i32 to vector<256x1xi32>
    %104 = arith.cmpi eq, %97, %103 : vector<256x1xi32>
    %105 = arith.extui %104 : vector<256x1xi1> to vector<256x1xi32>
    %106 = arith.sitofp %105 : vector<256x1xi32> to vector<256x1xf32>
    %c0_56 = arith.constant 0 : index
    %c0_57 = arith.constant 0 : index
    %107 = vector.load %arg12[%c0_56, %c0_57] : memref<5x128xf32, #tpu.memory_space<vmem>>, vector<1x128xf32>
    %108 = vector.broadcast %106 : vector<256x1xf32> to vector<256x128xf32>
    %109 = vector.broadcast %107 : vector<1x128xf32> to vector<256x128xf32>
    %110 = arith.mulf %108, %109 : vector<256x128xf32>
    %111 = arith.addf %102, %110 : vector<256x128xf32>
    %c2_i32 = arith.constant 2 : i32
    %112 = vector.broadcast %c2_i32 : i32 to vector<256x1xi32>
    %113 = arith.cmpi eq, %97, %112 : vector<256x1xi32>
    %114 = arith.extui %113 : vector<256x1xi1> to vector<256x1xi32>
    %115 = arith.sitofp %114 : vector<256x1xi32> to vector<256x1xf32>
    %c1_58 = arith.constant 1 : index
    %c0_59 = arith.constant 0 : index
    %116 = vector.load %arg12[%c1_58, %c0_59] : memref<5x128xf32, #tpu.memory_space<vmem>>, vector<1x128xf32>
    %117 = vector.broadcast %115 : vector<256x1xf32> to vector<256x128xf32>
    %118 = vector.broadcast %116 : vector<1x128xf32> to vector<256x128xf32>
    %119 = arith.mulf %117, %118 : vector<256x128xf32>
    %120 = arith.addf %111, %119 : vector<256x128xf32>
    %c3_i32 = arith.constant 3 : i32
    %121 = vector.broadcast %c3_i32 : i32 to vector<256x1xi32>
    %122 = arith.cmpi eq, %97, %121 : vector<256x1xi32>
    %123 = arith.extui %122 : vector<256x1xi1> to vector<256x1xi32>
    %124 = arith.sitofp %123 : vector<256x1xi32> to vector<256x1xf32>
    %c2_60 = arith.constant 2 : index
    %c0_61 = arith.constant 0 : index
    %125 = vector.load %arg12[%c2_60, %c0_61] : memref<5x128xf32, #tpu.memory_space<vmem>>, vector<1x128xf32>
    %126 = vector.broadcast %124 : vector<256x1xf32> to vector<256x128xf32>
    %127 = vector.broadcast %125 : vector<1x128xf32> to vector<256x128xf32>
    %128 = arith.mulf %126, %127 : vector<256x128xf32>
    %129 = arith.addf %120, %128 : vector<256x128xf32>
    %c4_i32 = arith.constant 4 : i32
    %130 = vector.broadcast %c4_i32 : i32 to vector<256x1xi32>
    %131 = arith.cmpi eq, %97, %130 : vector<256x1xi32>
    %132 = arith.extui %131 : vector<256x1xi1> to vector<256x1xi32>
    %133 = arith.sitofp %132 : vector<256x1xi32> to vector<256x1xf32>
    %c3_62 = arith.constant 3 : index
    %c0_63 = arith.constant 0 : index
    %134 = vector.load %arg12[%c3_62, %c0_63] : memref<5x128xf32, #tpu.memory_space<vmem>>, vector<1x128xf32>
    %135 = vector.broadcast %133 : vector<256x1xf32> to vector<256x128xf32>
    %136 = vector.broadcast %134 : vector<1x128xf32> to vector<256x128xf32>
    %137 = arith.mulf %135, %136 : vector<256x128xf32>
    %138 = arith.addf %129, %137 : vector<256x128xf32>
    %c5_i32_64 = arith.constant 5 : i32
    %139 = vector.broadcast %c5_i32_64 : i32 to vector<256x1xi32>
    %140 = arith.cmpi eq, %97, %139 : vector<256x1xi32>
    %141 = arith.extui %140 : vector<256x1xi1> to vector<256x1xi32>
    %142 = arith.sitofp %141 : vector<256x1xi32> to vector<256x1xf32>
    %c4 = arith.constant 4 : index
    %c0_65 = arith.constant 0 : index
    %143 = vector.load %arg12[%c4, %c0_65] : memref<5x128xf32, #tpu.memory_space<vmem>>, vector<1x128xf32>
    %144 = vector.broadcast %142 : vector<256x1xf32> to vector<256x128xf32>
    %145 = vector.broadcast %143 : vector<1x128xf32> to vector<256x128xf32>
    %146 = arith.mulf %144, %145 : vector<256x128xf32>
    %147 = arith.addf %138, %146 : vector<256x128xf32>
    %148 = math.tanh %147 : vector<256x128xf32>
    %c0_66 = arith.constant 0 : index
    %c0_67 = arith.constant 0 : index
    %149 = vector.load %arg15[%c0_66, %c0_67] : memref<256x128xf32, #tpu.memory_space<vmem>>, vector<256x128xf32>
    tpu.vector_store %arg15[%c0_66, %c0_67], %148 {strides = array<i32>} : memref<256x128xf32, #tpu.memory_space<vmem>>, vector<256x128xf32>,
    return
  }
  func.func @transform_0(%arg0: i32) -> (i32, i32) {
    %c0_i32 = arith.constant 0 : i32
    %c0_i32_0 = arith.constant 0 : i32
    return %arg0, %c0_i32 : i32, i32
  }
  func.func @transform_1(%arg0: i32) -> (i32, i32) {
    %c0_i32 = arith.constant 0 : i32
    %c0_i32_0 = arith.constant 0 : i32
    return %arg0, %c0_i32 : i32, i32
  }
  func.func @transform_2(%arg0: i32) -> (i32, i32) {
    %c0_i32 = arith.constant 0 : i32
    %c0_i32_0 = arith.constant 0 : i32
    %c0_i32_1 = arith.constant 0 : i32
    return %c0_i32, %c0_i32_0 : i32, i32
  }
  func.func @transform_3(%arg0: i32) -> (i32, i32) {
    %c0_i32 = arith.constant 0 : i32
    %c0_i32_0 = arith.constant 0 : i32
    %c0_i32_1 = arith.constant 0 : i32
    return %c0_i32, %c0_i32_0 : i32, i32
  }
  func.func @transform_4(%arg0: i32) -> (i32, i32) {
    %c0_i32 = arith.constant 0 : i32
    %c0_i32_0 = arith.constant 0 : i32
    %c0_i32_1 = arith.constant 0 : i32
    return %c0_i32, %c0_i32_0 : i32, i32
  }
  func.func @transform_5(%arg0: i32) -> (i32, i32) {
    %c0_i32 = arith.constant 0 : i32
    %c0_i32_0 = arith.constant 0 : i32
    %c0_i32_1 = arith.constant 0 : i32
    return %c0_i32, %c0_i32_0 : i32, i32
  }
  func.func @transform_6(%arg0: i32) -> (i32, i32, i32) {
    %c0_i32 = arith.constant 0 : i32
    %c0_i32_0 = arith.constant 0 : i32
    %c0_i32_1 = arith.constant 0 : i32
    %c0_i32_2 = arith.constant 0 : i32
    return %c0_i32, %c0_i32_0, %c0_i32_1 : i32, i32, i32
  }
  func.func @transform_7(%arg0: i32) -> (i32, i32, i32) {
    %c0_i32 = arith.constant 0 : i32
    %c0_i32_0 = arith.constant 0 : i32
    %c0_i32_1 = arith.constant 0 : i32
    %c0_i32_2 = arith.constant 0 : i32
    return %c0_i32, %c0_i32_0, %c0_i32_1 : i32, i32, i32
  }
  func.func @transform_8(%arg0: i32) -> (i32, i32) {
    %c0_i32 = arith.constant 0 : i32
    %c0_i32_0 = arith.constant 0 : i32
    %c0_i32_1 = arith.constant 0 : i32
    return %c0_i32, %c0_i32_0 : i32, i32
  }
  func.func @transform_9(%arg0: i32) -> (i32, i32) {
    %c0_i32 = arith.constant 0 : i32
    %c0_i32_0 = arith.constant 0 : i32
    %c0_i32_1 = arith.constant 0 : i32
    return %c0_i32, %c0_i32_0 : i32, i32
  }
  func.func @transform_10(%arg0: i32) -> (i32, i32) {
    %c0_i32 = arith.constant 0 : i32
    %c0_i32_0 = arith.constant 0 : i32
    %c0_i32_1 = arith.constant 0 : i32
    return %c0_i32, %c0_i32_0 : i32, i32
  }
  func.func @transform_11(%arg0: i32) -> (i32, i32) {
    %c0_i32 = arith.constant 0 : i32
    %c0_i32_0 = arith.constant 0 : i32
    %c0_i32_1 = arith.constant 0 : i32
    return %c0_i32, %c0_i32_0 : i32, i32
  }
  func.func @transform_12(%arg0: i32) -> (i32, i32) {
    %c0_i32 = arith.constant 0 : i32
    %c0_i32_0 = arith.constant 0 : i32
    %c0_i32_1 = arith.constant 0 : i32
    return %c0_i32, %c0_i32_0 : i32, i32
  }
  func.func @transform_13(%arg0: i32) -> (i32, i32) {
    %c0_i32 = arith.constant 0 : i32
    %c0_i32_0 = arith.constant 0 : i32
    return %arg0, %c0_i32 : i32, i32
  }
  func.func @transform_14(%arg0: i32) -> (i32, i32) {
    %c0_i32 = arith.constant 0 : i32
    %c0_i32_0 = arith.constant 0 : i32
    return %arg0, %c0_i32 : i32, i32
  }
}

</mosaic_0001>

<llo_original>
// kernel: nrt_encoder_forward.1
$region0: #{nrt_encoder_forward.1}
  #allocation0 [shape = 'u32[]', space=smem, size = 0x4, offset = 0x4, fixed_abs, tag = 'smem constant byte address 0x4 - core index']
  #allocation1 [shape = 'u32[144,128]{1,0:T(1,128)}', space=vmem, size = 0x12000, scoped, tag = 'internal scratch']
  #allocation2 [shape = 'f32[1,1]{1,0:T(1,128)S(1)}', space=vmem, size = 0x200, scoped, tag = 'scoped memory for nrt_encoder_forward.1']
  %s0 = inlined_call_operand.vmem [shape: s32[512,1], index: 0, kind: input, shape index: {}]
  %s1 = inlined_call_operand.vmem [shape: s32[512,1], index: 1, kind: input, shape index: {}]
  %s2 = inlined_call_operand.vmem [shape: bf16[128,64], index: 2, kind: input, shape index: {}]
  %s3 = inlined_call_operand.vmem [shape: bf16[128,64], index: 3, kind: input, shape index: {}]
  %s4 = inlined_call_operand.vmem [shape: bf16[64,128], index: 4, kind: input, shape index: {}]
  %s5 = inlined_call_operand.vmem [shape: f32[1,128], index: 5, kind: input, shape index: {}]
  %s6 = inlined_call_operand.vmem [shape: bf16[4,128,128], index: 6, kind: input, shape index: {}]
  %s7 = inlined_call_operand.vmem [shape: f32[4,1,128], index: 7, kind: input, shape index: {}]
  %s8 = inlined_call_operand.vmem [shape: f32[1,128], index: 8, kind: input, shape index: {}]
  %s9 = inlined_call_operand.<no memory space> [shape: f32[1,1], index: 9, kind: input, shape index: {}]
  %s10 = inlined_call_operand.vmem [shape: bf16[64,128], index: 10, kind: input, shape index: {}]
  %s11 = inlined_call_operand.vmem [shape: f32[5,128], index: 11, kind: input, shape index: {}]
  %s12 = inlined_call_operand.vmem [shape: f32[1,128], index: 12, kind: input, shape index: {}]
  %s13 = inlined_call_operand.vmem [shape: f32[512,1], index: 13, kind: output, shape index: {0}]
  %s14 = inlined_call_operand.hbm [shape: f32[512,128], index: 14, kind: output, shape index: {1}]
  %15 = xla_tuple %s13, %s14
  %s16 = sld [smem:[#allocation0]]
  $region93: #{nrt_encoder_forward.1} parent=0
    _
  %s18 = ssub.s32 1, %s16
  %s19 = scalar_select 0, %s18, %s16
  %v20 = vstv %s9
  %21 = vst [vmem:[#allocation2] sm:$0x1] %v20
  $region1: #{nrt_encoder_forward.1} parent=0
    #allocation3 [shape = 'u8[262144]{0}', space=vmem, size = 0x40000, scoped, tag = 'output window, operand 1']
    #allocation4 [shape = 's32[2]{0}', space=sflag, size = 0x8, scoped, tag = 'scoped memory for nrt_encoder_forward.1']
    %22 = vsyncpa [#allocation4], 0
    %s23 = scalar_lea.sflag [#allocation4], 1
    %24 = vsyncpa %s23, 0
    loop: start=0, step=1, limit=4
    $region2: #{nrt_encoder_forward.1} parent=1 // loop_pre_header
      _
    $region3: #{nrt_encoder_forward.1} parent=1 // loop_header
      %s26 = sphi 0, %s30
      %p27 = scmp.ge.s32.totalorder %s26, 4
      %s36 = sphi 0, %s38
      %s39 = sphi 0, %s36
      %s40 = sphi 0, %s39
      %s56 = sphi 0, %s40
      %s62 = sphi 0, %s64
      %s65 = sphi 0, %s62
      %s66 = sphi 0, %s65
      %s82 = sphi 0, %s66
      %s86 = sphi 0, %s86
      %s88 = sphi 0, %s86
      %s89 = sphi 0, %s88
      %s103 = sphi 0, %s89
      %s107 = sphi 0, %s107
      %s109 = sphi 0, %s107
      %s110 = sphi 0, %s109
      %s124 = sphi 0, %s110
      %s128 = sphi 0, %s128
      %s130 = sphi 0, %s128
      %s131 = sphi 0, %s130
      %s145 = sphi 0, %s131
      %s149 = sphi 0, %s149
      %s151 = sphi 0, %s149
      %s152 = sphi 0, %s151
      %s166 = sphi 0, %s152
      %s170 = sphi 0, %s170
      %s172 = sphi 0, %s170
      %s173 = sphi 0, %s172
      %s187 = sphi 0, %s173
      %s191 = sphi 0, %s191
      %s193 = sphi 0, %s191
      %s194 = sphi 0, %s193
      %s208 = sphi 0, %s194
      %s212 = sphi 0, %s212
      %s214 = sphi 0, %s212
      %s215 = sphi 0, %s214
      %s229 = sphi 0, %s215
      %s233 = sphi 0, %s233
      %s235 = sphi 0, %s233
      %s236 = sphi 0, %s235
      %s250 = sphi 0, %s236
      %s254 = sphi 0, %s254
      %s256 = sphi 0, %s254
      %s257 = sphi 0, %s256
      %s271 = sphi 0, %s257
      %s275 = sphi 0, %s275
      %s277 = sphi 0, %s275
      %s278 = sphi 0, %s277
      %s292 = sphi 0, %s278
      %s296 = sphi 0, %s296
      %s298 = sphi 0, %s296
      %s299 = sphi 0, %s298
      %s313 = sphi 0, %s299
      %s319 = sphi 0, %s321
      %s322 = sphi 0, %s319
      %s323 = sphi 0, %s322
      %s339 = sphi 0, %s323
      %s345 = sphi 0, %s347
      %s348 = sphi 0, %s345
      %s349 = sphi 0, %s348
      %s365 = sphi 0, %s349
    $region4: #{nrt_encoder_forward.1} parent=1 // loop_header_branch
      %29 = sbr.rel (%p27) target = $region8
    $region5: #{nrt_encoder_forward.1} parent=1 // loop_body
      %s31 = ssub.s32 %s26, 1
      %s32 = ssub.s32 %s26, 2
      %s33 = sadd.s32 %s26, 1
      %s34 = ssub.s32 %s26, %s33
      %p35 = scmp.eq.s32.totalorder %s34, 0
      %s37 = sadd.s32 %s36, 1
      %s38 = scalar_select %p35, %s36, %s37
      %p41 = pneg %p35
      %p42 = scmp.eq.s32.totalorder %s26, 1
      %p43 = por %p41, %p42
      %p44 = scmp.ne.s32.totalorder %s36, %s39
      %p45 = scmp.eq.s32.totalorder %s26, 0
      %p46 = por %p44, %p45
      %p47 = scmp.ne.s32.totalorder %s36, %s39
      %p48 = scmp.eq.s32.totalorder %s31, 1
      %p49 = por %p47, %p48
      %p50 = scmp.ne.s32.totalorder %s39, %s40
      %p51 = scmp.eq.s32.totalorder %s31, 0
      %p52 = por %p50, %p51
      %p53 = scmp.ne.s32.totalorder %s39, %s40
      %p54 = scmp.eq.s32.totalorder %s32, 1
      %p55 = por %p53, %p54
      %p57 = scmp.ne.s32.totalorder %s40, %s56
      %p58 = scmp.eq.s32.totalorder %s32, 0
      %p59 = por %p57, %p58
      %s60 = ssub.s32 %s26, %s33
      %p61 = scmp.eq.s32.totalorder %s60, 0
      %s63 = sadd.s32 %s62, 1
      %s64 = scalar_select %p61, %s62, %s63
      %p67 = pneg %p61
      %p68 = scmp.eq.s32.totalorder %s26, 1
      %p69 = por %p67, %p68
      %p70 = scmp.ne.s32.totalorder %s62, %s65
      %p71 = scmp.eq.s32.totalorder %s26, 0
      %p72 = por %p70, %p71
      %p73 = scmp.ne.s32.totalorder %s62, %s65
      %p74 = scmp.eq.s32.totalorder %s31, 1
      %p75 = por %p73, %p74
      %p76 = scmp.ne.s32.totalorder %s65, %s66
      %p77 = scmp.eq.s32.totalorder %s31, 0
      %p78 = por %p76, %p77
      %p79 = scmp.ne.s32.totalorder %s65, %s66
      %p80 = scmp.eq.s32.totalorder %s32, 1
      %p81 = por %p79, %p80
      %p83 = scmp.ne.s32.totalorder %s66, %s82
      %p84 = scmp.eq.s32.totalorder %s32, 0
      %p85 = por %p83, %p84
      %s87 = sadd.s32 %s86, 1
      %p90 = scmp.eq.s32.totalorder %s26, 1
      %p91 = scmp.ne.s32.totalorder %s86, %s88
      %p92 = scmp.eq.s32.totalorder %s26, 0
      %p93 = por %p91, %p92
      %p94 = scmp.ne.s32.totalorder %s86, %s88
      %p95 = scmp.eq.s32.totalorder %s31, 1
      %p96 = por %p94, %p95
      %p97 = scmp.ne.s32.totalorder %s88, %s89
      %p98 = scmp.eq.s32.totalorder %s31, 0
      %p99 = por %p97, %p98
      %p100 = scmp.ne.s32.totalorder %s88, %s89
      %p101 = scmp.eq.s32.totalorder %s32, 1
      %p102 = por %p100, %p101
      %p104 = scmp.ne.s32.totalorder %s89, %s103
      %p105 = scmp.eq.s32.totalorder %s32, 0
      %p106 = por %p104, %p105
      %s108 = sadd.s32 %s107, 1
      %p111 = scmp.eq.s32.totalorder %s26, 1
      %p112 = scmp.ne.s32.totalorder %s107, %s109
      %p113 = scmp.eq.s32.totalorder %s26, 0
      %p114 = por %p112, %p113
      %p115 = scmp.ne.s32.totalorder %s107, %s109
      %p116 = scmp.eq.s32.totalorder %s31, 1
      %p117 = por %p115, %p116
      %p118 = scmp.ne.s32.totalorder %s109, %s110
      %p119 = scmp.eq.s32.totalorder %s31, 0
      %p120 = por %p118, %p119
      %p121 = scmp.ne.s32.totalorder %s109, %s110
      %p122 = scmp.eq.s32.totalorder %s32, 1
      %p123 = por %p121, %p122
      %p125 = scmp.ne.s32.totalorder %s110, %s124
      %p126 = scmp.eq.s32.totalorder %s32, 0
      %p127 = por %p125, %p126
      %s129 = sadd.s32 %s128, 1
      %p132 = scmp.eq.s32.totalorder %s26, 1
      %p133 = scmp.ne.s32.totalorder %s128, %s130
      %p134 = scmp.eq.s32.totalorder %s26, 0
      %p135 = por %p133, %p134
      %p136 = scmp.ne.s32.totalorder %s128, %s130
      %p137 = scmp.eq.s32.totalorder %s31, 1
      %p138 = por %p136, %p137
      %p139 = scmp.ne.s32.totalorder %s130, %s131
      %p140 = scmp.eq.s32.totalorder %s31, 0
      %p141 = por %p139, %p140
      %p142 = scmp.ne.s32.totalorder %s130, %s131
      %p143 = scmp.eq.s32.totalorder %s32, 1
      %p144 = por %p142, %p143
      %p146 = scmp.ne.s32.totalorder %s131, %s145
      %p147 = scmp.eq.s32.totalorder %s32, 0
      %p148 = por %p146, %p147
      %s150 = sadd.s32 %s149, 1
      %p153 = scmp.eq.s32.totalorder %s26, 1
      %p154 = scmp.ne.s32.totalorder %s149, %s151
      %p155 = scmp.eq.s32.totalorder %s26, 0
      %p156 = por %p154, %p155
      %p157 = scmp.ne.s32.totalorder %s149, %s151
      %p158 = scmp.eq.s32.totalorder %s31, 1
      %p159 = por %p157, %p158
      %p160 = scmp.ne.s32.totalorder %s151, %s152
      %p161 = scmp.eq.s32.totalorder %s31, 0
      %p162 = por %p160, %p161
      %p163 = scmp.ne.s32.totalorder %s151, %s152
      %p164 = scmp.eq.s32.totalorder %s32, 1
      %p165 = por %p163, %p164
      %p167 = scmp.ne.s32.totalorder %s152, %s166
      %p168 = scmp.eq.s32.totalorder %s32, 0
      %p169 = por %p167, %p168
      %s171 = sadd.s32 %s170, 1
      %p174 = scmp.eq.s32.totalorder %s26, 1
      %p175 = scmp.ne.s32.totalorder %s170, %s172
      %p176 = scmp.eq.s32.totalorder %s26, 0
      %p177 = por %p175, %p176
      %p178 = scmp.ne.s32.totalorder %s170, %s172
      %p179 = scmp.eq.s32.totalorder %s31, 1
      %p180 = por %p178, %p179
      %p181 = scmp.ne.s32.totalorder %s172, %s173
      %p182 = scmp.eq.s32.totalorder %s31, 0
      %p183 = por %p181, %p182
      %p184 = scmp.ne.s32.totalorder %s172, %s173
      %p185 = scmp.eq.s32.totalorder %s32, 1
      %p186 = por %p184, %p185
      %p188 = scmp.ne.s32.totalorder %s173, %s187
      %p189 = scmp.eq.s32.totalorder %s32, 0
      %p190 = por %p188, %p189
      %s192 = sadd.s32 %s191, 1
      %p195 = scmp.eq.s32.totalorder %s26, 1
      %p196 = scmp.ne.s32.totalorder %s191, %s193
      %p197 = scmp.eq.s32.totalorder %s26, 0
      %p198 = por %p196, %p197
      %p199 = scmp.ne.s32.totalorder %s191, %s193
      %p200 = scmp.eq.s32.totalorder %s31, 1
      %p201 = por %p199, %p200
      %p202 = scmp.ne.s32.totalorder %s193, %s194
      %p203 = scmp.eq.s32.totalorder %s31, 0
      %p204 = por %p202, %p203
      %p205 = scmp.ne.s32.totalorder %s193, %s194
      %p206 = scmp.eq.s32.totalorder %s32, 1
      %p207 = por %p205, %p206
      %p209 = scmp.ne.s32.totalorder %s194, %s208
      %p210 = scmp.eq.s32.totalorder %s32, 0
      %p211 = por %p209, %p210
      %s213 = sadd.s32 %s212, 1
      %p216 = scmp.eq.s32.totalorder %s26, 1
      %p217 = scmp.ne.s32.totalorder %s212, %s214
      %p218 = scmp.eq.s32.totalorder %s26, 0
      %p219 = por %p217, %p218
      %p220 = scmp.ne.s32.totalorder %s212, %s214
      %p221 = scmp.eq.s32.totalorder %s31, 1
      %p222 = por %p220, %p221
      %p223 = scmp.ne.s32.totalorder %s214, %s215
      %p224 = scmp.eq.s32.totalorder %s31, 0
      %p225 = por %p223, %p224
      %p226 = scmp.ne.s32.totalorder %s214, %s215
      %p227 = scmp.eq.s32.totalorder %s32, 1
      %p228 = por %p226, %p227
      %p230 = scmp.ne.s32.totalorder %s215, %s229
      %p231 = scmp.eq.s32.totalorder %s32, 0
      %p232 = por %p230, %p231
      %s234 = sadd.s32 %s233, 1
      %p237 = scmp.eq.s32.totalorder %s26, 1
      %p238 = scmp.ne.s32.totalorder %s233, %s235
      %p239 = scmp.eq.s32.totalorder %s26, 0
      %p240 = por %p238, %p239
      %p241 = scmp.ne.s32.totalorder %s233, %s235
      %p242 = scmp.eq.s32.totalorder %s31, 1
      %p243 = por %p241, %p242
      %p244 = scmp.ne.s32.totalorder %s235, %s236
      %p245 = scmp.eq.s32.totalorder %s31, 0
      %p246 = por %p244, %p245
      %p247 = scmp.ne.s32.totalorder %s235, %s236
      %p248 = scmp.eq.s32.totalorder %s32, 1
      %p249 = por %p247, %p248
      %p251 = scmp.ne.s32.totalorder %s236, %s250
      %p252 = scmp.eq.s32.totalorder %s32, 0
      %p253 = por %p251, %p252
      %s255 = sadd.s32 %s254, 1
      %p258 = scmp.eq.s32.totalorder %s26, 1
      %p259 = scmp.ne.s32.totalorder %s254, %s256
      %p260 = scmp.eq.s32.totalorder %s26, 0
      %p261 = por %p259, %p260
      %p262 = scmp.ne.s32.totalorder %s254, %s256
      %p263 = scmp.eq.s32.totalorder %s31, 1
      %p264 = por %p262, %p263
      %p265 = scmp.ne.s32.totalorder %s256, %s257
      %p266 = scmp.eq.s32.totalorder %s31, 0
      %p267 = por %p265, %p266
      %p268 = scmp.ne.s32.totalorder %s256, %s257
      %p269 = scmp.eq.s32.totalorder %s32, 1
      %p270 = por %p268, %p269
      %p272 = scmp.ne.s32.totalorder %s257, %s271
      %p273 = scmp.eq.s32.totalorder %s32, 0
      %p274 = por %p272, %p273
      %s276 = sadd.s32 %s275, 1
      %p279 = scmp.eq.s32.totalorder %s26, 1
      %p280 = scmp.ne.s32.totalorder %s275, %s277
      %p281 = scmp.eq.s32.totalorder %s26, 0
      %p282 = por %p280, %p281
      %p283 = scmp.ne.s32.totalorder %s275, %s277
      %p284 = scmp.eq.s32.totalorder %s31, 1
      %p285 = por %p283, %p284
      %p286 = scmp.ne.s32.totalorder %s277, %s278
      %p287 = scmp.eq.s32.totalorder %s31, 0
      %p288 = por %p286, %p287
      %p289 = scmp.ne.s32.totalorder %s277, %s278
      %p290 = scmp.eq.s32.totalorder %s32, 1
      %p291 = por %p289, %p290
      %p293 = scmp.ne.s32.totalorder %s278, %s292
      %p294 = scmp.eq.s32.totalorder %s32, 0
      %p295 = por %p293, %p294
      %s297 = sadd.s32 %s296, 1
      %p300 = scmp.eq.s32.totalorder %s26, 1
      %p301 = scmp.ne.s32.totalorder %s296, %s298
      %p302 = scmp.eq.s32.totalorder %s26, 0
      %p303 = por %p301, %p302
      %p304 = scmp.ne.s32.totalorder %s296, %s298
      %p305 = scmp.eq.s32.totalorder %s31, 1
      %p306 = por %p304, %p305
      %p307 = scmp.ne.s32.totalorder %s298, %s299
      %p308 = scmp.eq.s32.totalorder %s31, 0
      %p309 = por %p307, %p308
      %p310 = scmp.ne.s32.totalorder %s298, %s299
      %p311 = scmp.eq.s32.totalorder %s32, 1
      %p312 = por %p310, %p311
      %p314 = scmp.ne.s32.totalorder %s299, %s313
      %p315 = scmp.eq.s32.totalorder %s32, 0
      %p316 = por %p314, %p315
      %s317 = ssub.s32 %s26, %s33
      %p318 = scmp.eq.s32.totalorder %s317, 0
      %s320 = sadd.s32 %s319, 1
      %s321 = scalar_select %p318, %s319, %s320
      %p324 = pneg %p318
      %p325 = scmp.eq.s32.totalorder %s26, 1
      %p326 = por %p324, %p325
      %p327 = scmp.ne.s32.totalorder %s319, %s322
      %p328 = scmp.eq.s32.totalorder %s26, 0
      %p329 = por %p327, %p328
      %p330 = scmp.ne.s32.totalorder %s319, %s322
      %p331 = scmp.eq.s32.totalorder %s31, 1
      %p332 = por %p330, %p331
      %p333 = scmp.ne.s32.totalorder %s322, %s323
      %p334 = scmp.eq.s32.totalorder %s31, 0
      %p335 = por %p333, %p334
      %p336 = scmp.ne.s32.totalorder %s322, %s323
      %p337 = scmp.eq.s32.totalorder %s32, 1
      %p338 = por %p336, %p337
      %p340 = scmp.ne.s32.totalorder %s323, %s339
      %p341 = scmp.eq.s32.totalorder %s32, 0
      %p342 = por %p340, %p341
      %s343 = ssub.s32 %s26, %s33
      %p344 = scmp.eq.s32.totalorder %s343, 0
      %s346 = sadd.s32 %s345, 1
      %s347 = scalar_select %p344, %s345, %s346
      %p350 = pneg %p344
      %p351 = scmp.eq.s32.totalorder %s26, 1
      %p352 = por %p350, %p351
      %p353 = scmp.ne.s32.totalorder %s345, %s348
      %p354 = scmp.eq.s32.totalorder %s26, 0
      %p355 = por %p353, %p354
      %p356 = scmp.ne.s32.totalorder %s345, %s348
      %p357 = scmp.eq.s32.totalorder %s31, 1
      %p358 = por %p356, %p357
      %p359 = scmp.ne.s32.totalorder %s348, %s349
      %p360 = scmp.eq.s32.totalorder %s31, 0
      %p361 = por %p359, %p360
      %p362 = scmp.ne.s32.totalorder %s348, %s349
      %p363 = scmp.eq.s32.totalorder %s32, 1
      %p364 = por %p362, %p363
      %p366 = scmp.ne.s32.totalorder %s349, %s365
      %p367 = scmp.eq.s32.totalorder %s32, 0
      %p368 = por %p366, %p367
      %p369 = scmp.le.s32.totalorder 1, %s26
      %p370 = scmp.lt.s32.totalorder %s26, 3
      %p371 = pnand %p369, %p370
      %p372 = pneg %p371
      // Predicated region
      $region9: #{nrt_encoder_forward.1} parent=5 // pred_check
        _
      $region10: #{nrt_encoder_forward.1} parent=5 // pred_check_branch
        %374 = sbr.rel (%p371) target = $region12
      $region11: #{nrt_encoder_forward.1} parent=5 // pred_region
        %s375 = ssub.s32 %s26, 1
        // Predicated region
        $region13: #{nrt_encoder_forward.1} parent=11 // pred_check
          %p376 = pneg %p99
        $region14: #{nrt_encoder_forward.1} parent=11 // pred_check_branch
          %378 = sbr.rel (%p376) target = $region16
        $region15: #{nrt_encoder_forward.1} parent=11 // pred_region
          _
        $region16: #{nrt_encoder_forward.1} parent=11 // pred_fallthru
          _
        // Predicated region
        $region17: #{nrt_encoder_forward.1} parent=11 // pred_check
          %p379 = pneg %p120
        $region18: #{nrt_encoder_forward.1} parent=11 // pred_check_branch
          %381 = sbr.rel (%p379) target = $region20
        $region19: #{nrt_encoder_forward.1} parent=11 // pred_region
          _
        $region20: #{nrt_encoder_forward.1} parent=11 // pred_fallthru
          _
        // Predicated region
        $region21: #{nrt_encoder_forward.1} parent=11 // pred_check
          %p382 = pneg %p141
        $region22: #{nrt_encoder_forward.1} parent=11 // pred_check_branch
          %384 = sbr.rel (%p382) target = $region24
        $region23: #{nrt_encoder_forward.1} parent=11 // pred_region
          _
        $region24: #{nrt_encoder_forward.1} parent=11 // pred_fallthru
          _
        // Predicated region
        $region25: #{nrt_encoder_forward.1} parent=11 // pred_check
          %p385 = pneg %p162
        $region26: #{nrt_encoder_forward.1} parent=11 // pred_check_branch
          %387 = sbr.rel (%p385) target = $region28
        $region27: #{nrt_encoder_forward.1} parent=11 // pred_region
          _
        $region28: #{nrt_encoder_forward.1} parent=11 // pred_fallthru
          _
        // Predicated region
        $region29: #{nrt_encoder_forward.1} parent=11 // pred_check
          %p388 = pneg %p183
        $region30: #{nrt_encoder_forward.1} parent=11 // pred_check_branch
          %390 = sbr.rel (%p388) target = $region32
        $region31: #{nrt_encoder_forward.1} parent=11 // pred_region
          _
        $region32: #{nrt_encoder_forward.1} parent=11 // pred_fallthru
          _
        // Predicated region
        $region33: #{nrt_encoder_forward.1} parent=11 // pred_check
          %p391 = pneg %p204
        $region34: #{nrt_encoder_forward.1} parent=11 // pred_check_branch
          %393 = sbr.rel (%p391) target = $region36
        $region35: #{nrt_encoder_forward.1} parent=11 // pred_region
          _
        $region36: #{nrt_encoder_forward.1} parent=11 // pred_fallthru
          _
        // Predicated region
        $region37: #{nrt_encoder_forward.1} parent=11 // pred_check
          %p394 = pneg %p225
        $region38: #{nrt_encoder_forward.1} parent=11 // pred_check_branch
          %396 = sbr.rel (%p394) target = $region40
        $region39: #{nrt_encoder_forward.1} parent=11 // pred_region
          _
        $region40: #{nrt_encoder_forward.1} parent=11 // pred_fallthru
          _
        // Predicated region
        $region41: #{nrt_encoder_forward.1} parent=11 // pred_check
          %p397 = pneg %p246
        $region42: #{nrt_encoder_forward.1} parent=11 // pred_check_branch
          %399 = sbr.rel (%p397) target = $region44
        $region43: #{nrt_encoder_forward.1} parent=11 // pred_region
          _
        $region44: #{nrt_encoder_forward.1} parent=11 // pred_fallthru
          _
        // Predicated region
        $region45: #{nrt_encoder_forward.1} parent=11 // pred_check
          %p400 = pneg %p267
        $region46: #{nrt_encoder_forward.1} parent=11 // pred_check_branch
          %402 = sbr.rel (%p400) target = $region48
        $region47: #{nrt_encoder_forward.1} parent=11 // pred_region
          _
        $region48: #{nrt_encoder_forward.1} parent=11 // pred_fallthru
          _
        // Predicated region
        $region49: #{nrt_encoder_forward.1} parent=11 // pred_check
          %p403 = pneg %p288
        $region50: #{nrt_encoder_forward.1} parent=11 // pred_check_branch
          %405 = sbr.rel (%p403) target = $region52
        $region51: #{nrt_encoder_forward.1} parent=11 // pred_region
          _
        $region52: #{nrt_encoder_forward.1} parent=11 // pred_fallthru
          _
        // Predicated region
        $region53: #{nrt_encoder_forward.1} parent=11 // pred_check
          %p406 = pneg %p309
        $region54: #{nrt_encoder_forward.1} parent=11 // pred_check_branch
          %408 = sbr.rel (%p406) target = $region56
        $region55: #{nrt_encoder_forward.1} parent=11 // pred_region
          _
        $region56: #{nrt_encoder_forward.1} parent=11 // pred_fallthru
          _
      $region12: #{nrt_encoder_forward.1} parent=5 // pred_fallthru
        _
      %p409 = scmp.lt.s32.totalorder %s26, 2
      // Predicated region
      $region57: #{nrt_encoder_forward.1} parent=5 // pred_check
        %p410 = pneg %p409
      $region58: #{nrt_encoder_forward.1} parent=5 // pred_check_branch
        %412 = sbr.rel (%p410) target = $region60
      $region59: #{nrt_encoder_forward.1} parent=5 // pred_region
        // Predicated region
        $region61: #{nrt_encoder_forward.1} parent=59 // pred_check
          %p413 = pneg %p46
        $region62: #{nrt_encoder_forward.1} parent=59 // pred_check_branch
          %415 = sbr.rel (%p413) target = $region64
        $region63: #{nrt_encoder_forward.1} parent=59 // pred_region
          %s416 = smul.u32 32, %s26
          %p417 = scmp.lt.s32.totalorder %s416, 63
          %s418 = scalar_select %p417, %s416, 63
          %s419 = smul.addr %s418, 8
          %s420 = scalar_lea.vmem %s0, %s419
          %s421 = smul.u32 32, %s26
        $region64: #{nrt_encoder_forward.1} parent=59 // pred_fallthru
          _
        // Predicated region
        $region65: #{nrt_encoder_forward.1} parent=59 // pred_check
          %p422 = pneg %p72
        $region66: #{nrt_encoder_forward.1} parent=59 // pred_check_branch
          %424 = sbr.rel (%p422) target = $region68
        $region67: #{nrt_encoder_forward.1} parent=59 // pred_region
          %s425 = smul.u32 32, %s26
          %p426 = scmp.lt.s32.totalorder %s425, 63
          %s427 = scalar_select %p426, %s425, 63
          %s428 = smul.addr %s427, 8
          %s429 = scalar_lea.vmem %s1, %s428
          %s430 = smul.u32 32, %s26
        $region68: #{nrt_encoder_forward.1} parent=59 // pred_fallthru
          _
      $region60: #{nrt_encoder_forward.1} parent=5 // pred_fallthru
        _
      %p431 = scmp.le.s32.totalorder 1, %s26
      %p432 = scmp.lt.s32.totalorder %s26, 3
      %p433 = pnand %p431, %p432
      %p434 = pneg %p433
      // Predicated region
      $region69: #{nrt_encoder_forward.1} parent=5 // pred_check
        _
      $region70: #{nrt_encoder_forward.1} parent=5 // pred_check_branch
        %436 = sbr.rel (%p433) target = $region72
      $region71: #{nrt_encoder_forward.1} parent=5 // pred_region
        %s437 = ssub.s32 %s26, 1
        %s438 = smul.u32 32, %s31
        %p439 = scmp.lt.s32.totalorder %s438, 63
        %s440 = scalar_select %p439, %s438, 63
        %s441 = smul.addr %s440, 8
        %s442 = scalar_lea.vmem %s0, %s441
        %p443 = pneg %p52
        %p444 = pneg %p49
        %s445 = smul.u32 32, %s31
        %p446 = scmp.lt.s32.totalorder %s445, 63
        %s447 = scalar_select %p446, %s445, 63
        %s448 = smul.addr %s447, 8
        %s449 = scalar_lea.vmem %s1, %s448
        %p450 = pneg %p78
        %p451 = pneg %p75
        %p452 = pneg %p99
        %p453 = pneg %p96
        %p454 = pneg %p120
        %p455 = pneg %p117
        %p456 = pneg %p141
        %p457 = pneg %p138
        %p458 = pneg %p162
        %p459 = pneg %p159
        %p460 = pneg %p183
        %p461 = pneg %p180
        %p462 = pneg %p204
        %p463 = pneg %p201
        %p464 = pneg %p225
        %p465 = pneg %p222
        %p466 = pneg %p246
        %p467 = pneg %p243
        %p468 = pneg %p267
        %p469 = pneg %p264
        %p470 = pneg %p288
        %p471 = pneg %p285
        %p472 = pneg %p309
        %p473 = pneg %p306
        %p474 = pneg %p335
        %p475 = pneg %p332
        %s476 = smul.u32 32, %s31
        %p477 = scmp.lt.s32.totalorder %s476, 63
        %s478 = scalar_select %p477, %s476, 63
        %s479 = smul.addr %s478, 8
        %s480 = scalar_lea.vmem %s13, %s479
        %p481 = pneg %p361
        %p482 = pneg %p358
        %s483 = sand.u32 %s348, 1
        %s484 = scalar_lea.sflag [#allocation4], %s483
        %s485 = sand.u32 %s348, 1
        %s486 = smul.addr %s485, 256
        %s487 = scalar_lea.vmem [#allocation3], %s486
        %s488 = smul.u32 32, %s31
        %p489 = scmp.lt.s32.totalorder %s488, 63
        %s490 = scalar_select %p489, %s488, 63
        %s491 = smul.addr %s490, 8
        %s492 = scalar_lea.vmem %s0, %s491
        %s493 = smul.u32 32, %s31
        %s494 = smul.u32 32, %s31
        %p495 = scmp.lt.s32.totalorder %s494, 63
        %s496 = scalar_select %p495, %s494, 63
        %s497 = smul.addr %s496, 8
        %s498 = scalar_lea.vmem %s1, %s497
        %s499 = smul.u32 32, %s31
        %s500 = smul.u32 32, %s31
        %p501 = scmp.lt.s32.totalorder %s500, 63
        %s502 = scalar_select %p501, %s500, 63
        %s503 = smul.addr %s502, 8
        %s504 = scalar_lea.vmem %s13, %s503
        %s505 = smul.u32 32, %s31
        %s506 = smul.u32 32, %s31
        %v508 = vlaneseq
        %v509 = vand.u32 %v508, 127
        %v510 = vld [vmem:[%s492] sm:$0xff]
        %v511 = vld [vmem:[%s492 + $0x8] sm:$0xff]
        %v512 = vld [vmem:[%s492 + $0x10] sm:$0xff]
        %v513 = vld [vmem:[%s492 + $0x18] sm:$0xff]
        %v514 = vld [vmem:[%s492 + $0x20] sm:$0xff]
        %v515 = vld [vmem:[%s492 + $0x28] sm:$0xff]
        %v516 = vld [vmem:[%s492 + $0x30] sm:$0xff]
        %v517 = vld [vmem:[%s492 + $0x38] sm:$0xff]
        %v518 = vld [vmem:[%s492 + $0x40] sm:$0xff]
        %v519 = vld [vmem:[%s492 + $0x48] sm:$0xff]
        %v520 = vld [vmem:[%s492 + $0x50] sm:$0xff]
        %v521 = vld [vmem:[%s492 + $0x58] sm:$0xff]
        %v522 = vld [vmem:[%s492 + $0x60] sm:$0xff]
        %v523 = vld [vmem:[%s492 + $0x68] sm:$0xff]
        %v524 = vld [vmem:[%s492 + $0x70] sm:$0xff]
        %v525 = vld [vmem:[%s492 + $0x78] sm:$0xff]
        %v526 = vld [vmem:[%s492 + $0x80] sm:$0xff]
        %v527 = vld [vmem:[%s492 + $0x88] sm:$0xff]
        %v528 = vld [vmem:[%s492 + $0x90] sm:$0xff]
        %v529 = vld [vmem:[%s492 + $0x98] sm:$0xff]
        %v530 = vld [vmem:[%s492 + $0xa0] sm:$0xff]
        %v531 = vld [vmem:[%s492 + $0xa8] sm:$0xff]
        %v532 = vld [vmem:[%s492 + $0xb0] sm:$0xff]
        %v533 = vld [vmem:[%s492 + $0xb8] sm:$0xff]
        %v534 = vld [vmem:[%s492 + $0xc0] sm:$0xff]
        %v535 = vld [vmem:[%s492 + $0xc8] sm:$0xff]
        %v536 = vld [vmem:[%s492 + $0xd0] sm:$0xff]
        %v537 = vld [vmem:[%s492 + $0xd8] sm:$0xff]
        %v538 = vld [vmem:[%s492 + $0xe0] sm:$0xff]
        %v539 = vld [vmem:[%s492 + $0xe8] sm:$0xff]
        %v540 = vld [vmem:[%s492 + $0xf0] sm:$0xff]
        %v541 = vld [vmem:[%s492 + $0xf8] sm:$0xff]
        %542 = vset.pattern.permute.xlu0 0
        %543 = vperm.xlu0 %542, %v510
        %v544 = vpop.permute.xlu0 %543
        %545 = vset.pattern.permute.xlu0 0
        %546 = vperm.xlu0 %545, %v511
        %v547 = vpop.permute.xlu0 %546
        %548 = vset.pattern.permute.xlu0 0
        %549 = vperm.xlu0 %548, %v512
        %v550 = vpop.permute.xlu0 %549
        %551 = vset.pattern.permute.xlu0 0
        %552 = vperm.xlu0 %551, %v513
        %v553 = vpop.permute.xlu0 %552
        %554 = vset.pattern.permute.xlu0 0
        %555 = vperm.xlu0 %554, %v514
        %v556 = vpop.permute.xlu0 %555
        %557 = vset.pattern.permute.xlu0 0
        %558 = vperm.xlu0 %557, %v515
        %v559 = vpop.permute.xlu0 %558
        %560 = vset.pattern.permute.xlu0 0
        %561 = vperm.xlu0 %560, %v516
        %v562 = vpop.permute.xlu0 %561
        %563 = vset.pattern.permute.xlu0 0
        %564 = vperm.xlu0 %563, %v517
        %v565 = vpop.permute.xlu0 %564
        %566 = vset.pattern.permute.xlu0 0
        %567 = vperm.xlu0 %566, %v518
        %v568 = vpop.permute.xlu0 %567
        %569 = vset.pattern.permute.xlu0 0
        %570 = vperm.xlu0 %569, %v519
        %v571 = vpop.permute.xlu0 %570
        %572 = vset.pattern.permute.xlu0 0
        %573 = vperm.xlu0 %572, %v520
        %v574 = vpop.permute.xlu0 %573
        %575 = vset.pattern.permute.xlu0 0
        %576 = vperm.xlu0 %575, %v521
        %v577 = vpop.permute.xlu0 %576
        %578 = vset.pattern.permute.xlu0 0
        %579 = vperm.xlu0 %578, %v522
        %v580 = vpop.permute.xlu0 %579
        %581 = vset.pattern.permute.xlu0 0
        %582 = vperm.xlu0 %581, %v523
        %v583 = vpop.permute.xlu0 %582
        %584 = vset.pattern.permute.xlu0 0
        %585 = vperm.xlu0 %584, %v524
        %v586 = vpop.permute.xlu0 %585
        %587 = vset.pattern.permute.xlu0 0
        %588 = vperm.xlu0 %587, %v525
        %v589 = vpop.permute.xlu0 %588
        %590 = vset.pattern.permute.xlu0 0
        %591 = vperm.xlu0 %590, %v526
        %v592 = vpop.permute.xlu0 %591
        %593 = vset.pattern.permute.xlu0 0
        %594 = vperm.xlu0 %593, %v527
        %v595 = vpop.permute.xlu0 %594
        %596 = vset.pattern.permute.xlu0 0
        %597 = vperm.xlu0 %596, %v528
        %v598 = vpop.permute.xlu0 %597
        %599 = vset.pattern.permute.xlu0 0
        %600 = vperm.xlu0 %599, %v529
        %v601 = vpop.permute.xlu0 %600
        %602 = vset.pattern.permute.xlu0 0
        %603 = vperm.xlu0 %602, %v530
        %v604 = vpop.permute.xlu0 %603
        %605 = vset.pattern.permute.xlu0 0
        %606 = vperm.xlu0 %605, %v531
        %v607 = vpop.permute.xlu0 %606
        %608 = vset.pattern.permute.xlu0 0
        %609 = vperm.xlu0 %608, %v532
        %v610 = vpop.permute.xlu0 %609
        %611 = vset.pattern.permute.xlu0 0
        %612 = vperm.xlu0 %611, %v533
        %v613 = vpop.permute.xlu0 %612
        %614 = vset.pattern.permute.xlu0 0
        %615 = vperm.xlu0 %614, %v534
        %v616 = vpop.permute.xlu0 %615
        %617 = vset.pattern.permute.xlu0 0
        %618 = vperm.xlu0 %617, %v535
        %v619 = vpop.permute.xlu0 %618
        %620 = vset.pattern.permute.xlu0 0
        %621 = vperm.xlu0 %620, %v536
        %v622 = vpop.permute.xlu0 %621
        %623 = vset.pattern.permute.xlu0 0
        %624 = vperm.xlu0 %623, %v537
        %v625 = vpop.permute.xlu0 %624
        %626 = vset.pattern.permute.xlu0 0
        %627 = vperm.xlu0 %626, %v538
        %v628 = vpop.permute.xlu0 %627
        %629 = vset.pattern.permute.xlu0 0
        %630 = vperm.xlu0 %629, %v539
        %v631 = vpop.permute.xlu0 %630
        %632 = vset.pattern.permute.xlu0 0
        %633 = vperm.xlu0 %632, %v540
        %v634 = vpop.permute.xlu0 %633
        %635 = vset.pattern.permute.xlu0 0
        %636 = vperm.xlu0 %635, %v541
        %v637 = vpop.permute.xlu0 %636
        %vm638 = vcmp.eq.s32.totalorder %v509, %v544
        %vm639 = vcmp.eq.s32.totalorder %v509, %v547
        %vm640 = vcmp.eq.s32.totalorder %v509, %v550
        %vm641 = vcmp.eq.s32.totalorder %v509, %v553
        %vm642 = vcmp.eq.s32.totalorder %v509, %v556
        %vm643 = vcmp.eq.s32.totalorder %v509, %v559
        %vm644 = vcmp.eq.s32.totalorder %v509, %v562
        %vm645 = vcmp.eq.s32.totalorder %v509, %v565
        %vm646 = vcmp.eq.s32.totalorder %v509, %v568
        %vm647 = vcmp.eq.s32.totalorder %v509, %v571
        %vm648 = vcmp.eq.s32.totalorder %v509, %v574
        %vm649 = vcmp.eq.s32.totalorder %v509, %v577
        %vm650 = vcmp.eq.s32.totalorder %v509, %v580
        %vm651 = vcmp.eq.s32.totalorder %v509, %v583
        %vm652 = vcmp.eq.s32.totalorder %v509, %v586
        %vm653 = vcmp.eq.s32.totalorder %v509, %v589
        %vm654 = vcmp.eq.s32.totalorder %v509, %v592
        %vm655 = vcmp.eq.s32.totalorder %v509, %v595
        %vm656 = vcmp.eq.s32.totalorder %v509, %v598
        %vm657 = vcmp.eq.s32.totalorder %v509, %v601
        %vm658 = vcmp.eq.s32.totalorder %v509, %v604
        %vm659 = vcmp.eq.s32.totalorder %v509, %v607
        %vm660 = vcmp.eq.s32.totalorder %v509, %v610
        %vm661 = vcmp.eq.s32.totalorder %v509, %v613
        %vm662 = vcmp.eq.s32.totalorder %v509, %v616
        %vm663 = vcmp.eq.s32.totalorder %v509, %v619
        %vm664 = vcmp.eq.s32.totalorder %v509, %v622
        %vm665 = vcmp.eq.s32.totalorder %v509, %v625
        %vm666 = vcmp.eq.s32.totalorder %v509, %v628
        %vm667 = vcmp.eq.s32.totalorder %v509, %v631
        %vm668 = vcmp.eq.s32.totalorder %v509, %v634
        %vm669 = vcmp.eq.s32.totalorder %v509, %v637
        %v670 = vsel %vm638, 1, 0
        %v671 = vsel %vm639, 1, 0
        %v672 = vsel %vm640, 1, 0
        %v673 = vsel %vm641, 1, 0
        %v674 = vsel %vm642, 1, 0
        %v675 = vsel %vm643, 1, 0
        %v676 = vsel %vm644, 1, 0
        %v677 = vsel %vm645, 1, 0
        %v678 = vsel %vm646, 1, 0
        %v679 = vsel %vm647, 1, 0
        %v680 = vsel %vm648, 1, 0
        %v681 = vsel %vm649, 1, 0
        %v682 = vsel %vm650, 1, 0
        %v683 = vsel %vm651, 1, 0
        %v684 = vsel %vm652, 1, 0
        %v685 = vsel %vm653, 1, 0
        %v686 = vsel %vm654, 1, 0
        %v687 = vsel %vm655, 1, 0
        %v688 = vsel %vm656, 1, 0
        %v689 = vsel %vm657, 1, 0
        %v690 = vsel %vm658, 1, 0
        %v691 = vsel %vm659, 1, 0
        %v692 = vsel %vm660, 1, 0
        %v693 = vsel %vm661, 1, 0
        %v694 = vsel %vm662, 1, 0
        %v695 = vsel %vm663, 1, 0
        %v696 = vsel %vm664, 1, 0
        %v697 = vsel %vm665, 1, 0
        %v698 = vsel %vm666, 1, 0
        %v699 = vsel %vm667, 1, 0
        %v700 = vsel %vm668, 1, 0
        %v701 = vsel %vm669, 1, 0
        %v702 = vcvt.s32.f32 %v670
        %v703 = vcvt.s32.f32 %v671
        %v704 = vcvt.s32.f32 %v672
        %v705 = vcvt.s32.f32 %v673
        %v706 = vcvt.s32.f32 %v674
        %v707 = vcvt.s32.f32 %v675
        %v708 = vcvt.s32.f32 %v676
        %v709 = vcvt.s32.f32 %v677
        %v710 = vcvt.s32.f32 %v678
        %v711 = vcvt.s32.f32 %v679
        %v712 = vcvt.s32.f32 %v680
        %v713 = vcvt.s32.f32 %v681
        %v714 = vcvt.s32.f32 %v682
        %v715 = vcvt.s32.f32 %v683
        %v716 = vcvt.s32.f32 %v684
        %v717 = vcvt.s32.f32 %v685
        %v718 = vcvt.s32.f32 %v686
        %v719 = vcvt.s32.f32 %v687
        %v720 = vcvt.s32.f32 %v688
        %v721 = vcvt.s32.f32 %v689
        %v722 = vcvt.s32.f32 %v690
        %v723 = vcvt.s32.f32 %v691
        %v724 = vcvt.s32.f32 %v692
        %v725 = vcvt.s32.f32 %v693
        %v726 = vcvt.s32.f32 %v694
        %v727 = vcvt.s32.f32 %v695
        %v728 = vcvt.s32.f32 %v696
        %v729 = vcvt.s32.f32 %v697
        %v730 = vcvt.s32.f32 %v698
        %v731 = vcvt.s32.f32 %v699
        %v732 = vcvt.s32.f32 %v700
        %v733 = vcvt.s32.f32 %v701
        %v734 = vpack.c.bf16 %v703, %v702
        %v735 = vpack.c.bf16 %v705, %v704
        %v736 = vpack.c.bf16 %v707, %v706
        %v737 = vpack.c.bf16 %v709, %v708
        %v738 = vpack.c.bf16 %v711, %v710
        %v739 = vpack.c.bf16 %v713, %v712
        %v740 = vpack.c.bf16 %v715, %v714
        %v741 = vpack.c.bf16 %v717, %v716
        %v742 = vpack.c.bf16 %v719, %v718
        %v743 = vpack.c.bf16 %v721, %v720
        %v744 = vpack.c.bf16 %v723, %v722
        %v745 = vpack.c.bf16 %v725, %v724
        %v746 = vpack.c.bf16 %v727, %v726
        %v747 = vpack.c.bf16 %v729, %v728
        %v748 = vpack.c.bf16 %v731, %v730
        %v749 = vpack.c.bf16 %v733, %v732
        %v750 = vld [vmem:[%s498] sm:$0xff]
        %v751 = vld [vmem:[%s498 + $0x8] sm:$0xff]
        %v752 = vld [vmem:[%s498 + $0x10] sm:$0xff]
        %v753 = vld [vmem:[%s498 + $0x18] sm:$0xff]
        %v754 = vld [vmem:[%s498 + $0x20] sm:$0xff]
        %v755 = vld [vmem:[%s498 + $0x28] sm:$0xff]
        %v756 = vld [vmem:[%s498 + $0x30] sm:$0xff]
        %v757 = vld [vmem:[%s498 + $0x38] sm:$0xff]
        %v758 = vld [vmem:[%s498 + $0x40] sm:$0xff]
        %v759 = vld [vmem:[%s498 + $0x48] sm:$0xff]
        %v760 = vld [vmem:[%s498 + $0x50] sm:$0xff]
        %v761 = vld [vmem:[%s498 + $0x58] sm:$0xff]
        %v762 = vld [vmem:[%s498 + $0x60] sm:$0xff]
        %v763 = vld [vmem:[%s498 + $0x68] sm:$0xff]
        %v764 = vld [vmem:[%s498 + $0x70] sm:$0xff]
        %v765 = vld [vmem:[%s498 + $0x78] sm:$0xff]
        %v766 = vld [vmem:[%s498 + $0x80] sm:$0xff]
        %v767 = vld [vmem:[%s498 + $0x88] sm:$0xff]
        %v768 = vld [vmem:[%s498 + $0x90] sm:$0xff]
        %v769 = vld [vmem:[%s498 + $0x98] sm:$0xff]
        %v770 = vld [vmem:[%s498 + $0xa0] sm:$0xff]
        %v771 = vld [vmem:[%s498 + $0xa8] sm:$0xff]
        %v772 = vld [vmem:[%s498 + $0xb0] sm:$0xff]
        %v773 = vld [vmem:[%s498 + $0xb8] sm:$0xff]
        %v774 = vld [vmem:[%s498 + $0xc0] sm:$0xff]
        %v775 = vld [vmem:[%s498 + $0xc8] sm:$0xff]
        %v776 = vld [vmem:[%s498 + $0xd0] sm:$0xff]
        %v777 = vld [vmem:[%s498 + $0xd8] sm:$0xff]
        %v778 = vld [vmem:[%s498 + $0xe0] sm:$0xff]
        %v779 = vld [vmem:[%s498 + $0xe8] sm:$0xff]
        %v780 = vld [vmem:[%s498 + $0xf0] sm:$0xff]
        %v781 = vld [vmem:[%s498 + $0xf8] sm:$0xff]
        %782 = vset.pattern.permute.xlu0 0
        %783 = vperm.xlu0 %782, %v750
        %v784 = vpop.permute.xlu0 %783
        %785 = vset.pattern.permute.xlu0 0
        %786 = vperm.xlu0 %785, %v751
        %v787 = vpop.permute.xlu0 %786
        %788 = vset.pattern.permute.xlu0 0
        %789 = vperm.xlu0 %788, %v752
        %v790 = vpop.permute.xlu0 %789
        %791 = vset.pattern.permute.xlu0 0
        %792 = vperm.xlu0 %791, %v753
        %v793 = vpop.permute.xlu0 %792
        %794 = vset.pattern.permute.xlu0 0
        %795 = vperm.xlu0 %794, %v754
        %v796 = vpop.permute.xlu0 %795
        %797 = vset.pattern.permute.xlu0 0
        %798 = vperm.xlu0 %797, %v755
        %v799 = vpop.permute.xlu0 %798
        %800 = vset.pattern.permute.xlu0 0
        %801 = vperm.xlu0 %800, %v756
        %v802 = vpop.permute.xlu0 %801
        %803 = vset.pattern.permute.xlu0 0
        %804 = vperm.xlu0 %803, %v757
        %v805 = vpop.permute.xlu0 %804
        %806 = vset.pattern.permute.xlu0 0
        %807 = vperm.xlu0 %806, %v758
        %v808 = vpop.permute.xlu0 %807
        %809 = vset.pattern.permute.xlu0 0
        %810 = vperm.xlu0 %809, %v759
        %v811 = vpop.permute.xlu0 %810
        %812 = vset.pattern.permute.xlu0 0
        %813 = vperm.xlu0 %812, %v760
        %v814 = vpop.permute.xlu0 %813
        %815 = vset.pattern.permute.xlu0 0
        %816 = vperm.xlu0 %815, %v761
        %v817 = vpop.permute.xlu0 %816
        %818 = vset.pattern.permute.xlu0 0
        %819 = vperm.xlu0 %818, %v762
        %v820 = vpop.permute.xlu0 %819
        %821 = vset.pattern.permute.xlu0 0
        %822 = vperm.xlu0 %821, %v763
        %v823 = vpop.permute.xlu0 %822
        %824 = vset.pattern.permute.xlu0 0
        %825 = vperm.xlu0 %824, %v764
        %v826 = vpop.permute.xlu0 %825
        %827 = vset.pattern.permute.xlu0 0
        %828 = vperm.xlu0 %827, %v765
        %v829 = vpop.permute.xlu0 %828
        %830 = vset.pattern.permute.xlu0 0
        %831 = vperm.xlu0 %830, %v766
        %v832 = vpop.permute.xlu0 %831
        %833 = vset.pattern.permute.xlu0 0
        %834 = vperm.xlu0 %833, %v767
        %v835 = vpop.permute.xlu0 %834
        %836 = vset.pattern.permute.xlu0 0
        %837 = vperm.xlu0 %836, %v768
        %v838 = vpop.permute.xlu0 %837
        %839 = vset.pattern.permute.xlu0 0
        %840 = vperm.xlu0 %839, %v769
        %v841 = vpop.permute.xlu0 %840
        %842 = vset.pattern.permute.xlu0 0
        %843 = vperm.xlu0 %842, %v770
        %v844 = vpop.permute.xlu0 %843
        %845 = vset.pattern.permute.xlu0 0
        %846 = vperm.xlu0 %845, %v771
        %v847 = vpop.permute.xlu0 %846
        %848 = vset.pattern.permute.xlu0 0
        %849 = vperm.xlu0 %848, %v772
        %v850 = vpop.permute.xlu0 %849
        %851 = vset.pattern.permute.xlu0 0
        %852 = vperm.xlu0 %851, %v773
        %v853 = vpop.permute.xlu0 %852
        %854 = vset.pattern.permute.xlu0 0
        %855 = vperm.xlu0 %854, %v774
        %v856 = vpop.permute.xlu0 %855
        %857 = vset.pattern.permute.xlu0 0
        %858 = vperm.xlu0 %857, %v775
        %v859 = vpop.permute.xlu0 %858
        %860 = vset.pattern.permute.xlu0 0
        %861 = vperm.xlu0 %860, %v776
        %v862 = vpop.permute.xlu0 %861
        %863 = vset.pattern.permute.xlu0 0
        %864 = vperm.xlu0 %863, %v777
        %v865 = vpop.permute.xlu0 %864
        %866 = vset.pattern.permute.xlu0 0
        %867 = vperm.xlu0 %866, %v778
        %v868 = vpop.permute.xlu0 %867
        %869 = vset.pattern.permute.xlu0 0
        %870 = vperm.xlu0 %869, %v779
        %v871 = vpop.permute.xlu0 %870
        %872 = vset.pattern.permute.xlu0 0
        %873 = vperm.xlu0 %872, %v780
        %v874 = vpop.permute.xlu0 %873
        %875 = vset.pattern.permute.xlu0 0
        %876 = vperm.xlu0 %875, %v781
        %v877 = vpop.permute.xlu0 %876
        %vm878 = vcmp.eq.s32.totalorder %v509, %v784
        %vm879 = vcmp.eq.s32.totalorder %v509, %v787
        %vm880 = vcmp.eq.s32.totalorder %v509, %v790
        %vm881 = vcmp.eq.s32.totalorder %v509, %v793
        %vm882 = vcmp.eq.s32.totalorder %v509, %v796
        %vm883 = vcmp.eq.s32.totalorder %v509, %v799
        %vm884 = vcmp.eq.s32.totalorder %v509, %v802
        %vm885 = vcmp.eq.s32.totalorder %v509, %v805
        %vm886 = vcmp.eq.s32.totalorder %v509, %v808
        %vm887 = vcmp.eq.s32.totalorder %v509, %v811
        %vm888 = vcmp.eq.s32.totalorder %v509, %v814
        %vm889 = vcmp.eq.s32.totalorder %v509, %v817
        %vm890 = vcmp.eq.s32.totalorder %v509, %v820
        %vm891 = vcmp.eq.s32.totalorder %v509, %v823
        %vm892 = vcmp.eq.s32.totalorder %v509, %v826
        %vm893 = vcmp.eq.s32.totalorder %v509, %v829
        %vm894 = vcmp.eq.s32.totalorder %v509, %v832
        %vm895 = vcmp.eq.s32.totalorder %v509, %v835
        %vm896 = vcmp.eq.s32.totalorder %v509, %v838
        %vm897 = vcmp.eq.s32.totalorder %v509, %v841
        %vm898 = vcmp.eq.s32.totalorder %v509, %v844
        %vm899 = vcmp.eq.s32.totalorder %v509, %v847
        %vm900 = vcmp.eq.s32.totalorder %v509, %v850
        %vm901 = vcmp.eq.s32.totalorder %v509, %v853
        %vm902 = vcmp.eq.s32.totalorder %v509, %v856
        %vm903 = vcmp.eq.s32.totalorder %v509, %v859
        %vm904 = vcmp.eq.s32.totalorder %v509, %v862
        %vm905 = vcmp.eq.s32.totalorder %v509, %v865
        %vm906 = vcmp.eq.s32.totalorder %v509, %v868
        %vm907 = vcmp.eq.s32.totalorder %v509, %v871
        %vm908 = vcmp.eq.s32.totalorder %v509, %v874
        %vm909 = vcmp.eq.s32.totalorder %v509, %v877
        %v910 = vsel %vm878, 1, 0
        %v911 = vsel %vm879, 1, 0
        %v912 = vsel %vm880, 1, 0
        %v913 = vsel %vm881, 1, 0
        %v914 = vsel %vm882, 1, 0
        %v915 = vsel %vm883, 1, 0
        %v916 = vsel %vm884, 1, 0
        %v917 = vsel %vm885, 1, 0
        %v918 = vsel %vm886, 1, 0
        %v919 = vsel %vm887, 1, 0
        %v920 = vsel %vm888, 1, 0
        %v921 = vsel %vm889, 1, 0
        %v922 = vsel %vm890, 1, 0
        %v923 = vsel %vm891, 1, 0
        %v924 = vsel %vm892, 1, 0
        %v925 = vsel %vm893, 1, 0
        %v926 = vsel %vm894, 1, 0
        %v927 = vsel %vm895, 1, 0
        %v928 = vsel %vm896, 1, 0
        %v929 = vsel %vm897, 1, 0
        %v930 = vsel %vm898, 1, 0
        %v931 = vsel %vm899, 1, 0
        %v932 = vsel %vm900, 1, 0
        %v933 = vsel %vm901, 1, 0
        %v934 = vsel %vm902, 1, 0
        %v935 = vsel %vm903, 1, 0
        %v936 = vsel %vm904, 1, 0
        %v937 = vsel %vm905, 1, 0
        %v938 = vsel %vm906, 1, 0
        %v939 = vsel %vm907, 1, 0
        %v940 = vsel %vm908, 1, 0
        %v941 = vsel %vm909, 1, 0
        %v942 = vcvt.s32.f32 %v910
        %v943 = vcvt.s32.f32 %v911
        %v944 = vcvt.s32.f32 %v912
        %v945 = vcvt.s32.f32 %v913
        %v946 = vcvt.s32.f32 %v914
        %v947 = vcvt.s32.f32 %v915
        %v948 = vcvt.s32.f32 %v916
        %v949 = vcvt.s32.f32 %v917
        %v950 = vcvt.s32.f32 %v918
        %v951 = vcvt.s32.f32 %v919
        %v952 = vcvt.s32.f32 %v920
        %v953 = vcvt.s32.f32 %v921
        %v954 = vcvt.s32.f32 %v922
        %v955 = vcvt.s32.f32 %v923
        %v956 = vcvt.s32.f32 %v924
        %v957 = vcvt.s32.f32 %v925
        %v958 = vcvt.s32.f32 %v926
        %v959 = vcvt.s32.f32 %v927
        %v960 = vcvt.s32.f32 %v928
        %v961 = vcvt.s32.f32 %v929
        %v962 = vcvt.s32.f32 %v930
        %v963 = vcvt.s32.f32 %v931
        %v964 = vcvt.s32.f32 %v932
        %v965 = vcvt.s32.f32 %v933
        %v966 = vcvt.s32.f32 %v934
        %v967 = vcvt.s32.f32 %v935
        %v968 = vcvt.s32.f32 %v936
        %v969 = vcvt.s32.f32 %v937
        %v970 = vcvt.s32.f32 %v938
        %v971 = vcvt.s32.f32 %v939
        %v972 = vcvt.s32.f32 %v940
        %v973 = vcvt.s32.f32 %v941
        %v974 = vpack.c.bf16 %v943, %v942
        %v975 = vpack.c.bf16 %v945, %v944
        %v976 = vpack.c.bf16 %v947, %v946
        %v977 = vpack.c.bf16 %v949, %v948
        %v978 = vpack.c.bf16 %v951, %v950
        %v979 = vpack.c.bf16 %v953, %v952
        %v980 = vpack.c.bf16 %v955, %v954
        %v981 = vpack.c.bf16 %v957, %v956
        %v982 = vpack.c.bf16 %v959, %v958
        %v983 = vpack.c.bf16 %v961, %v960
        %v984 = vpack.c.bf16 %v963, %v962
        %v985 = vpack.c.bf16 %v965, %v964
        %v986 = vpack.c.bf16 %v967, %v966
        %v987 = vpack.c.bf16 %v969, %v968
        %v988 = vpack.c.bf16 %v971, %v970
        %v989 = vpack.c.bf16 %v973, %v972
        %v990 = vld [vmem:[%s2] sm:$0xf]
        %v991 = vld [vmem:[%s2 + $0x4] sm:$0xf]
        %v992 = vld [vmem:[%s2 + $0x8] sm:$0xf]
        %v993 = vld [vmem:[%s2 + $0xc] sm:$0xf]
        %v994 = vld [vmem:[%s2 + $0x10] sm:$0xf]
        %v995 = vld [vmem:[%s2 + $0x14] sm:$0xf]
        %v996 = vld [vmem:[%s2 + $0x18] sm:$0xf]
        %v997 = vld [vmem:[%s2 + $0x1c] sm:$0xf]
        %v998 = vld [vmem:[%s2 + $0x20] sm:$0xf]
        %v999 = vld [vmem:[%s2 + $0x24] sm:$0xf]
        %v1000 = vld [vmem:[%s2 + $0x28] sm:$0xf]
        %v1001 = vld [vmem:[%s2 + $0x2c] sm:$0xf]
        %v1002 = vld [vmem:[%s2 + $0x30] sm:$0xf]
        %v1003 = vld [vmem:[%s2 + $0x34] sm:$0xf]
        %v1004 = vld [vmem:[%s2 + $0x38] sm:$0xf]
        %v1005 = vld [vmem:[%s2 + $0x3c] sm:$0xf]
        %v1006 = vld [vmem:[%s3] sm:$0xf]
        %v1007 = vld [vmem:[%s3 + $0x4] sm:$0xf]
        %v1008 = vld [vmem:[%s3 + $0x8] sm:$0xf]
        %v1009 = vld [vmem:[%s3 + $0xc] sm:$0xf]
        %v1010 = vld [vmem:[%s3 + $0x10] sm:$0xf]
        %v1011 = vld [vmem:[%s3 + $0x14] sm:$0xf]
        %v1012 = vld [vmem:[%s3 + $0x18] sm:$0xf]
        %v1013 = vld [vmem:[%s3 + $0x1c] sm:$0xf]
        %v1014 = vld [vmem:[%s3 + $0x20] sm:$0xf]
        %v1015 = vld [vmem:[%s3 + $0x24] sm:$0xf]
        %v1016 = vld [vmem:[%s3 + $0x28] sm:$0xf]
        %v1017 = vld [vmem:[%s3 + $0x2c] sm:$0xf]
        %v1018 = vld [vmem:[%s3 + $0x30] sm:$0xf]
        %v1019 = vld [vmem:[%s3 + $0x34] sm:$0xf]
        %v1020 = vld [vmem:[%s3 + $0x38] sm:$0xf]
        %v1021 = vld [vmem:[%s3 + $0x3c] sm:$0xf]
        %v1038 = vunpack.c.l.b16 %v1006
        %v1039 = vunpack.c.l.b16 %v1007
        %v1040 = vunpack.c.l.b16 %v1008
        %v1041 = vunpack.c.l.b16 %v1009
        %v1042 = vunpack.c.l.b16 %v1010
        %v1043 = vunpack.c.l.b16 %v1011
        %v1044 = vunpack.c.l.b16 %v1012
        %v1045 = vunpack.c.l.b16 %v1013
        %v1046 = vunpack.c.l.b16 %v1014
        %v1047 = vunpack.c.l.b16 %v1015
        %v1048 = vunpack.c.l.b16 %v1016
        %v1049 = vunpack.c.l.b16 %v1017
        %v1050 = vunpack.c.l.b16 %v1018
        %v1051 = vunpack.c.l.b16 %v1019
        %v1052 = vunpack.c.l.b16 %v1020
        %v1053 = vunpack.c.l.b16 %v1021
        %v1054 = vpack.c.b16 %v1039, %v1038
        %v1055 = vpack.c.b16 %v1041, %v1040
        %v1056 = vpack.c.b16 %v1043, %v1042
        %v1057 = vpack.c.b16 %v1045, %v1044
        %v1058 = vpack.c.b16 %v1047, %v1046
        %v1059 = vpack.c.b16 %v1049, %v1048
        %v1060 = vpack.c.b16 %v1051, %v1050
        %v1061 = vpack.c.b16 %v1053, %v1052
        %1070 = vmatprep.subr.bf16.mxu0 0
        %1071 = vmatpush1.bf16.msra.mxu0 %v1054
        %1072 = vmatprep.subr.bf16.mxu0 0
        %1073 = vmatpush1.bf16.msra.mxu0 %v1055
        %1074 = vmatprep.subr.bf16.mxu0 0
        %1075 = vmatpush1.bf16.msra.mxu0 %v1056
        %1076 = vmatprep.subr.bf16.mxu0 0
        %1077 = vmatpush1.bf16.msra.mxu0 %v1057
        %1078 = vmatprep.subr.bf16.mxu0 0
        %1079 = vmatpush1.bf16.msra.mxu0 %v1058
        %1080 = vmatprep.subr.bf16.mxu0 0
        %1081 = vmatpush1.bf16.msra.mxu0 %v1059
        %1082 = vmatprep.subr.bf16.mxu0 0
        %1083 = vmatpush1.bf16.msra.mxu0 %v1060
        %1084 = vmatprep.subr.bf16.mxu0 0
        %1085 = vmatpush1.bf16.msra.mxu0 %v1061
        %1086 = vmatprep.subr.bf16.mxu0 0
        %1087 = vmatpush1.bf16.msra.mxu0 0
        %1088 = vmatprep.subr.bf16.mxu0 0
        %1089 = vmatpush1.bf16.msra.mxu0 0
        %1090 = vmatprep.subr.bf16.mxu0 0
        %1091 = vmatpush1.bf16.msra.mxu0 0
        %1092 = vmatprep.subr.bf16.mxu0 0
        %1093 = vmatpush1.bf16.msra.mxu0 0
        %1094 = vmatprep.subr.bf16.mxu0 0
        %1095 = vmatpush1.bf16.msra.mxu0 0
        %1096 = vmatprep.subr.bf16.mxu0 0
        %1097 = vmatpush1.bf16.msra.mxu0 0
        %1098 = vmatprep.subr.bf16.mxu0 0
        %1099 = vmatpush1.bf16.msra.mxu0 0
        %1100 = vmatprep.subr.bf16.mxu0 0
        %1101 = vmatpush1.bf16.msra.mxu0 0
        %1102 = vmatprep.mubr.bf16.mxu0 0
        %1103 = vmatmul.mubr.bf16.gmra.mrb[0].mxu0 %v974
        %v1104 = vpop.f32.mrb[0].mxu0
        %v1105 = vadd.f32 0.0, %v1104
        %v1106 = vpop.f32.mrb[0].mxu0
        %v1107 = vpop.f32.mrb[0].mxu0
        %v1108 = vadd.f32 0.0, %v1107
        %v1109 = vpop.f32.mrb[0].mxu0
        %1110 = vmatprep.mubr.bf16.mxu0 0
        %1111 = vmatmul.mubr.bf16.gmra.mrb[0].mxu0 %v975
        %v1112 = vpop.f32.mrb[0].mxu0
        %v1113 = vadd.f32 0.0, %v1112
        %v1114 = vpop.f32.mrb[0].mxu0
        %v1115 = vpop.f32.mrb[0].mxu0
        %v1116 = vadd.f32 0.0, %v1115
        %v1117 = vpop.f32.mrb[0].mxu0
        %1118 = vmatprep.mubr.bf16.mxu0 0
        %1119 = vmatmul.mubr.bf16.gmra.mrb[0].mxu0 %v976
        %v1120 = vpop.f32.mrb[0].mxu0
        %v1121 = vadd.f32 0.0, %v1120
        %v1122 = vpop.f32.mrb[0].mxu0
        %v1123 = vpop.f32.mrb[0].mxu0
        %v1124 = vadd.f32 0.0, %v1123
        %v1125 = vpop.f32.mrb[0].mxu0
        %1126 = vmatprep.mubr.bf16.mxu0 0
        %1127 = vmatmul.mubr.bf16.gmra.mrb[0].mxu0 %v977
        %v1128 = vpop.f32.mrb[0].mxu0
        %v1129 = vadd.f32 0.0, %v1128
        %v1130 = vpop.f32.mrb[0].mxu0
        %v1131 = vpop.f32.mrb[0].mxu0
        %v1132 = vadd.f32 0.0, %v1131
        %v1133 = vpop.f32.mrb[0].mxu0
        %1134 = vmatprep.mubr.bf16.mxu0 0
        %1135 = vmatmul.mubr.bf16.gmra.mrb[0].mxu0 %v978
        %v1136 = vpop.f32.mrb[0].mxu0
        %v1137 = vadd.f32 0.0, %v1136
        %v1138 = vpop.f32.mrb[0].mxu0
        %v1139 = vpop.f32.mrb[0].mxu0
        %v1140 = vadd.f32 0.0, %v1139
        %v1141 = vpop.f32.mrb[0].mxu0
        %1142 = vmatprep.mubr.bf16.mxu0 0
        %1143 = vmatmul.mubr.bf16.gmra.mrb[0].mxu0 %v979
        %v1144 = vpop.f32.mrb[0].mxu0
        %v1145 = vadd.f32 0.0, %v1144
        %v1146 = vpop.f32.mrb[0].mxu0
        %v1147 = vpop.f32.mrb[0].mxu0
        %v1148 = vadd.f32 0.0, %v1147
        %v1149 = vpop.f32.mrb[0].mxu0
        %1150 = vmatprep.mubr.bf16.mxu0 0
        %1151 = vmatmul.mubr.bf16.gmra.mrb[0].mxu0 %v980
        %v1152 = vpop.f32.mrb[0].mxu0
        %v1153 = vadd.f32 0.0, %v1152
        %v1154 = vpop.f32.mrb[0].mxu0
        %v1155 = vpop.f32.mrb[0].mxu0
        %v1156 = vadd.f32 0.0, %v1155
        %v1157 = vpop.f32.mrb[0].mxu0
        %1158 = vmatprep.mubr.bf16.mxu0 0
        %1159 = vmatmul.mubr.bf16.gmra.mrb[0].mxu0 %v981
        %v1160 = vpop.f32.mrb[0].mxu0
        %v1161 = vadd.f32 0.0, %v1160
        %v1162 = vpop.f32.mrb[0].mxu0
        %v1163 = vpop.f32.mrb[0].mxu0
        %v1164 = vadd.f32 0.0, %v1163
        %v1165 = vpop.f32.mrb[0].mxu0
        %1166 = vmatprep.mubr.bf16.mxu0 0
        %1167 = vmatmul.mubr.bf16.gmra.mrb[0].mxu0 %v982
        %v1168 = vpop.f32.mrb[0].mxu0
        %v1169 = vadd.f32 0.0, %v1168
        %v1170 = vpop.f32.mrb[0].mxu0
        %v1171 = vpop.f32.mrb[0].mxu0
        %v1172 = vadd.f32 0.0, %v1171
        %v1173 = vpop.f32.mrb[0].mxu0
        %1174 = vmatprep.mubr.bf16.mxu0 0
        %1175 = vmatmul.mubr.bf16.gmra.mrb[0].mxu0 %v983
        %v1176 = vpop.f32.mrb[0].mxu0
        %v1177 = vadd.f32 0.0, %v1176
        %v1178 = vpop.f32.mrb[0].mxu0
        %v1179 = vpop.f32.mrb[0].mxu0
        %v1180 = vadd.f32 0.0, %v1179
        %v1181 = vpop.f32.mrb[0].mxu0
        %1182 = vmatprep.mubr.bf16.mxu0 0
        %1183 = vmatmul.mubr.bf16.gmra.mrb[0].mxu0 %v984
        %v1184 = vpop.f32.mrb[0].mxu0
        %v1185 = vadd.f32 0.0, %v1184
        %v1186 = vpop.f32.mrb[0].mxu0
        %v1187 = vpop.f32.mrb[0].mxu0
        %v1188 = vadd.f32 0.0, %v1187
        %v1189 = vpop.f32.mrb[0].mxu0
        %1190 = vmatprep.mubr.bf16.mxu0 0
        %1191 = vmatmul.mubr.bf16.gmra.mrb[0].mxu0 %v985
        %v1192 = vpop.f32.mrb[0].mxu0
        %v1193 = vadd.f32 0.0, %v1192
        %v1194 = vpop.f32.mrb[0].mxu0
        %v1195 = vpop.f32.mrb[0].mxu0
        %v1196 = vadd.f32 0.0, %v1195
        %v1197 = vpop.f32.mrb[0].mxu0
        %1198 = vmatprep.mubr.bf16.mxu0 0
        %1199 = vmatmul.mubr.bf16.gmra.mrb[0].mxu0 %v986
        %v1200 = vpop.f32.mrb[0].mxu0
        %v1201 = vadd.f32 0.0, %v1200
        %v1202 = vpop.f32.mrb[0].mxu0
        %v1203 = vpop.f32.mrb[0].mxu0
        %v1204 = vadd.f32 0.0, %v1203
        %v1205 = vpop.f32.mrb[0].mxu0
        %1206 = vmatprep.mubr.bf16.mxu0 0
        %1207 = vmatmul.mubr.bf16.gmra.mrb[0].mxu0 %v987
        %v1208 = vpop.f32.mrb[0].mxu0
        %v1209 = vadd.f32 0.0, %v1208
        %v1210 = vpop.f32.mrb[0].mxu0
        %v1211 = vpop.f32.mrb[0].mxu0
        %v1212 = vadd.f32 0.0, %v1211
        %v1213 = vpop.f32.mrb[0].mxu0
        %1214 = vmatprep.mubr.bf16.mxu0 0
        %1215 = vmatmul.mubr.bf16.gmra.mrb[0].mxu0 %v988
        %v1216 = vpop.f32.mrb[0].mxu0
        %v1217 = vadd.f32 0.0, %v1216
        %v1218 = vpop.f32.mrb[0].mxu0
        %v1219 = vpop.f32.mrb[0].mxu0
        %v1220 = vadd.f32 0.0, %v1219
        %v1221 = vpop.f32.mrb[0].mxu0
        %1222 = vmatprep.mubr.bf16.mxu0 0
        %1223 = vmatmul.mubr.bf16.gmra.mrb[0].mxu0 %v989
        %v1224 = vpop.f32.mrb[0].mxu0
        %v1225 = vadd.f32 0.0, %v1224
        %v1226 = vpop.f32.mrb[0].mxu0
        %v1227 = vpop.f32.mrb[0].mxu0
        %v1228 = vadd.f32 0.0, %v1227
        %v1229 = vpop.f32.mrb[0].mxu0
        %1230 = vdwg.mxu0
        %v1247 = vunpack.c.l.b16 %v990
        %v1248 = vunpack.c.l.b16 %v991
        %v1249 = vunpack.c.l.b16 %v992
        %v1250 = vunpack.c.l.b16 %v993
        %v1251 = vunpack.c.l.b16 %v994
        %v1252 = vunpack.c.l.b16 %v995
        %v1253 = vunpack.c.l.b16 %v996
        %v1254 = vunpack.c.l.b16 %v997
        %v1255 = vunpack.c.l.b16 %v998
        %v1256 = vunpack.c.l.b16 %v999
        %v1257 = vunpack.c.l.b16 %v1000
        %v1258 = vunpack.c.l.b16 %v1001
        %v1259 = vunpack.c.l.b16 %v1002
        %v1260 = vunpack.c.l.b16 %v1003
        %v1261 = vunpack.c.l.b16 %v1004
        %v1262 = vunpack.c.l.b16 %v1005
        %v1263 = vpack.c.b16 %v1248, %v1247
        %v1264 = vpack.c.b16 %v1250, %v1249
        %v1265 = vpack.c.b16 %v1252, %v1251
        %v1266 = vpack.c.b16 %v1254, %v1253
        %v1267 = vpack.c.b16 %v1256, %v1255
        %v1268 = vpack.c.b16 %v1258, %v1257
        %v1269 = vpack.c.b16 %v1260, %v1259
        %v1270 = vpack.c.b16 %v1262, %v1261
        %1279 = vmatprep.subr.bf16.mxu0 0
        %1280 = vmatpush1.bf16.msra.mxu0 %v1263
        %1281 = vmatprep.subr.bf16.mxu0 0
        %1282 = vmatpush1.bf16.msra.mxu0 %v1264
        %1283 = vmatprep.subr.bf16.mxu0 0
        %1284 = vmatpush1.bf16.msra.mxu0 %v1265
        %1285 = vmatprep.subr.bf16.mxu0 0
        %1286 = vmatpush1.bf16.msra.mxu0 %v1266
        %1287 = vmatprep.subr.bf16.mxu0 0
        %1288 = vmatpush1.bf16.msra.mxu0 %v1267
        %1289 = vmatprep.subr.bf16.mxu0 0
        %1290 = vmatpush1.bf16.msra.mxu0 %v1268
        %1291 = vmatprep.subr.bf16.mxu0 0
        %1292 = vmatpush1.bf16.msra.mxu0 %v1269
        %1293 = vmatprep.subr.bf16.mxu0 0
        %1294 = vmatpush1.bf16.msra.mxu0 %v1270
        %1295 = vmatprep.subr.bf16.mxu0 0
        %1296 = vmatpush1.bf16.msra.mxu0 0
        %1297 = vmatprep.subr.bf16.mxu0 0
        %1298 = vmatpush1.bf16.msra.mxu0 0
        %1299 = vmatprep.subr.bf16.mxu0 0
        %1300 = vmatpush1.bf16.msra.mxu0 0
        %1301 = vmatprep.subr.bf16.mxu0 0
        %1302 = vmatpush1.bf16.msra.mxu0 0
        %1303 = vmatprep.subr.bf16.mxu0 0
        %1304 = vmatpush1.bf16.msra.mxu0 0
        %1305 = vmatprep.subr.bf16.mxu0 0
        %1306 = vmatpush1.bf16.msra.mxu0 0
        %1307 = vmatprep.subr.bf16.mxu0 0
        %1308 = vmatpush1.bf16.msra.mxu0 0
        %1309 = vmatprep.subr.bf16.mxu0 0
        %1310 = vmatpush1.bf16.msra.mxu0 0
        %1311 = vmatprep.mubr.bf16.mxu0 0
        %1312 = vmatmul.mubr.bf16.gmra.mrb[0].mxu0 %v734
        %v1313 = vpop.f32.mrb[0].mxu0
        %v1314 = vadd.f32 %v1105, %v1313
        %v1315 = vpop.f32.mrb[0].mxu0
        %v1316 = vpop.f32.mrb[0].mxu0
        %v1317 = vadd.f32 %v1108, %v1316
        %v1318 = vpop.f32.mrb[0].mxu0
        %1319 = vmatprep.mubr.bf16.mxu0 0
        %1320 = vmatmul.mubr.bf16.gmra.mrb[0].mxu0 %v735
        %v1321 = vpop.f32.mrb[0].mxu0
        %v1322 = vadd.f32 %v1113, %v1321
        %v1323 = vpop.f32.mrb[0].mxu0
        %v1324 = vpop.f32.mrb[0].mxu0
        %v1325 = vadd.f32 %v1116, %v1324
        %v1326 = vpop.f32.mrb[0].mxu0
        %1327 = vmatprep.mubr.bf16.mxu0 0
        %1328 = vmatmul.mubr.bf16.gmra.mrb[0].mxu0 %v736
        %v1329 = vpop.f32.mrb[0].mxu0
        %v1330 = vadd.f32 %v1121, %v1329
        %v1331 = vpop.f32.mrb[0].mxu0
        %v1332 = vpop.f32.mrb[0].mxu0
        %v1333 = vadd.f32 %v1124, %v1332
        %v1334 = vpop.f32.mrb[0].mxu0
        %1335 = vmatprep.mubr.bf16.mxu0 0
        %1336 = vmatmul.mubr.bf16.gmra.mrb[0].mxu0 %v737
        %v1337 = vpop.f32.mrb[0].mxu0
        %v1338 = vadd.f32 %v1129, %v1337
        %v1339 = vpop.f32.mrb[0].mxu0
        %v1340 = vpop.f32.mrb[0].mxu0
        %v1341 = vadd.f32 %v1132, %v1340
        %v1342 = vpop.f32.mrb[0].mxu0
        %1343 = vmatprep.mubr.bf16.mxu0 0
        %1344 = vmatmul.mubr.bf16.gmra.mrb[0].mxu0 %v738
        %v1345 = vpop.f32.mrb[0].mxu0
        %v1346 = vadd.f32 %v1137, %v1345
        %v1347 = vpop.f32.mrb[0].mxu0
        %v1348 = vpop.f32.mrb[0].mxu0
        %v1349 = vadd.f32 %v1140, %v1348
        %v1350 = vpop.f32.mrb[0].mxu0
        %1351 = vmatprep.mubr.bf16.mxu0 0
        %1352 = vmatmul.mubr.bf16.gmra.mrb[0].mxu0 %v739
        %v1353 = vpop.f32.mrb[0].mxu0
        %v1354 = vadd.f32 %v1145, %v1353
        %v1355 = vpop.f32.mrb[0].mxu0
        %v1356 = vpop.f32.mrb[0].mxu0
        %v1357 = vadd.f32 %v1148, %v1356
        %v1358 = vpop.f32.mrb[0].mxu0
        %1359 = vmatprep.mubr.bf16.mxu0 0
        %1360 = vmatmul.mubr.bf16.gmra.mrb[0].mxu0 %v740
        %v1361 = vpop.f32.mrb[0].mxu0
        %v1362 = vadd.f32 %v1153, %v1361
        %v1363 = vpop.f32.mrb[0].mxu0
        %v1364 = vpop.f32.mrb[0].mxu0
        %v1365 = vadd.f32 %v1156, %v1364
        %v1366 = vpop.f32.mrb[0].mxu0
        %1367 = vmatprep.mubr.bf16.mxu0 0
        %1368 = vmatmul.mubr.bf16.gmra.mrb[0].mxu0 %v741
        %v1369 = vpop.f32.mrb[0].mxu0
        %v1370 = vadd.f32 %v1161, %v1369
        %v1371 = vpop.f32.mrb[0].mxu0
        %v1372 = vpop.f32.mrb[0].mxu0
        %v1373 = vadd.f32 %v1164, %v1372
        %v1374 = vpop.f32.mrb[0].mxu0
        %1375 = vmatprep.mubr.bf16.mxu0 0
        %1376 = vmatmul.mubr.bf16.gmra.mrb[0].mxu0 %v742
        %v1377 = vpop.f32.mrb[0].mxu0
        %v1378 = vadd.f32 %v1169, %v1377
        %v1379 = vpop.f32.mrb[0].mxu0
        %v1380 = vpop.f32.mrb[0].mxu0
        %v1381 = vadd.f32 %v1172, %v1380
        %v1382 = vpop.f32.mrb[0].mxu0
        %1383 = vmatprep.mubr.bf16.mxu0 0
        %1384 = vmatmul.mubr.bf16.gmra.mrb[0].mxu0 %v743
        %v1385 = vpop.f32.mrb[0].mxu0
        %v1386 = vadd.f32 %v1177, %v1385
        %v1387 = vpop.f32.mrb[0].mxu0
        %v1388 = vpop.f32.mrb[0].mxu0
        %v1389 = vadd.f32 %v1180, %v1388
        %v1390 = vpop.f32.mrb[0].mxu0
        %1391 = vmatprep.mubr.bf16.mxu0 0
        %1392 = vmatmul.mubr.bf16.gmra.mrb[0].mxu0 %v744
        %v1393 = vpop.f32.mrb[0].mxu0
        %v1394 = vadd.f32 %v1185, %v1393
        %v1395 = vpop.f32.mrb[0].mxu0
        %v1396 = vpop.f32.mrb[0].mxu0
        %v1397 = vadd.f32 %v1188, %v1396
        %v1398 = vpop.f32.mrb[0].mxu0
        %1399 = vmatprep.mubr.bf16.mxu0 0
        %1400 = vmatmul.mubr.bf16.gmra.mrb[0].mxu0 %v745
        %v1401 = vpop.f32.mrb[0].mxu0
        %v1402 = vadd.f32 %v1193, %v1401
        %v1403 = vpop.f32.mrb[0].mxu0
        %v1404 = vpop.f32.mrb[0].mxu0
        %v1405 = vadd.f32 %v1196, %v1404
        %v1406 = vpop.f32.mrb[0].mxu0
        %1407 = vmatprep.mubr.bf16.mxu0 0
        %1408 = vmatmul.mubr.bf16.gmra.mrb[0].mxu0 %v746
        %v1409 = vpop.f32.mrb[0].mxu0
        %v1410 = vadd.f32 %v1201, %v1409
        %v1411 = vpop.f32.mrb[0].mxu0
        %v1412 = vpop.f32.mrb[0].mxu0
        %v1413 = vadd.f32 %v1204, %v1412
        %v1414 = vpop.f32.mrb[0].mxu0
        %1415 = vmatprep.mubr.bf16.mxu0 0
        %1416 = vmatmul.mubr.bf16.gmra.mrb[0].mxu0 %v747
        %v1417 = vpop.f32.mrb[0].mxu0
        %v1418 = vadd.f32 %v1209, %v1417
        %v1419 = vpop.f32.mrb[0].mxu0
        %v1420 = vpop.f32.mrb[0].mxu0
        %v1421 = vadd.f32 %v1212, %v1420
        %v1422 = vpop.f32.mrb[0].mxu0
        %1423 = vmatprep.mubr.bf16.mxu0 0
        %1424 = vmatmul.mubr.bf16.gmra.mrb[0].mxu0 %v748
        %v1425 = vpop.f32.mrb[0].mxu0
        %v1426 = vadd.f32 %v1217, %v1425
        %v1427 = vpop.f32.mrb[0].mxu0
        %v1428 = vpop.f32.mrb[0].mxu0
        %v1429 = vadd.f32 %v1220, %v1428
        %v1430 = vpop.f32.mrb[0].mxu0
        %1431 = vmatprep.mubr.bf16.mxu0 0
        %1432 = vmatmul.mubr.bf16.gmra.mrb[0].mxu0 %v749
        %v1433 = vpop.f32.mrb[0].mxu0
        %v1434 = vadd.f32 %v1225, %v1433
        %v1435 = vpop.f32.mrb[0].mxu0
        %v1436 = vpop.f32.mrb[0].mxu0
        %v1437 = vadd.f32 %v1228, %v1436
        %v1438 = vpop.f32.mrb[0].mxu0
        %1439 = vdwg.mxu0
        %v1440 = vpack.c.bf16 %v1317, %v1314
        %v1441 = vpack.c.bf16 %v1325, %v1322
        %v1442 = vpack.c.bf16 %v1333, %v1330
        %v1443 = vpack.c.bf16 %v1341, %v1338
        %v1444 = vpack.c.bf16 %v1349, %v1346
        %v1445 = vpack.c.bf16 %v1357, %v1354
        %v1446 = vpack.c.bf16 %v1365, %v1362
        %v1447 = vpack.c.bf16 %v1373, %v1370
        %v1448 = vpack.c.bf16 %v1381, %v1378
        %v1449 = vpack.c.bf16 %v1389, %v1386
        %v1450 = vpack.c.bf16 %v1397, %v1394
        %v1451 = vpack.c.bf16 %v1405, %v1402
        %v1452 = vpack.c.bf16 %v1413, %v1410
        %v1453 = vpack.c.bf16 %v1421, %v1418
        %v1454 = vpack.c.bf16 %v1429, %v1426
        %v1455 = vpack.c.bf16 %v1437, %v1434
        %v1456 = vld [vmem:[%s4] sm:$0xf]
        %v1457 = vld [vmem:[%s4 + $0x4] sm:$0xf]
        %v1458 = vld [vmem:[%s4 + $0x8] sm:$0xf]
        %v1459 = vld [vmem:[%s4 + $0xc] sm:$0xf]
        %v1460 = vld [vmem:[%s4 + $0x10] sm:$0xf]
        %v1461 = vld [vmem:[%s4 + $0x14] sm:$0xf]
        %v1462 = vld [vmem:[%s4 + $0x18] sm:$0xf]
        %v1463 = vld [vmem:[%s4 + $0x1c] sm:$0xf]
        %v1464 = vld [vmem:[%s5] sm:$0x1]
        %v1466 = vlaneseq
        %v1467 = vshrl.u32 %v1466, 7
        %v1468 = vsub.s32 0, %v1467
        %v1469 = vrot.slane %v1464, %v1468
        %v1479 = vunpack.c.l.b16 %v1456
        %v1480 = vunpack.c.l.b16 %v1457
        %v1481 = vunpack.c.l.b16 %v1458
        %v1482 = vunpack.c.l.b16 %v1459
        %v1483 = vunpack.c.l.b16 %v1460
        %v1484 = vunpack.c.l.b16 %v1461
        %v1485 = vunpack.c.l.b16 %v1462
        %v1486 = vunpack.c.l.b16 %v1463
        %v1487 = vpack.c.b16 %v1480, %v1479
        %v1488 = vpack.c.b16 %v1482, %v1481
        %v1489 = vpack.c.b16 %v1484, %v1483
        %v1490 = vpack.c.b16 %v1486, %v1485
        %vm1495 = vcmask 523264
        %v1497 = vsel %vm1495, %v1440, 0
        %v1500 = vsel %vm1495, %v1441, 0
        %v1503 = vsel %vm1495, %v1442, 0
        %v1506 = vsel %vm1495, %v1443, 0
        %v1509 = vsel %vm1495, %v1444, 0
        %v1512 = vsel %vm1495, %v1445, 0
        %v1515 = vsel %vm1495, %v1446, 0
        %v1518 = vsel %vm1495, %v1447, 0
        %v1521 = vsel %vm1495, %v1448, 0
        %v1524 = vsel %vm1495, %v1449, 0
        %v1527 = vsel %vm1495, %v1450, 0
        %v1530 = vsel %vm1495, %v1451, 0
        %v1533 = vsel %vm1495, %v1452, 0
        %v1536 = vsel %vm1495, %v1453, 0
        %v1539 = vsel %vm1495, %v1454, 0
        %v1542 = vsel %vm1495, %v1455, 0
        %1544 = vmatprep.subr.bf16.mxu0 0
        %1545 = vmatpush1.bf16.msra.mxu0 %v1487
        %1546 = vmatprep.subr.bf16.mxu0 0
        %1547 = vmatpush1.bf16.msra.mxu0 %v1488
        %1548 = vmatprep.subr.bf16.mxu0 0
        %1549 = vmatpush1.bf16.msra.mxu0 %v1489
        %1550 = vmatprep.subr.bf16.mxu0 0
        %1551 = vmatpush1.bf16.msra.mxu0 %v1490
        %1552 = vmatprep.subr.bf16.mxu0 0
        %1553 = vmatpush1.bf16.msra.mxu0 0
        %1554 = vmatprep.subr.bf16.mxu0 0
        %1555 = vmatpush1.bf16.msra.mxu0 0
        %1556 = vmatprep.subr.bf16.mxu0 0
        %1557 = vmatpush1.bf16.msra.mxu0 0
        %1558 = vmatprep.subr.bf16.mxu0 0
        %1559 = vmatpush1.bf16.msra.mxu0 0
        %1560 = vmatprep.subr.bf16.mxu0 0
        %1561 = vmatpush1.bf16.msra.mxu0 0
        %1562 = vmatprep.subr.bf16.mxu0 0
        %1563 = vmatpush1.bf16.msra.mxu0 0
        %1564 = vmatprep.subr.bf16.mxu0 0
        %1565 = vmatpush1.bf16.msra.mxu0 0
        %1566 = vmatprep.subr.bf16.mxu0 0
        %1567 = vmatpush1.bf16.msra.mxu0 0
        %1568 = vmatprep.subr.bf16.mxu0 0
        %1569 = vmatpush1.bf16.msra.mxu0 0
        %1570 = vmatprep.subr.bf16.mxu0 0
        %1571 = vmatpush1.bf16.msra.mxu0 0
        %1572 = vmatprep.subr.bf16.mxu0 0
        %1573 = vmatpush1.bf16.msra.mxu0 0
        %1574 = vmatprep.subr.bf16.mxu0 0
        %1575 = vmatpush1.bf16.msra.mxu0 0
        %1576 = vmatprep.mubr.bf16.mxu0 0
        %1577 = vmatmul.mubr.bf16.gmra.mrb[0].mxu0 %v1497
        %v1578 = vpop.f32.mrb[0].mxu0
        %v1579 = vadd.f32 %v1469, %v1578
        %v1580 = vpop.f32.mrb[0].mxu0
        %v1581 = vpop.f32.mrb[0].mxu0
        %v1582 = vadd.f32 %v1469, %v1581
        %v1583 = vpop.f32.mrb[0].mxu0
        %1584 = vmatprep.mubr.bf16.mxu0 0
        %1585 = vmatmul.mubr.bf16.gmra.mrb[0].mxu0 %v1500
        %v1586 = vpop.f32.mrb[0].mxu0
        %v1587 = vadd.f32 %v1469, %v1586
        %v1588 = vpop.f32.mrb[0].mxu0
        %v1589 = vpop.f32.mrb[0].mxu0
        %v1590 = vadd.f32 %v1469, %v1589
        %v1591 = vpop.f32.mrb[0].mxu0
        %1592 = vmatprep.mubr.bf16.mxu0 0
        %1593 = vmatmul.mubr.bf16.gmra.mrb[0].mxu0 %v1503
        %v1594 = vpop.f32.mrb[0].mxu0
        %v1595 = vadd.f32 %v1469, %v1594
        %v1596 = vpop.f32.mrb[0].mxu0
        %v1597 = vpop.f32.mrb[0].mxu0
        %v1598 = vadd.f32 %v1469, %v1597
        %v1599 = vpop.f32.mrb[0].mxu0
        %1600 = vmatprep.mubr.bf16.mxu0 0
        %1601 = vmatmul.mubr.bf16.gmra.mrb[0].mxu0 %v1506
        %v1602 = vpop.f32.mrb[0].mxu0
        %v1603 = vadd.f32 %v1469, %v1602
        %v1604 = vpop.f32.mrb[0].mxu0
        %v1605 = vpop.f32.mrb[0].mxu0
        %v1606 = vadd.f32 %v1469, %v1605
        %v1607 = vpop.f32.mrb[0].mxu0
        %1608 = vmatprep.mubr.bf16.mxu0 0
        %1609 = vmatmul.mubr.bf16.gmra.mrb[0].mxu0 %v1509
        %v1610 = vpop.f32.mrb[0].mxu0
        %v1611 = vadd.f32 %v1469, %v1610
        %v1612 = vpop.f32.mrb[0].mxu0
        %v1613 = vpop.f32.mrb[0].mxu0
        %v1614 = vadd.f32 %v1469, %v1613
        %v1615 = vpop.f32.mrb[0].mxu0
        %1616 = vmatprep.mubr.bf16.mxu0 0
        %1617 = vmatmul.mubr.bf16.gmra.mrb[0].mxu0 %v1512
        %v1618 = vpop.f32.mrb[0].mxu0
        %v1619 = vadd.f32 %v1469, %v1618
        %v1620 = vpop.f32.mrb[0].mxu0
        %v1621 = vpop.f32.mrb[0].mxu0
        %v1622 = vadd.f32 %v1469, %v1621
        %v1623 = vpop.f32.mrb[0].mxu0
        %1624 = vmatprep.mubr.bf16.mxu0 0
        %1625 = vmatmul.mubr.bf16.gmra.mrb[0].mxu0 %v1515
        %v1626 = vpop.f32.mrb[0].mxu0
        %v1627 = vadd.f32 %v1469, %v1626
        %v1628 = vpop.f32.mrb[0].mxu0
        %v1629 = vpop.f32.mrb[0].mxu0
        %v1630 = vadd.f32 %v1469, %v1629
        %v1631 = vpop.f32.mrb[0].mxu0
        %1632 = vmatprep.mubr.bf16.mxu0 0
        %1633 = vmatmul.mubr.bf16.gmra.mrb[0].mxu0 %v1518
        %v1634 = vpop.f32.mrb[0].mxu0
        %v1635 = vadd.f32 %v1469, %v1634
        %v1636 = vpop.f32.mrb[0].mxu0
        %v1637 = vpop.f32.mrb[0].mxu0
        %v1638 = vadd.f32 %v1469, %v1637
        %v1639 = vpop.f32.mrb[0].mxu0
        %1640 = vmatprep.mubr.bf16.mxu0 0
        %1641 = vmatmul.mubr.bf16.gmra.mrb[0].mxu0 %v1521
        %v1642 = vpop.f32.mrb[0].mxu0
        %v1643 = vadd.f32 %v1469, %v1642
        %v1644 = vpop.f32.mrb[0].mxu0
        %v1645 = vpop.f32.mrb[0].mxu0
        %v1646 = vadd.f32 %v1469, %v1645
        %v1647 = vpop.f32.mrb[0].mxu0
        %1648 = vmatprep.mubr.bf16.mxu0 0
        %1649 = vmatmul.mubr.bf16.gmra.mrb[0].mxu0 %v1524
        %v1650 = vpop.f32.mrb[0].mxu0
        %v1651 = vadd.f32 %v1469, %v1650
        %v1652 = vpop.f32.mrb[0].mxu0
        %v1653 = vpop.f32.mrb[0].mxu0
        %v1654 = vadd.f32 %v1469, %v1653
        %v1655 = vpop.f32.mrb[0].mxu0
        %1656 = vmatprep.mubr.bf16.mxu0 0
        %1657 = vmatmul.mubr.bf16.gmra.mrb[0].mxu0 %v1527
        %v1658 = vpop.f32.mrb[0].mxu0
        %v1659 = vadd.f32 %v1469, %v1658
        %v1660 = vpop.f32.mrb[0].mxu0
        %v1661 = vpop.f32.mrb[0].mxu0
        %v1662 = vadd.f32 %v1469, %v1661
        %v1663 = vpop.f32.mrb[0].mxu0
        %1664 = vmatprep.mubr.bf16.mxu0 0
        %1665 = vmatmul.mubr.bf16.gmra.mrb[0].mxu0 %v1530
        %v1666 = vpop.f32.mrb[0].mxu0
        %v1667 = vadd.f32 %v1469, %v1666
        %v1668 = vpop.f32.mrb[0].mxu0
        %v1669 = vpop.f32.mrb[0].mxu0
        %v1670 = vadd.f32 %v1469, %v1669
        %v1671 = vpop.f32.mrb[0].mxu0
        %1672 = vmatprep.mubr.bf16.mxu0 0
        %1673 = vmatmul.mubr.bf16.gmra.mrb[0].mxu0 %v1533
        %v1674 = vpop.f32.mrb[0].mxu0
        %v1675 = vadd.f32 %v1469, %v1674
        %v1676 = vpop.f32.mrb[0].mxu0
        %v1677 = vpop.f32.mrb[0].mxu0
        %v1678 = vadd.f32 %v1469, %v1677
        %v1679 = vpop.f32.mrb[0].mxu0
        %1680 = vmatprep.mubr.bf16.mxu0 0
        %1681 = vmatmul.mubr.bf16.gmra.mrb[0].mxu0 %v1536
        %v1682 = vpop.f32.mrb[0].mxu0
        %v1683 = vadd.f32 %v1469, %v1682
        %v1684 = vpop.f32.mrb[0].mxu0
        %v1685 = vpop.f32.mrb[0].mxu0
        %v1686 = vadd.f32 %v1469, %v1685
        %v1687 = vpop.f32.mrb[0].mxu0
        %1688 = vmatprep.mubr.bf16.mxu0 0
        %1689 = vmatmul.mubr.bf16.gmra.mrb[0].mxu0 %v1539
        %v1690 = vpop.f32.mrb[0].mxu0
        %v1691 = vadd.f32 %v1469, %v1690
        %v1692 = vpop.f32.mrb[0].mxu0
        %v1693 = vpop.f32.mrb[0].mxu0
        %v1694 = vadd.f32 %v1469, %v1693
        %v1695 = vpop.f32.mrb[0].mxu0
        %1696 = vmatprep.mubr.bf16.mxu0 0
        %1697 = vmatmul.mubr.bf16.gmra.mrb[0].mxu0 %v1542
        %v1698 = vpop.f32.mrb[0].mxu0
        %v1699 = vadd.f32 %v1469, %v1698
        %v1700 = vpop.f32.mrb[0].mxu0
        %v1701 = vpop.f32.mrb[0].mxu0
        %v1702 = vadd.f32 %v1469, %v1701
        %v1703 = vpop.f32.mrb[0].mxu0
        %1704 = vdwg.mxu0
        %v1705 = vxor.u32 %v1579, 2147483648
        %v1706 = vxor.u32 %v1582, 2147483648
        %v1707 = vxor.u32 %v1587, 2147483648
        %v1708 = vxor.u32 %v1590, 2147483648
        %v1709 = vxor.u32 %v1595, 2147483648
        %v1710 = vxor.u32 %v1598, 2147483648
        %v1711 = vxor.u32 %v1603, 2147483648
        %v1712 = vxor.u32 %v1606, 2147483648
        %v1713 = vxor.u32 %v1611, 2147483648
        %v1714 = vxor.u32 %v1614, 2147483648
        %v1715 = vxor.u32 %v1619, 2147483648
        %v1716 = vxor.u32 %v1622, 2147483648
        %v1717 = vxor.u32 %v1627, 2147483648
        %v1718 = vxor.u32 %v1630, 2147483648
        %v1719 = vxor.u32 %v1635, 2147483648
        %v1720 = vxor.u32 %v1638, 2147483648
        %v1721 = vxor.u32 %v1643, 2147483648
        %v1722 = vxor.u32 %v1646, 2147483648
        %v1723 = vxor.u32 %v1651, 2147483648
        %v1724 = vxor.u32 %v1654, 2147483648
        %v1725 = vxor.u32 %v1659, 2147483648
        %v1726 = vxor.u32 %v1662, 2147483648
        %v1727 = vxor.u32 %v1667, 2147483648
        %v1728 = vxor.u32 %v1670, 2147483648
        %v1729 = vxor.u32 %v1675, 2147483648
        %v1730 = vxor.u32 %v1678, 2147483648
        %v1731 = vxor.u32 %v1683, 2147483648
        %v1732 = vxor.u32 %v1686, 2147483648
        %v1733 = vxor.u32 %v1691, 2147483648
        %v1734 = vxor.u32 %v1694, 2147483648
        %v1735 = vxor.u32 %v1699, 2147483648
        %v1736 = vxor.u32 %v1702, 2147483648
        %v1737 = vmul.f32 %v1705, 1.442695
        %v1738 = vpow.pop %v1737
        %v1739 = vmul.f32 %v1706, 1.442695
        %v1740 = vpow.pop %v1739
        %v1741 = vmul.f32 %v1707, 1.442695
        %v1742 = vpow.pop %v1741
        %v1743 = vmul.f32 %v1708, 1.442695
        %v1744 = vpow.pop %v1743
        %v1745 = vmul.f32 %v1709, 1.442695
        %v1746 = vpow.pop %v1745
        %v1747 = vmul.f32 %v1710, 1.442695
        %v1748 = vpow.pop %v1747
        %v1749 = vmul.f32 %v1711, 1.442695
        %v1750 = vpow.pop %v1749
        %v1751 = vmul.f32 %v1712, 1.442695
        %v1752 = vpow.pop %v1751
        %v1753 = vmul.f32 %v1713, 1.442695
        %v1754 = vpow.pop %v1753
        %v1755 = vmul.f32 %v1714, 1.442695
        %v1756 = vpow.pop %v1755
        %v1757 = vmul.f32 %v1715, 1.442695
        %v1758 = vpow.pop %v1757
        %v1759 = vmul.f32 %v1716, 1.442695
        %v1760 = vpow.pop %v1759
        %v1761 = vmul.f32 %v1717, 1.442695
        %v1762 = vpow.pop %v1761
        %v1763 = vmul.f32 %v1718, 1.442695
        %v1764 = vpow.pop %v1763
        %v1765 = vmul.f32 %v1719, 1.442695
        %v1766 = vpow.pop %v1765
        %v1767 = vmul.f32 %v1720, 1.442695
        %v1768 = vpow.pop %v1767
        %v1769 = vmul.f32 %v1721, 1.442695
        %v1770 = vpow.pop %v1769
        %v1771 = vmul.f32 %v1722, 1.442695
        %v1772 = vpow.pop %v1771
        %v1773 = vmul.f32 %v1723, 1.442695
        %v1774 = vpow.pop %v1773
        %v1775 = vmul.f32 %v1724, 1.442695
        %v1776 = vpow.pop %v1775
        %v1777 = vmul.f32 %v1725, 1.442695
        %v1778 = vpow.pop %v1777
        %v1779 = vmul.f32 %v1726, 1.442695
        %v1780 = vpow.pop %v1779
        %v1781 = vmul.f32 %v1727, 1.442695
        %v1782 = vpow.pop %v1781
        %v1783 = vmul.f32 %v1728, 1.442695
        %v1784 = vpow.pop %v1783
        %v1785 = vmul.f32 %v1729, 1.442695
        %v1786 = vpow.pop %v1785
        %v1787 = vmul.f32 %v1730, 1.442695
        %v1788 = vpow.pop %v1787
        %v1789 = vmul.f32 %v1731, 1.442695
        %v1790 = vpow.pop %v1789
        %v1791 = vmul.f32 %v1732, 1.442695
        %v1792 = vpow.pop %v1791
        %v1793 = vmul.f32 %v1733, 1.442695
        %v1794 = vpow.pop %v1793
        %v1795 = vmul.f32 %v1734, 1.442695
        %v1796 = vpow.pop %v1795
        %v1797 = vmul.f32 %v1735, 1.442695
        %v1798 = vpow.pop %v1797
        %v1799 = vmul.f32 %v1736, 1.442695
        %v1800 = vpow.pop %v1799
        %v1801 = vadd.f32 %v1738, 1.0
        %v1802 = vadd.f32 %v1740, 1.0
        %v1803 = vadd.f32 %v1742, 1.0
        %v1804 = vadd.f32 %v1744, 1.0
        %v1805 = vadd.f32 %v1746, 1.0
        %v1806 = vadd.f32 %v1748, 1.0
        %v1807 = vadd.f32 %v1750, 1.0
        %v1808 = vadd.f32 %v1752, 1.0
        %v1809 = vadd.f32 %v1754, 1.0
        %v1810 = vadd.f32 %v1756, 1.0
        %v1811 = vadd.f32 %v1758, 1.0
        %v1812 = vadd.f32 %v1760, 1.0
        %v1813 = vadd.f32 %v1762, 1.0
        %v1814 = vadd.f32 %v1764, 1.0
        %v1815 = vadd.f32 %v1766, 1.0
        %v1816 = vadd.f32 %v1768, 1.0
        %v1817 = vadd.f32 %v1770, 1.0
        %v1818 = vadd.f32 %v1772, 1.0
        %v1819 = vadd.f32 %v1774, 1.0
        %v1820 = vadd.f32 %v1776, 1.0
        %v1821 = vadd.f32 %v1778, 1.0
        %v1822 = vadd.f32 %v1780, 1.0
        %v1823 = vadd.f32 %v1782, 1.0
        %v1824 = vadd.f32 %v1784, 1.0
        %v1825 = vadd.f32 %v1786, 1.0
        %v1826 = vadd.f32 %v1788, 1.0
        %v1827 = vadd.f32 %v1790, 1.0
        %v1828 = vadd.f32 %v1792, 1.0
        %v1829 = vadd.f32 %v1794, 1.0
        %v1830 = vadd.f32 %v1796, 1.0
        %v1831 = vadd.f32 %v1798, 1.0
        %v1832 = vadd.f32 %v1800, 1.0
        %v1833 = vrcp.pop %v1801
        %v1834 = vmul.f32 1.0, %v1833
        %v1835 = vrcp.pop %v1802
        %v1836 = vmul.f32 1.0, %v1835
        %v1837 = vrcp.pop %v1803
        %v1838 = vmul.f32 1.0, %v1837
        %v1839 = vrcp.pop %v1804
        %v1840 = vmul.f32 1.0, %v1839
        %v1841 = vrcp.pop %v1805
        %v1842 = vmul.f32 1.0, %v1841
        %v1843 = vrcp.pop %v1806
        %v1844 = vmul.f32 1.0, %v1843
        %v1845 = vrcp.pop %v1807
        %v1846 = vmul.f32 1.0, %v1845
        %v1847 = vrcp.pop %v1808
        %v1848 = vmul.f32 1.0, %v1847
        %v1849 = vrcp.pop %v1809
        %v1850 = vmul.f32 1.0, %v1849
        %v1851 = vrcp.pop %v1810
        %v1852 = vmul.f32 1.0, %v1851
        %v1853 = vrcp.pop %v1811
        %v1854 = vmul.f32 1.0, %v1853
        %v1855 = vrcp.pop %v1812
        %v1856 = vmul.f32 1.0, %v1855
        %v1857 = vrcp.pop %v1813
        %v1858 = vmul.f32 1.0, %v1857
        %v1859 = vrcp.pop %v1814
        %v1860 = vmul.f32 1.0, %v1859
        %v1861 = vrcp.pop %v1815
        %v1862 = vmul.f32 1.0, %v1861
        %v1863 = vrcp.pop %v1816
        %v1864 = vmul.f32 1.0, %v1863
        %v1865 = vrcp.pop %v1817
        %v1866 = vmul.f32 1.0, %v1865
        %v1867 = vrcp.pop %v1818
        %v1868 = vmul.f32 1.0, %v1867
        %v1869 = vrcp.pop %v1819
        %v1870 = vmul.f32 1.0, %v1869
        %v1871 = vrcp.pop %v1820
        %v1872 = vmul.f32 1.0, %v1871
        %v1873 = vrcp.pop %v1821
        %v1874 = vmul.f32 1.0, %v1873
        %v1875 = vrcp.pop %v1822
        %v1876 = vmul.f32 1.0, %v1875
        %v1877 = vrcp.pop %v1823
        %v1878 = vmul.f32 1.0, %v1877
        %v1879 = vrcp.pop %v1824
        %v1880 = vmul.f32 1.0, %v1879
        %v1881 = vrcp.pop %v1825
        %v1882 = vmul.f32 1.0, %v1881
        %v1883 = vrcp.pop %v1826
        %v1884 = vmul.f32 1.0, %v1883
        %v1885 = vrcp.pop %v1827
        %v1886 = vmul.f32 1.0, %v1885
        %v1887 = vrcp.pop %v1828
        %v1888 = vmul.f32 1.0, %v1887
        %v1889 = vrcp.pop %v1829
        %v1890 = vmul.f32 1.0, %v1889
        %v1891 = vrcp.pop %v1830
        %v1892 = vmul.f32 1.0, %v1891
        %v1893 = vrcp.pop %v1831
        %v1894 = vmul.f32 1.0, %v1893
        %v1895 = vrcp.pop %v1832
        %v1896 = vmul.f32 1.0, %v1895
        %v1897 = vpack.c.bf16 %v1836, %v1834
        %v1898 = vpack.c.bf16 %v1840, %v1838
        %v1899 = vpack.c.bf16 %v1844, %v1842
        %v1900 = vpack.c.bf16 %v1848, %v1846
        %v1901 = vpack.c.bf16 %v1852, %v1850
        %v1902 = vpack.c.bf16 %v1856, %v1854
        %v1903 = vpack.c.bf16 %v1860, %v1858
        %v1904 = vpack.c.bf16 %v1864, %v1862
        %v1905 = vpack.c.bf16 %v1868, %v1866
        %v1906 = vpack.c.bf16 %v1872, %v1870
        %v1907 = vpack.c.bf16 %v1876, %v1874
        %v1908 = vpack.c.bf16 %v1880, %v1878
        %v1909 = vpack.c.bf16 %v1884, %v1882
        %v1910 = vpack.c.bf16 %v1888, %v1886
        %v1911 = vpack.c.bf16 %v1892, %v1890
        %v1912 = vpack.c.bf16 %v1896, %v1894
        %v1913 = vld [vmem:[%s6] sm:$0xf]
        %v1914 = vld [vmem:[%s6 + $0x4] sm:$0xf]
        %v1915 = vld [vmem:[%s6 + $0x8] sm:$0xf]
        %v1916 = vld [vmem:[%s6 + $0xc] sm:$0xf]
        %v1917 = vld [vmem:[%s6 + $0x10] sm:$0xf]
        %v1918 = vld [vmem:[%s6 + $0x14] sm:$0xf]
        %v1919 = vld [vmem:[%s6 + $0x18] sm:$0xf]
        %v1920 = vld [vmem:[%s6 + $0x1c] sm:$0xf]
        %v1921 = vld [vmem:[%s6 + $0x20] sm:$0xf]
        %v1922 = vld [vmem:[%s6 + $0x24] sm:$0xf]
        %v1923 = vld [vmem:[%s6 + $0x28] sm:$0xf]
        %v1924 = vld [vmem:[%s6 + $0x2c] sm:$0xf]
        %v1925 = vld [vmem:[%s6 + $0x30] sm:$0xf]
        %v1926 = vld [vmem:[%s6 + $0x34] sm:$0xf]
        %v1927 = vld [vmem:[%s6 + $0x38] sm:$0xf]
        %v1928 = vld [vmem:[%s6 + $0x3c] sm:$0xf]
        %v1929 = vld [vmem:[%s7] sm:$0x1]
        %v1931 = vlaneseq
        %v1932 = vshrl.u32 %v1931, 7
        %v1933 = vsub.s32 0, %v1932
        %v1934 = vrot.slane %v1929, %v1933
        %v1952 = vunpack.c.l.b16 %v1913
        %v1953 = vunpack.c.l.b16 %v1914
        %v1954 = vunpack.c.l.b16 %v1915
        %v1955 = vunpack.c.l.b16 %v1916
        %v1956 = vunpack.c.l.b16 %v1917
        %v1957 = vunpack.c.l.b16 %v1918
        %v1958 = vunpack.c.l.b16 %v1919
        %v1959 = vunpack.c.l.b16 %v1920
        %v1960 = vunpack.c.l.b16 %v1921
        %v1961 = vunpack.c.l.b16 %v1922
        %v1962 = vunpack.c.l.b16 %v1923
        %v1963 = vunpack.c.l.b16 %v1924
        %v1964 = vunpack.c.l.b16 %v1925
        %v1965 = vunpack.c.l.b16 %v1926
        %v1966 = vunpack.c.l.b16 %v1927
        %v1967 = vunpack.c.l.b16 %v1928
        %v1968 = vpack.c.b16 %v1953, %v1952
        %v1969 = vpack.c.b16 %v1955, %v1954
        %v1970 = vpack.c.b16 %v1957, %v1956
        %v1971 = vpack.c.b16 %v1959, %v1958
        %v1972 = vpack.c.b16 %v1961, %v1960
        %v1973 = vpack.c.b16 %v1963, %v1962
        %v1974 = vpack.c.b16 %v1965, %v1964
        %v1975 = vpack.c.b16 %v1967, %v1966
        %1984 = vmatprep.subr.bf16.mxu0 0
        %1985 = vmatpush1.bf16.msra.mxu0 %v1968
        %1986 = vmatprep.subr.bf16.mxu0 0
        %1987 = vmatpush1.bf16.msra.mxu0 %v1969
        %1988 = vmatprep.subr.bf16.mxu0 0
        %1989 = vmatpush1.bf16.msra.mxu0 %v1970
        %1990 = vmatprep.subr.bf16.mxu0 0
        %1991 = vmatpush1.bf16.msra.mxu0 %v1971
        %1992 = vmatprep.subr.bf16.mxu0 0
        %1993 = vmatpush1.bf16.msra.mxu0 %v1972
        %1994 = vmatprep.subr.bf16.mxu0 0
        %1995 = vmatpush1.bf16.msra.mxu0 %v1973
        %1996 = vmatprep.subr.bf16.mxu0 0
        %1997 = vmatpush1.bf16.msra.mxu0 %v1974
        %1998 = vmatprep.subr.bf16.mxu0 0
        %1999 = vmatpush1.bf16.msra.mxu0 %v1975
        %2000 = vmatprep.subr.bf16.mxu0 0
        %2001 = vmatpush1.bf16.msra.mxu0 0
        %2002 = vmatprep.subr.bf16.mxu0 0
        %2003 = vmatpush1.bf16.msra.mxu0 0
        %2004 = vmatprep.subr.bf16.mxu0 0
        %2005 = vmatpush1.bf16.msra.mxu0 0
        %2006 = vmatprep.subr.bf16.mxu0 0
        %2007 = vmatpush1.bf16.msra.mxu0 0
        %2008 = vmatprep.subr.bf16.mxu0 0
        %2009 = vmatpush1.bf16.msra.mxu0 0
        %2010 = vmatprep.subr.bf16.mxu0 0
        %2011 = vmatpush1.bf16.msra.mxu0 0
        %2012 = vmatprep.subr.bf16.mxu0 0
        %2013 = vmatpush1.bf16.msra.mxu0 0
        %2014 = vmatprep.subr.bf16.mxu0 0
        %2015 = vmatpush1.bf16.msra.mxu0 0
        %2016 = vmatprep.mubr.bf16.mxu0 0
        %2017 = vmatmul.mubr.bf16.gmra.mrb[0].mxu0 %v1897
        %v2018 = vpop.f32.mrb[0].mxu0
        %v2019 = vadd.f32 %v1934, %v2018
        %v2020 = vpop.f32.mrb[0].mxu0
        %v2021 = vpop.f32.mrb[0].mxu0
        %v2022 = vadd.f32 %v1934, %v2021
        %v2023 = vpop.f32.mrb[0].mxu0
        %2024 = vmatprep.mubr.bf16.mxu0 0
        %2025 = vmatmul.mubr.bf16.gmra.mrb[0].mxu0 %v1898
        %v2026 = vpop.f32.mrb[0].mxu0
        %v2027 = vadd.f32 %v1934, %v2026
        %v2028 = vpop.f32.mrb[0].mxu0
        %v2029 = vpop.f32.mrb[0].mxu0
        %v2030 = vadd.f32 %v1934, %v2029
        %v2031 = vpop.f32.mrb[0].mxu0
        %2032 = vmatprep.mubr.bf16.mxu0 0
        %2033 = vmatmul.mubr.bf16.gmra.mrb[0].mxu0 %v1899
        %v2034 = vpop.f32.mrb[0].mxu0
        %v2035 = vadd.f32 %v1934, %v2034
        %v2036 = vpop.f32.mrb[0].mxu0
        %v2037 = vpop.f32.mrb[0].mxu0
        %v2038 = vadd.f32 %v1934, %v2037
        %v2039 = vpop.f32.mrb[0].mxu0
        %2040 = vmatprep.mubr.bf16.mxu0 0
        %2041 = vmatmul.mubr.bf16.gmra.mrb[0].mxu0 %v1900
        %v2042 = vpop.f32.mrb[0].mxu0
        %v2043 = vadd.f32 %v1934, %v2042
        %v2044 = vpop.f32.mrb[0].mxu0
        %v2045 = vpop.f32.mrb[0].mxu0
        %v2046 = vadd.f32 %v1934, %v2045
        %v2047 = vpop.f32.mrb[0].mxu0
        %2048 = vmatprep.mubr.bf16.mxu0 0
        %2049 = vmatmul.mubr.bf16.gmra.mrb[0].mxu0 %v1901
        %v2050 = vpop.f32.mrb[0].mxu0
        %v2051 = vadd.f32 %v1934, %v2050
        %v2052 = vpop.f32.mrb[0].mxu0
        %v2053 = vpop.f32.mrb[0].mxu0
        %v2054 = vadd.f32 %v1934, %v2053
        %v2055 = vpop.f32.mrb[0].mxu0
        %2056 = vmatprep.mubr.bf16.mxu0 0
        %2057 = vmatmul.mubr.bf16.gmra.mrb[0].mxu0 %v1902
        %v2058 = vpop.f32.mrb[0].mxu0
        %v2059 = vadd.f32 %v1934, %v2058
        %v2060 = vpop.f32.mrb[0].mxu0
        %v2061 = vpop.f32.mrb[0].mxu0
        %v2062 = vadd.f32 %v1934, %v2061
        %v2063 = vpop.f32.mrb[0].mxu0
        %2064 = vmatprep.mubr.bf16.mxu0 0
        %2065 = vmatmul.mubr.bf16.gmra.mrb[0].mxu0 %v1903
        %v2066 = vpop.f32.mrb[0].mxu0
        %v2067 = vadd.f32 %v1934, %v2066
        %v2068 = vpop.f32.mrb[0].mxu0
        %v2069 = vpop.f32.mrb[0].mxu0
        %v2070 = vadd.f32 %v1934, %v2069
        %v2071 = vpop.f32.mrb[0].mxu0
        %2072 = vmatprep.mubr.bf16.mxu0 0
        %2073 = vmatmul.mubr.bf16.gmra.mrb[0].mxu0 %v1904
        %v2074 = vpop.f32.mrb[0].mxu0
        %v2075 = vadd.f32 %v1934, %v2074
        %v2076 = vpop.f32.mrb[0].mxu0
        %v2077 = vpop.f32.mrb[0].mxu0
        %v2078 = vadd.f32 %v1934, %v2077
        %v2079 = vpop.f32.mrb[0].mxu0
        %2080 = vmatprep.mubr.bf16.mxu0 0
        %2081 = vmatmul.mubr.bf16.gmra.mrb[0].mxu0 %v1905
        %v2082 = vpop.f32.mrb[0].mxu0
        %v2083 = vadd.f32 %v1934, %v2082
        %v2084 = vpop.f32.mrb[0].mxu0
        %v2085 = vpop.f32.mrb[0].mxu0
        %v2086 = vadd.f32 %v1934, %v2085
        %v2087 = vpop.f32.mrb[0].mxu0
        %2088 = vmatprep.mubr.bf16.mxu0 0
        %2089 = vmatmul.mubr.bf16.gmra.mrb[0].mxu0 %v1906
        %v2090 = vpop.f32.mrb[0].mxu0
        %v2091 = vadd.f32 %v1934, %v2090
        %v2092 = vpop.f32.mrb[0].mxu0
        %v2093 = vpop.f32.mrb[0].mxu0
        %v2094 = vadd.f32 %v1934, %v2093
        %v2095 = vpop.f32.mrb[0].mxu0
        %2096 = vmatprep.mubr.bf16.mxu0 0
        %2097 = vmatmul.mubr.bf16.gmra.mrb[0].mxu0 %v1907
        %v2098 = vpop.f32.mrb[0].mxu0
        %v2099 = vadd.f32 %v1934, %v2098
        %v2100 = vpop.f32.mrb[0].mxu0
        %v2101 = vpop.f32.mrb[0].mxu0
        %v2102 = vadd.f32 %v1934, %v2101
        %v2103 = vpop.f32.mrb[0].mxu0
        %2104 = vmatprep.mubr.bf16.mxu0 0
        %2105 = vmatmul.mubr.bf16.gmra.mrb[0].mxu0 %v1908
        %v2106 = vpop.f32.mrb[0].mxu0
        %v2107 = vadd.f32 %v1934, %v2106
        %v2108 = vpop.f32.mrb[0].mxu0
        %v2109 = vpop.f32.mrb[0].mxu0
        %v2110 = vadd.f32 %v1934, %v2109
        %v2111 = vpop.f32.mrb[0].mxu0
        %2112 = vmatprep.mubr.bf16.mxu0 0
        %2113 = vmatmul.mubr.bf16.gmra.mrb[0].mxu0 %v1909
        %v2114 = vpop.f32.mrb[0].mxu0
        %v2115 = vadd.f32 %v1934, %v2114
        %v2116 = vpop.f32.mrb[0].mxu0
        %v2117 = vpop.f32.mrb[0].mxu0
        %v2118 = vadd.f32 %v1934, %v2117
        %v2119 = vpop.f32.mrb[0].mxu0
        %2120 = vmatprep.mubr.bf16.mxu0 0
        %2121 = vmatmul.mubr.bf16.gmra.mrb[0].mxu0 %v1910
        %v2122 = vpop.f32.mrb[0].mxu0
        %v2123 = vadd.f32 %v1934, %v2122
        %v2124 = vpop.f32.mrb[0].mxu0
        %v2125 = vpop.f32.mrb[0].mxu0
        %v2126 = vadd.f32 %v1934, %v2125
        %v2127 = vpop.f32.mrb[0].mxu0
        %2128 = vmatprep.mubr.bf16.mxu0 0
        %2129 = vmatmul.mubr.bf16.gmra.mrb[0].mxu0 %v1911
        %v2130 = vpop.f32.mrb[0].mxu0
        %v2131 = vadd.f32 %v1934, %v2130
        %v2132 = vpop.f32.mrb[0].mxu0
        %v2133 = vpop.f32.mrb[0].mxu0
        %v2134 = vadd.f32 %v1934, %v2133
        %v2135 = vpop.f32.mrb[0].mxu0
        %2136 = vmatprep.mubr.bf16.mxu0 0
        %2137 = vmatmul.mubr.bf16.gmra.mrb[0].mxu0 %v1912
        %v2138 = vpop.f32.mrb[0].mxu0
        %v2139 = vadd.f32 %v1934, %v2138
        %v2140 = vpop.f32.mrb[0].mxu0
        %v2141 = vpop.f32.mrb[0].mxu0
        %v2142 = vadd.f32 %v1934, %v2141
        %v2143 = vpop.f32.mrb[0].mxu0
        %2144 = vdwg.mxu0
        %v2145 = vxor.u32 %v2019, 2147483648
        %v2146 = vxor.u32 %v2022, 2147483648
        %v2147 = vxor.u32 %v2027, 2147483648
        %v2148 = vxor.u32 %v2030, 2147483648
        %v2149 = vxor.u32 %v2035, 2147483648
        %v2150 = vxor.u32 %v2038, 2147483648
        %v2151 = vxor.u32 %v2043, 2147483648
        %v2152 = vxor.u32 %v2046, 2147483648
        %v2153 = vxor.u32 %v2051, 2147483648
        %v2154 = vxor.u32 %v2054, 2147483648
        %v2155 = vxor.u32 %v2059, 2147483648
        %v2156 = vxor.u32 %v2062, 2147483648
        %v2157 = vxor.u32 %v2067, 2147483648
        %v2158 = vxor.u32 %v2070, 2147483648
        %v2159 = vxor.u32 %v2075, 2147483648
        %v2160 = vxor.u32 %v2078, 2147483648
        %v2161 = vxor.u32 %v2083, 2147483648
        %v2162 = vxor.u32 %v2086, 2147483648
        %v2163 = vxor.u32 %v2091, 2147483648
        %v2164 = vxor.u32 %v2094, 2147483648
        %v2165 = vxor.u32 %v2099, 2147483648
        %v2166 = vxor.u32 %v2102, 2147483648
        %v2167 = vxor.u32 %v2107, 2147483648
        %v2168 = vxor.u32 %v2110, 2147483648
        %v2169 = vxor.u32 %v2115, 2147483648
        %v2170 = vxor.u32 %v2118, 2147483648
        %v2171 = vxor.u32 %v2123, 2147483648
        %v2172 = vxor.u32 %v2126, 2147483648
        %v2173 = vxor.u32 %v2131, 2147483648
        %v2174 = vxor.u32 %v2134, 2147483648
        %v2175 = vxor.u32 %v2139, 2147483648
        %v2176 = vxor.u32 %v2142, 2147483648
        %v2177 = vmul.f32 %v2145, 1.442695
        %v2178 = vpow.pop %v2177
        %v2179 = vmul.f32 %v2146, 1.442695
        %v2180 = vpow.pop %v2179
        %v2181 = vmul.f32 %v2147, 1.442695
        %v2182 = vpow.pop %v2181
        %v2183 = vmul.f32 %v2148, 1.442695
        %v2184 = vpow.pop %v2183
        %v2185 = vmul.f32 %v2149, 1.442695
        %v2186 = vpow.pop %v2185
        %v2187 = vmul.f32 %v2150, 1.442695
        %v2188 = vpow.pop %v2187
        %v2189 = vmul.f32 %v2151, 1.442695
        %v2190 = vpow.pop %v2189
        %v2191 = vmul.f32 %v2152, 1.442695
        %v2192 = vpow.pop %v2191
        %v2193 = vmul.f32 %v2153, 1.442695
        %v2194 = vpow.pop %v2193
        %v2195 = vmul.f32 %v2154, 1.442695
        %v2196 = vpow.pop %v2195
        %v2197 = vmul.f32 %v2155, 1.442695
        %v2198 = vpow.pop %v2197
        %v2199 = vmul.f32 %v2156, 1.442695
        %v2200 = vpow.pop %v2199
        %v2201 = vmul.f32 %v2157, 1.442695
        %v2202 = vpow.pop %v2201
        %v2203 = vmul.f32 %v2158, 1.442695
        %v2204 = vpow.pop %v2203
        %v2205 = vmul.f32 %v2159, 1.442695
        %v2206 = vpow.pop %v2205
        %v2207 = vmul.f32 %v2160, 1.442695
        %v2208 = vpow.pop %v2207
        %v2209 = vmul.f32 %v2161, 1.442695
        %v2210 = vpow.pop %v2209
        %v2211 = vmul.f32 %v2162, 1.442695
        %v2212 = vpow.pop %v2211
        %v2213 = vmul.f32 %v2163, 1.442695
        %v2214 = vpow.pop %v2213
        %v2215 = vmul.f32 %v2164, 1.442695
        %v2216 = vpow.pop %v2215
        %v2217 = vmul.f32 %v2165, 1.442695
        %v2218 = vpow.pop %v2217
        %v2219 = vmul.f32 %v2166, 1.442695
        %v2220 = vpow.pop %v2219
        %v2221 = vmul.f32 %v2167, 1.442695
        %v2222 = vpow.pop %v2221
        %v2223 = vmul.f32 %v2168, 1.442695
        %v2224 = vpow.pop %v2223
        %v2225 = vmul.f32 %v2169, 1.442695
        %v2226 = vpow.pop %v2225
        %v2227 = vmul.f32 %v2170, 1.442695
        %v2228 = vpow.pop %v2227
        %v2229 = vmul.f32 %v2171, 1.442695
        %v2230 = vpow.pop %v2229
        %v2231 = vmul.f32 %v2172, 1.442695
        %v2232 = vpow.pop %v2231
        %v2233 = vmul.f32 %v2173, 1.442695
        %v2234 = vpow.pop %v2233
        %v2235 = vmul.f32 %v2174, 1.442695
        %v2236 = vpow.pop %v2235
        %v2237 = vmul.f32 %v2175, 1.442695
        %v2238 = vpow.pop %v2237
        %v2239 = vmul.f32 %v2176, 1.442695
        %v2240 = vpow.pop %v2239
        %v2241 = vadd.f32 %v2178, 1.0
        %v2242 = vadd.f32 %v2180, 1.0
        %v2243 = vadd.f32 %v2182, 1.0
        %v2244 = vadd.f32 %v2184, 1.0
        %v2245 = vadd.f32 %v2186, 1.0
        %v2246 = vadd.f32 %v2188, 1.0
        %v2247 = vadd.f32 %v2190, 1.0
        %v2248 = vadd.f32 %v2192, 1.0
        %v2249 = vadd.f32 %v2194, 1.0
        %v2250 = vadd.f32 %v2196, 1.0
        %v2251 = vadd.f32 %v2198, 1.0
        %v2252 = vadd.f32 %v2200, 1.0
        %v2253 = vadd.f32 %v2202, 1.0
        %v2254 = vadd.f32 %v2204, 1.0
        %v2255 = vadd.f32 %v2206, 1.0
        %v2256 = vadd.f32 %v2208, 1.0
        %v2257 = vadd.f32 %v2210, 1.0
        %v2258 = vadd.f32 %v2212, 1.0
        %v2259 = vadd.f32 %v2214, 1.0
        %v2260 = vadd.f32 %v2216, 1.0
        %v2261 = vadd.f32 %v2218, 1.0
        %v2262 = vadd.f32 %v2220, 1.0
        %v2263 = vadd.f32 %v2222, 1.0
        %v2264 = vadd.f32 %v2224, 1.0
        %v2265 = vadd.f32 %v2226, 1.0
        %v2266 = vadd.f32 %v2228, 1.0
        %v2267 = vadd.f32 %v2230, 1.0
        %v2268 = vadd.f32 %v2232, 1.0
        %v2269 = vadd.f32 %v2234, 1.0
        %v2270 = vadd.f32 %v2236, 1.0
        %v2271 = vadd.f32 %v2238, 1.0
        %v2272 = vadd.f32 %v2240, 1.0
        %v2273 = vrcp.pop %v2241
        %v2274 = vmul.f32 1.0, %v2273
        %v2275 = vrcp.pop %v2242
        %v2276 = vmul.f32 1.0, %v2275
        %v2277 = vrcp.pop %v2243
        %v2278 = vmul.f32 1.0, %v2277
        %v2279 = vrcp.pop %v2244
        %v2280 = vmul.f32 1.0, %v2279
        %v2281 = vrcp.pop %v2245
        %v2282 = vmul.f32 1.0, %v2281
        %v2283 = vrcp.pop %v2246
        %v2284 = vmul.f32 1.0, %v2283
        %v2285 = vrcp.pop %v2247
        %v2286 = vmul.f32 1.0, %v2285
        %v2287 = vrcp.pop %v2248
        %v2288 = vmul.f32 1.0, %v2287
        %v2289 = vrcp.pop %v2249
        %v2290 = vmul.f32 1.0, %v2289
        %v2291 = vrcp.pop %v2250
        %v2292 = vmul.f32 1.0, %v2291
        %v2293 = vrcp.pop %v2251
        %v2294 = vmul.f32 1.0, %v2293
        %v2295 = vrcp.pop %v2252
        %v2296 = vmul.f32 1.0, %v2295
        %v2297 = vrcp.pop %v2253
        %v2298 = vmul.f32 1.0, %v2297
        %v2299 = vrcp.pop %v2254
        %v2300 = vmul.f32 1.0, %v2299
        %v2301 = vrcp.pop %v2255
        %v2302 = vmul.f32 1.0, %v2301
        %v2303 = vrcp.pop %v2256
        %v2304 = vmul.f32 1.0, %v2303
        %v2305 = vrcp.pop %v2257
        %v2306 = vmul.f32 1.0, %v2305
        %v2307 = vrcp.pop %v2258
        %v2308 = vmul.f32 1.0, %v2307
        %v2309 = vrcp.pop %v2259
        %v2310 = vmul.f32 1.0, %v2309
        %v2311 = vrcp.pop %v2260
        %v2312 = vmul.f32 1.0, %v2311
        %v2313 = vrcp.pop %v2261
        %v2314 = vmul.f32 1.0, %v2313
        %v2315 = vrcp.pop %v2262
        %v2316 = vmul.f32 1.0, %v2315
        %v2317 = vrcp.pop %v2263
        %v2318 = vmul.f32 1.0, %v2317
        %v2319 = vrcp.pop %v2264
        %v2320 = vmul.f32 1.0, %v2319
        %v2321 = vrcp.pop %v2265
        %v2322 = vmul.f32 1.0, %v2321
        %v2323 = vrcp.pop %v2266
        %v2324 = vmul.f32 1.0, %v2323
        %v2325 = vrcp.pop %v2267
        %v2326 = vmul.f32 1.0, %v2325
        %v2327 = vrcp.pop %v2268
        %v2328 = vmul.f32 1.0, %v2327
        %v2329 = vrcp.pop %v2269
        %v2330 = vmul.f32 1.0, %v2329
        %v2331 = vrcp.pop %v2270
        %v2332 = vmul.f32 1.0, %v2331
        %v2333 = vrcp.pop %v2271
        %v2334 = vmul.f32 1.0, %v2333
        %v2335 = vrcp.pop %v2272
        %v2336 = vmul.f32 1.0, %v2335
        %v2337 = vpack.c.bf16 %v2276, %v2274
        %v2338 = vpack.c.bf16 %v2280, %v2278
        %v2339 = vpack.c.bf16 %v2284, %v2282
        %v2340 = vpack.c.bf16 %v2288, %v2286
        %v2341 = vpack.c.bf16 %v2292, %v2290
        %v2342 = vpack.c.bf16 %v2296, %v2294
        %v2343 = vpack.c.bf16 %v2300, %v2298
        %v2344 = vpack.c.bf16 %v2304, %v2302
        %v2345 = vpack.c.bf16 %v2308, %v2306
        %v2346 = vpack.c.bf16 %v2312, %v2310
        %v2347 = vpack.c.bf16 %v2316, %v2314
        %v2348 = vpack.c.bf16 %v2320, %v2318
        %v2349 = vpack.c.bf16 %v2324, %v2322
        %v2350 = vpack.c.bf16 %v2328, %v2326
        %v2351 = vpack.c.bf16 %v2332, %v2330
        %v2352 = vpack.c.bf16 %v2336, %v2334
        %s2353 = scalar_lea.vmem %s6, 64
        %v2354 = vld [vmem:[%s2353] sm:$0xf]
        %v2355 = vld [vmem:[%s2353 + $0x4] sm:$0xf]
        %v2356 = vld [vmem:[%s2353 + $0x8] sm:$0xf]
        %v2357 = vld [vmem:[%s2353 + $0xc] sm:$0xf]
        %v2358 = vld [vmem:[%s2353 + $0x10] sm:$0xf]
        %v2359 = vld [vmem:[%s2353 + $0x14] sm:$0xf]
        %v2360 = vld [vmem:[%s2353 + $0x18] sm:$0xf]
        %v2361 = vld [vmem:[%s2353 + $0x1c] sm:$0xf]
        %v2362 = vld [vmem:[%s2353 + $0x20] sm:$0xf]
        %v2363 = vld [vmem:[%s2353 + $0x24] sm:$0xf]
        %v2364 = vld [vmem:[%s2353 + $0x28] sm:$0xf]
        %v2365 = vld [vmem:[%s2353 + $0x2c] sm:$0xf]
        %v2366 = vld [vmem:[%s2353 + $0x30] sm:$0xf]
        %v2367 = vld [vmem:[%s2353 + $0x34] sm:$0xf]
        %v2368 = vld [vmem:[%s2353 + $0x38] sm:$0xf]
        %v2369 = vld [vmem:[%s2353 + $0x3c] sm:$0xf]
        %s2370 = scalar_lea.vmem %s7, 1
        %v2371 = vld [vmem:[%s2370] sm:$0x1]
        %v2373 = vlaneseq
        %v2374 = vshrl.u32 %v2373, 7
        %v2375 = vsub.s32 0, %v2374
        %v2376 = vrot.slane %v2371, %v2375
        %v2394 = vunpack.c.l.b16 %v2354
        %v2395 = vunpack.c.l.b16 %v2355
        %v2396 = vunpack.c.l.b16 %v2356
        %v2397 = vunpack.c.l.b16 %v2357
        %v2398 = vunpack.c.l.b16 %v2358
        %v2399 = vunpack.c.l.b16 %v2359
        %v2400 = vunpack.c.l.b16 %v2360
        %v2401 = vunpack.c.l.b16 %v2361
        %v2402 = vunpack.c.l.b16 %v2362
        %v2403 = vunpack.c.l.b16 %v2363
        %v2404 = vunpack.c.l.b16 %v2364
        %v2405 = vunpack.c.l.b16 %v2365
        %v2406 = vunpack.c.l.b16 %v2366
        %v2407 = vunpack.c.l.b16 %v2367
        %v2408 = vunpack.c.l.b16 %v2368
        %v2409 = vunpack.c.l.b16 %v2369
        %v2410 = vpack.c.b16 %v2395, %v2394
        %v2411 = vpack.c.b16 %v2397, %v2396
        %v2412 = vpack.c.b16 %v2399, %v2398
        %v2413 = vpack.c.b16 %v2401, %v2400
        %v2414 = vpack.c.b16 %v2403, %v2402
        %v2415 = vpack.c.b16 %v2405, %v2404
        %v2416 = vpack.c.b16 %v2407, %v2406
        %v2417 = vpack.c.b16 %v2409, %v2408
        %2426 = vmatprep.subr.bf16.mxu0 0
        %2427 = vmatpush1.bf16.msra.mxu0 %v2410
        %2428 = vmatprep.subr.bf16.mxu0 0
        %2429 = vmatpush1.bf16.msra.mxu0 %v2411
        %2430 = vmatprep.subr.bf16.mxu0 0
        %2431 = vmatpush1.bf16.msra.mxu0 %v2412
        %2432 = vmatprep.subr.bf16.mxu0 0
        %2433 = vmatpush1.bf16.msra.mxu0 %v2413
        %2434 = vmatprep.subr.bf16.mxu0 0
        %2435 = vmatpush1.bf16.msra.mxu0 %v2414
        %2436 = vmatprep.subr.bf16.mxu0 0
        %2437 = vmatpush1.bf16.msra.mxu0 %v2415
        %2438 = vmatprep.subr.bf16.mxu0 0
        %2439 = vmatpush1.bf16.msra.mxu0 %v2416
        %2440 = vmatprep.subr.bf16.mxu0 0
        %2441 = vmatpush1.bf16.msra.mxu0 %v2417
        %2442 = vmatprep.subr.bf16.mxu0 0
        %2443 = vmatpush1.bf16.msra.mxu0 0
        %2444 = vmatprep.subr.bf16.mxu0 0
        %2445 = vmatpush1.bf16.msra.mxu0 0
        %2446 = vmatprep.subr.bf16.mxu0 0
        %2447 = vmatpush1.bf16.msra.mxu0 0
        %2448 = vmatprep.subr.bf16.mxu0 0
        %2449 = vmatpush1.bf16.msra.mxu0 0
        %2450 = vmatprep.subr.bf16.mxu0 0
        %2451 = vmatpush1.bf16.msra.mxu0 0
        %2452 = vmatprep.subr.bf16.mxu0 0
        %2453 = vmatpush1.bf16.msra.mxu0 0
        %2454 = vmatprep.subr.bf16.mxu0 0
        %2455 = vmatpush1.bf16.msra.mxu0 0
        %2456 = vmatprep.subr.bf16.mxu0 0
        %2457 = vmatpush1.bf16.msra.mxu0 0
        %2458 = vmatprep.mubr.bf16.mxu0 0
        %2459 = vmatmul.mubr.bf16.gmra.mrb[0].mxu0 %v2337
        %v2460 = vpop.f32.mrb[0].mxu0
        %v2461 = vadd.f32 %v2376, %v2460
        %v2462 = vpop.f32.mrb[0].mxu0
        %v2463 = vpop.f32.mrb[0].mxu0
        %v2464 = vadd.f32 %v2376, %v2463
        %v2465 = vpop.f32.mrb[0].mxu0
        %2466 = vmatprep.mubr.bf16.mxu0 0
        %2467 = vmatmul.mubr.bf16.gmra.mrb[0].mxu0 %v2338
        %v2468 = vpop.f32.mrb[0].mxu0
        %v2469 = vadd.f32 %v2376, %v2468
        %v2470 = vpop.f32.mrb[0].mxu0
        %v2471 = vpop.f32.mrb[0].mxu0
        %v2472 = vadd.f32 %v2376, %v2471
        %v2473 = vpop.f32.mrb[0].mxu0
        %2474 = vmatprep.mubr.bf16.mxu0 0
        %2475 = vmatmul.mubr.bf16.gmra.mrb[0].mxu0 %v2339
        %v2476 = vpop.f32.mrb[0].mxu0
        %v2477 = vadd.f32 %v2376, %v2476
        %v2478 = vpop.f32.mrb[0].mxu0
        %v2479 = vpop.f32.mrb[0].mxu0
        %v2480 = vadd.f32 %v2376, %v2479
        %v2481 = vpop.f32.mrb[0].mxu0
        %2482 = vmatprep.mubr.bf16.mxu0 0
        %2483 = vmatmul.mubr.bf16.gmra.mrb[0].mxu0 %v2340
        %v2484 = vpop.f32.mrb[0].mxu0
        %v2485 = vadd.f32 %v2376, %v2484
        %v2486 = vpop.f32.mrb[0].mxu0
        %v2487 = vpop.f32.mrb[0].mxu0
        %v2488 = vadd.f32 %v2376, %v2487
        %v2489 = vpop.f32.mrb[0].mxu0
        %2490 = vmatprep.mubr.bf16.mxu0 0
        %2491 = vmatmul.mubr.bf16.gmra.mrb[0].mxu0 %v2341
        %v2492 = vpop.f32.mrb[0].mxu0
        %v2493 = vadd.f32 %v2376, %v2492
        %v2494 = vpop.f32.mrb[0].mxu0
        %v2495 = vpop.f32.mrb[0].mxu0
        %v2496 = vadd.f32 %v2376, %v2495
        %v2497 = vpop.f32.mrb[0].mxu0
        %2498 = vmatprep.mubr.bf16.mxu0 0
        %2499 = vmatmul.mubr.bf16.gmra.mrb[0].mxu0 %v2342
        %v2500 = vpop.f32.mrb[0].mxu0
        %v2501 = vadd.f32 %v2376, %v2500
        %v2502 = vpop.f32.mrb[0].mxu0
        %v2503 = vpop.f32.mrb[0].mxu0
        %v2504 = vadd.f32 %v2376, %v2503
        %v2505 = vpop.f32.mrb[0].mxu0
        %2506 = vmatprep.mubr.bf16.mxu0 0
        %2507 = vmatmul.mubr.bf16.gmra.mrb[0].mxu0 %v2343
        %v2508 = vpop.f32.mrb[0].mxu0
        %v2509 = vadd.f32 %v2376, %v2508
        %v2510 = vpop.f32.mrb[0].mxu0
        %v2511 = vpop.f32.mrb[0].mxu0
        %v2512 = vadd.f32 %v2376, %v2511
        %v2513 = vpop.f32.mrb[0].mxu0
        %2514 = vmatprep.mubr.bf16.mxu0 0
        %2515 = vmatmul.mubr.bf16.gmra.mrb[0].mxu0 %v2344
        %v2516 = vpop.f32.mrb[0].mxu0
        %v2517 = vadd.f32 %v2376, %v2516
        %v2518 = vpop.f32.mrb[0].mxu0
        %v2519 = vpop.f32.mrb[0].mxu0
        %v2520 = vadd.f32 %v2376, %v2519
        %v2521 = vpop.f32.mrb[0].mxu0
        %2522 = vmatprep.mubr.bf16.mxu0 0
        %2523 = vmatmul.mubr.bf16.gmra.mrb[0].mxu0 %v2345
        %v2524 = vpop.f32.mrb[0].mxu0
        %v2525 = vadd.f32 %v2376, %v2524
        %v2526 = vpop.f32.mrb[0].mxu0
        %v2527 = vpop.f32.mrb[0].mxu0
        %v2528 = vadd.f32 %v2376, %v2527
        %v2529 = vpop.f32.mrb[0].mxu0
        %2530 = vmatprep.mubr.bf16.mxu0 0
        %2531 = vmatmul.mubr.bf16.gmra.mrb[0].mxu0 %v2346
        %v2532 = vpop.f32.mrb[0].mxu0
        %v2533 = vadd.f32 %v2376, %v2532
        %v2534 = vpop.f32.mrb[0].mxu0
        %v2535 = vpop.f32.mrb[0].mxu0
        %v2536 = vadd.f32 %v2376, %v2535
        %v2537 = vpop.f32.mrb[0].mxu0
        %2538 = vmatprep.mubr.bf16.mxu0 0
        %2539 = vmatmul.mubr.bf16.gmra.mrb[0].mxu0 %v2347
        %v2540 = vpop.f32.mrb[0].mxu0
        %v2541 = vadd.f32 %v2376, %v2540
        %v2542 = vpop.f32.mrb[0].mxu0
        %v2543 = vpop.f32.mrb[0].mxu0
        %v2544 = vadd.f32 %v2376, %v2543
        %v2545 = vpop.f32.mrb[0].mxu0
        %2546 = vmatprep.mubr.bf16.mxu0 0
        %2547 = vmatmul.mubr.bf16.gmra.mrb[0].mxu0 %v2348
        %v2548 = vpop.f32.mrb[0].mxu0
        %v2549 = vadd.f32 %v2376, %v2548
        %v2550 = vpop.f32.mrb[0].mxu0
        %v2551 = vpop.f32.mrb[0].mxu0
        %v2552 = vadd.f32 %v2376, %v2551
        %v2553 = vpop.f32.mrb[0].mxu0
        %2554 = vmatprep.mubr.bf16.mxu0 0
        %2555 = vmatmul.mubr.bf16.gmra.mrb[0].mxu0 %v2349
        %v2556 = vpop.f32.mrb[0].mxu0
        %v2557 = vadd.f32 %v2376, %v2556
        %v2558 = vpop.f32.mrb[0].mxu0
        %v2559 = vpop.f32.mrb[0].mxu0
        %v2560 = vadd.f32 %v2376, %v2559
        %v2561 = vpop.f32.mrb[0].mxu0
        %2562 = vmatprep.mubr.bf16.mxu0 0
        %2563 = vmatmul.mubr.bf16.gmra.mrb[0].mxu0 %v2350
        %v2564 = vpop.f32.mrb[0].mxu0
        %v2565 = vadd.f32 %v2376, %v2564
        %v2566 = vpop.f32.mrb[0].mxu0
        %v2567 = vpop.f32.mrb[0].mxu0
        %v2568 = vadd.f32 %v2376, %v2567
        %v2569 = vpop.f32.mrb[0].mxu0
        %2570 = vmatprep.mubr.bf16.mxu0 0
        %2571 = vmatmul.mubr.bf16.gmra.mrb[0].mxu0 %v2351
        %v2572 = vpop.f32.mrb[0].mxu0
        %v2573 = vadd.f32 %v2376, %v2572
        %v2574 = vpop.f32.mrb[0].mxu0
        %v2575 = vpop.f32.mrb[0].mxu0
        %v2576 = vadd.f32 %v2376, %v2575
        %v2577 = vpop.f32.mrb[0].mxu0
        %2578 = vmatprep.mubr.bf16.mxu0 0
        %2579 = vmatmul.mubr.bf16.gmra.mrb[0].mxu0 %v2352
        %v2580 = vpop.f32.mrb[0].mxu0
        %v2581 = vadd.f32 %v2376, %v2580
        %v2582 = vpop.f32.mrb[0].mxu0
        %v2583 = vpop.f32.mrb[0].mxu0
        %v2584 = vadd.f32 %v2376, %v2583
        %v2585 = vpop.f32.mrb[0].mxu0
        %2586 = vdwg.mxu0
        %v2587 = vxor.u32 %v2461, 2147483648
        %v2588 = vxor.u32 %v2464, 2147483648
        %v2589 = vxor.u32 %v2469, 2147483648
        %v2590 = vxor.u32 %v2472, 2147483648
        %v2591 = vxor.u32 %v2477, 2147483648
        %v2592 = vxor.u32 %v2480, 2147483648
        %v2593 = vxor.u32 %v2485, 2147483648
        %v2594 = vxor.u32 %v2488, 2147483648
        %v2595 = vxor.u32 %v2493, 2147483648
        %v2596 = vxor.u32 %v2496, 2147483648
        %v2597 = vxor.u32 %v2501, 2147483648
        %v2598 = vxor.u32 %v2504, 2147483648
        %v2599 = vxor.u32 %v2509, 2147483648
        %v2600 = vxor.u32 %v2512, 2147483648
        %v2601 = vxor.u32 %v2517, 2147483648
        %v2602 = vxor.u32 %v2520, 2147483648
        %v2603 = vxor.u32 %v2525, 2147483648
        %v2604 = vxor.u32 %v2528, 2147483648
        %v2605 = vxor.u32 %v2533, 2147483648
        %v2606 = vxor.u32 %v2536, 2147483648
        %v2607 = vxor.u32 %v2541, 2147483648
        %v2608 = vxor.u32 %v2544, 2147483648
        %v2609 = vxor.u32 %v2549, 2147483648
        %v2610 = vxor.u32 %v2552, 2147483648
        %v2611 = vxor.u32 %v2557, 2147483648
        %v2612 = vxor.u32 %v2560, 2147483648
        %v2613 = vxor.u32 %v2565, 2147483648
        %v2614 = vxor.u32 %v2568, 2147483648
        %v2615 = vxor.u32 %v2573, 2147483648
        %v2616 = vxor.u32 %v2576, 2147483648
        %v2617 = vxor.u32 %v2581, 2147483648
        %v2618 = vxor.u32 %v2584, 2147483648
        %v2619 = vmul.f32 %v2587, 1.442695
        %v2620 = vpow.pop %v2619
        %v2621 = vmul.f32 %v2588, 1.442695
        %v2622 = vpow.pop %v2621
        %v2623 = vmul.f32 %v2589, 1.442695
        %v2624 = vpow.pop %v2623
        %v2625 = vmul.f32 %v2590, 1.442695
        %v2626 = vpow.pop %v2625
        %v2627 = vmul.f32 %v2591, 1.442695
        %v2628 = vpow.pop %v2627
        %v2629 = vmul.f32 %v2592, 1.442695
        %v2630 = vpow.pop %v2629
        %v2631 = vmul.f32 %v2593, 1.442695
        %v2632 = vpow.pop %v2631
        %v2633 = vmul.f32 %v2594, 1.442695
        %v2634 = vpow.pop %v2633
        %v2635 = vmul.f32 %v2595, 1.442695
        %v2636 = vpow.pop %v2635
        %v2637 = vmul.f32 %v2596, 1.442695
        %v2638 = vpow.pop %v2637
        %v2639 = vmul.f32 %v2597, 1.442695
        %v2640 = vpow.pop %v2639
        %v2641 = vmul.f32 %v2598, 1.442695
        %v2642 = vpow.pop %v2641
        %v2643 = vmul.f32 %v2599, 1.442695
        %v2644 = vpow.pop %v2643
        %v2645 = vmul.f32 %v2600, 1.442695
        %v2646 = vpow.pop %v2645
        %v2647 = vmul.f32 %v2601, 1.442695
        %v2648 = vpow.pop %v2647
        %v2649 = vmul.f32 %v2602, 1.442695
        %v2650 = vpow.pop %v2649
        %v2651 = vmul.f32 %v2603, 1.442695
        %v2652 = vpow.pop %v2651
        %v2653 = vmul.f32 %v2604, 1.442695
        %v2654 = vpow.pop %v2653
        %v2655 = vmul.f32 %v2605, 1.442695
        %v2656 = vpow.pop %v2655
        %v2657 = vmul.f32 %v2606, 1.442695
        %v2658 = vpow.pop %v2657
        %v2659 = vmul.f32 %v2607, 1.442695
        %v2660 = vpow.pop %v2659
        %v2661 = vmul.f32 %v2608, 1.442695
        %v2662 = vpow.pop %v2661
        %v2663 = vmul.f32 %v2609, 1.442695
        %v2664 = vpow.pop %v2663
        %v2665 = vmul.f32 %v2610, 1.442695
        %v2666 = vpow.pop %v2665
        %v2667 = vmul.f32 %v2611, 1.442695
        %v2668 = vpow.pop %v2667
        %v2669 = vmul.f32 %v2612, 1.442695
        %v2670 = vpow.pop %v2669
        %v2671 = vmul.f32 %v2613, 1.442695
        %v2672 = vpow.pop %v2671
        %v2673 = vmul.f32 %v2614, 1.442695
        %v2674 = vpow.pop %v2673
        %v2675 = vmul.f32 %v2615, 1.442695
        %v2676 = vpow.pop %v2675
        %v2677 = vmul.f32 %v2616, 1.442695
        %v2678 = vpow.pop %v2677
        %v2679 = vmul.f32 %v2617, 1.442695
        %v2680 = vpow.pop %v2679
        %v2681 = vmul.f32 %v2618, 1.442695
        %v2682 = vpow.pop %v2681
        %v2683 = vadd.f32 %v2620, 1.0
        %v2684 = vadd.f32 %v2622, 1.0
        %v2685 = vadd.f32 %v2624, 1.0
        %v2686 = vadd.f32 %v2626, 1.0
        %v2687 = vadd.f32 %v2628, 1.0
        %v2688 = vadd.f32 %v2630, 1.0
        %v2689 = vadd.f32 %v2632, 1.0
        %v2690 = vadd.f32 %v2634, 1.0
        %v2691 = vadd.f32 %v2636, 1.0
        %v2692 = vadd.f32 %v2638, 1.0
        %v2693 = vadd.f32 %v2640, 1.0
        %v2694 = vadd.f32 %v2642, 1.0
        %v2695 = vadd.f32 %v2644, 1.0
        %v2696 = vadd.f32 %v2646, 1.0
        %v2697 = vadd.f32 %v2648, 1.0
        %v2698 = vadd.f32 %v2650, 1.0
        %v2699 = vadd.f32 %v2652, 1.0
        %v2700 = vadd.f32 %v2654, 1.0
        %v2701 = vadd.f32 %v2656, 1.0
        %v2702 = vadd.f32 %v2658, 1.0
        %v2703 = vadd.f32 %v2660, 1.0
        %v2704 = vadd.f32 %v2662, 1.0
        %v2705 = vadd.f32 %v2664, 1.0
        %v2706 = vadd.f32 %v2666, 1.0
        %v2707 = vadd.f32 %v2668, 1.0
        %v2708 = vadd.f32 %v2670, 1.0
        %v2709 = vadd.f32 %v2672, 1.0
        %v2710 = vadd.f32 %v2674, 1.0
        %v2711 = vadd.f32 %v2676, 1.0
        %v2712 = vadd.f32 %v2678, 1.0
        %v2713 = vadd.f32 %v2680, 1.0
        %v2714 = vadd.f32 %v2682, 1.0
        %v2715 = vrcp.pop %v2683
        %v2716 = vmul.f32 1.0, %v2715
        %v2717 = vrcp.pop %v2684
        %v2718 = vmul.f32 1.0, %v2717
        %v2719 = vrcp.pop %v2685
        %v2720 = vmul.f32 1.0, %v2719
        %v2721 = vrcp.pop %v2686
        %v2722 = vmul.f32 1.0, %v2721
        %v2723 = vrcp.pop %v2687
        %v2724 = vmul.f32 1.0, %v2723
        %v2725 = vrcp.pop %v2688
        %v2726 = vmul.f32 1.0, %v2725
        %v2727 = vrcp.pop %v2689
        %v2728 = vmul.f32 1.0, %v2727
        %v2729 = vrcp.pop %v2690
        %v2730 = vmul.f32 1.0, %v2729
        %v2731 = vrcp.pop %v2691
        %v2732 = vmul.f32 1.0, %v2731
        %v2733 = vrcp.pop %v2692
        %v2734 = vmul.f32 1.0, %v2733
        %v2735 = vrcp.pop %v2693
        %v2736 = vmul.f32 1.0, %v2735
        %v2737 = vrcp.pop %v2694
        %v2738 = vmul.f32 1.0, %v2737
        %v2739 = vrcp.pop %v2695
        %v2740 = vmul.f32 1.0, %v2739
        %v2741 = vrcp.pop %v2696
        %v2742 = vmul.f32 1.0, %v2741
        %v2743 = vrcp.pop %v2697
        %v2744 = vmul.f32 1.0, %v2743
        %v2745 = vrcp.pop %v2698
        %v2746 = vmul.f32 1.0, %v2745
        %v2747 = vrcp.pop %v2699
        %v2748 = vmul.f32 1.0, %v2747
        %v2749 = vrcp.pop %v2700
        %v2750 = vmul.f32 1.0, %v2749
        %v2751 = vrcp.pop %v2701
        %v2752 = vmul.f32 1.0, %v2751
        %v2753 = vrcp.pop %v2702
        %v2754 = vmul.f32 1.0, %v2753
        %v2755 = vrcp.pop %v2703
        %v2756 = vmul.f32 1.0, %v2755
        %v2757 = vrcp.pop %v2704
        %v2758 = vmul.f32 1.0, %v2757
        %v2759 = vrcp.pop %v2705
        %v2760 = vmul.f32 1.0, %v2759
        %v2761 = vrcp.pop %v2706
        %v2762 = vmul.f32 1.0, %v2761
        %v2763 = vrcp.pop %v2707
        %v2764 = vmul.f32 1.0, %v2763
        %v2765 = vrcp.pop %v2708
        %v2766 = vmul.f32 1.0, %v2765
        %v2767 = vrcp.pop %v2709
        %v2768 = vmul.f32 1.0, %v2767
        %v2769 = vrcp.pop %v2710
        %v2770 = vmul.f32 1.0, %v2769
        %v2771 = vrcp.pop %v2711
        %v2772 = vmul.f32 1.0, %v2771
        %v2773 = vrcp.pop %v2712
        %v2774 = vmul.f32 1.0, %v2773
        %v2775 = vrcp.pop %v2713
        %v2776 = vmul.f32 1.0, %v2775
        %v2777 = vrcp.pop %v2714
        %v2778 = vmul.f32 1.0, %v2777
        %v2779 = vpack.c.bf16 %v2718, %v2716
        %v2780 = vpack.c.bf16 %v2722, %v2720
        %v2781 = vpack.c.bf16 %v2726, %v2724
        %v2782 = vpack.c.bf16 %v2730, %v2728
        %v2783 = vpack.c.bf16 %v2734, %v2732
        %v2784 = vpack.c.bf16 %v2738, %v2736
        %v2785 = vpack.c.bf16 %v2742, %v2740
        %v2786 = vpack.c.bf16 %v2746, %v2744
        %v2787 = vpack.c.bf16 %v2750, %v2748
        %v2788 = vpack.c.bf16 %v2754, %v2752
        %v2789 = vpack.c.bf16 %v2758, %v2756
        %v2790 = vpack.c.bf16 %v2762, %v2760
        %v2791 = vpack.c.bf16 %v2766, %v2764
        %v2792 = vpack.c.bf16 %v2770, %v2768
        %v2793 = vpack.c.bf16 %v2774, %v2772
        %v2794 = vpack.c.bf16 %v2778, %v2776
        %s2795 = scalar_lea.vmem %s6, 128
        %v2796 = vld [vmem:[%s2795] sm:$0xf]
        %v2797 = vld [vmem:[%s2795 + $0x4] sm:$0xf]
        %v2798 = vld [vmem:[%s2795 + $0x8] sm:$0xf]
        %v2799 = vld [vmem:[%s2795 + $0xc] sm:$0xf]
        %v2800 = vld [vmem:[%s2795 + $0x10] sm:$0xf]
        %v2801 = vld [vmem:[%s2795 + $0x14] sm:$0xf]
        %v2802 = vld [vmem:[%s2795 + $0x18] sm:$0xf]
        %v2803 = vld [vmem:[%s2795 + $0x1c] sm:$0xf]
        %v2804 = vld [vmem:[%s2795 + $0x20] sm:$0xf]
        %v2805 = vld [vmem:[%s2795 + $0x24] sm:$0xf]
        %v2806 = vld [vmem:[%s2795 + $0x28] sm:$0xf]
        %v2807 = vld [vmem:[%s2795 + $0x2c] sm:$0xf]
        %v2808 = vld [vmem:[%s2795 + $0x30] sm:$0xf]
        %v2809 = vld [vmem:[%s2795 + $0x34] sm:$0xf]
        %v2810 = vld [vmem:[%s2795 + $0x38] sm:$0xf]
        %v2811 = vld [vmem:[%s2795 + $0x3c] sm:$0xf]
        %s2812 = scalar_lea.vmem %s7, 2
        %v2813 = vld [vmem:[%s2812] sm:$0x1]
        %v2815 = vlaneseq
        %v2816 = vshrl.u32 %v2815, 7
        %v2817 = vsub.s32 0, %v2816
        %v2818 = vrot.slane %v2813, %v2817
        %v2836 = vunpack.c.l.b16 %v2796
        %v2837 = vunpack.c.l.b16 %v2797
        %v2838 = vunpack.c.l.b16 %v2798
        %v2839 = vunpack.c.l.b16 %v2799
        %v2840 = vunpack.c.l.b16 %v2800
        %v2841 = vunpack.c.l.b16 %v2801
        %v2842 = vunpack.c.l.b16 %v2802
        %v2843 = vunpack.c.l.b16 %v2803
        %v2844 = vunpack.c.l.b16 %v2804
        %v2845 = vunpack.c.l.b16 %v2805
        %v2846 = vunpack.c.l.b16 %v2806
        %v2847 = vunpack.c.l.b16 %v2807
        %v2848 = vunpack.c.l.b16 %v2808
        %v2849 = vunpack.c.l.b16 %v2809
        %v2850 = vunpack.c.l.b16 %v2810
        %v2851 = vunpack.c.l.b16 %v2811
        %v2852 = vpack.c.b16 %v2837, %v2836
        %v2853 = vpack.c.b16 %v2839, %v2838
        %v2854 = vpack.c.b16 %v2841, %v2840
        %v2855 = vpack.c.b16 %v2843, %v2842
        %v2856 = vpack.c.b16 %v2845, %v2844
        %v2857 = vpack.c.b16 %v2847, %v2846
        %v2858 = vpack.c.b16 %v2849, %v2848
        %v2859 = vpack.c.b16 %v2851, %v2850
        %2868 = vmatprep.subr.bf16.mxu0 0
        %2869 = vmatpush1.bf16.msra.mxu0 %v2852
        %2870 = vmatprep.subr.bf16.mxu0 0
        %2871 = vmatpush1.bf16.msra.mxu0 %v2853
        %2872 = vmatprep.subr.bf16.mxu0 0
        %2873 = vmatpush1.bf16.msra.mxu0 %v2854
        %2874 = vmatprep.subr.bf16.mxu0 0
        %2875 = vmatpush1.bf16.msra.mxu0 %v2855
        %2876 = vmatprep.subr.bf16.mxu0 0
        %2877 = vmatpush1.bf16.msra.mxu0 %v2856
        %2878 = vmatprep.subr.bf16.mxu0 0
        %2879 = vmatpush1.bf16.msra.mxu0 %v2857
        %2880 = vmatprep.subr.bf16.mxu0 0
        %2881 = vmatpush1.bf16.msra.mxu0 %v2858
        %2882 = vmatprep.subr.bf16.mxu0 0
        %2883 = vmatpush1.bf16.msra.mxu0 %v2859
        %2884 = vmatprep.subr.bf16.mxu0 0
        %2885 = vmatpush1.bf16.msra.mxu0 0
        %2886 = vmatprep.subr.bf16.mxu0 0
        %2887 = vmatpush1.bf16.msra.mxu0 0
        %2888 = vmatprep.subr.bf16.mxu0 0
        %2889 = vmatpush1.bf16.msra.mxu0 0
        %2890 = vmatprep.subr.bf16.mxu0 0
        %2891 = vmatpush1.bf16.msra.mxu0 0
        %2892 = vmatprep.subr.bf16.mxu0 0
        %2893 = vmatpush1.bf16.msra.mxu0 0
        %2894 = vmatprep.subr.bf16.mxu0 0
        %2895 = vmatpush1.bf16.msra.mxu0 0
        %2896 = vmatprep.subr.bf16.mxu0 0
        %2897 = vmatpush1.bf16.msra.mxu0 0
        %2898 = vmatprep.subr.bf16.mxu0 0
        %2899 = vmatpush1.bf16.msra.mxu0 0
        %2900 = vmatprep.mubr.bf16.mxu0 0
        %2901 = vmatmul.mubr.bf16.gmra.mrb[0].mxu0 %v2779
        %v2902 = vpop.f32.mrb[0].mxu0
        %v2903 = vadd.f32 %v2818, %v2902
        %v2904 = vpop.f32.mrb[0].mxu0
        %v2905 = vpop.f32.mrb[0].mxu0
        %v2906 = vadd.f32 %v2818, %v2905
        %v2907 = vpop.f32.mrb[0].mxu0
        %2908 = vmatprep.mubr.bf16.mxu0 0
        %2909 = vmatmul.mubr.bf16.gmra.mrb[0].mxu0 %v2780
        %v2910 = vpop.f32.mrb[0].mxu0
        %v2911 = vadd.f32 %v2818, %v2910
        %v2912 = vpop.f32.mrb[0].mxu0
        %v2913 = vpop.f32.mrb[0].mxu0
        %v2914 = vadd.f32 %v2818, %v2913
        %v2915 = vpop.f32.mrb[0].mxu0
        %2916 = vmatprep.mubr.bf16.mxu0 0
        %2917 = vmatmul.mubr.bf16.gmra.mrb[0].mxu0 %v2781
        %v2918 = vpop.f32.mrb[0].mxu0
        %v2919 = vadd.f32 %v2818, %v2918
        %v2920 = vpop.f32.mrb[0].mxu0
        %v2921 = vpop.f32.mrb[0].mxu0
        %v2922 = vadd.f32 %v2818, %v2921
        %v2923 = vpop.f32.mrb[0].mxu0
        %2924 = vmatprep.mubr.bf16.mxu0 0
        %2925 = vmatmul.mubr.bf16.gmra.mrb[0].mxu0 %v2782
        %v2926 = vpop.f32.mrb[0].mxu0
        %v2927 = vadd.f32 %v2818, %v2926
        %v2928 = vpop.f32.mrb[0].mxu0
        %v2929 = vpop.f32.mrb[0].mxu0
        %v2930 = vadd.f32 %v2818, %v2929
        %v2931 = vpop.f32.mrb[0].mxu0
        %2932 = vmatprep.mubr.bf16.mxu0 0
        %2933 = vmatmul.mubr.bf16.gmra.mrb[0].mxu0 %v2783
        %v2934 = vpop.f32.mrb[0].mxu0
        %v2935 = vadd.f32 %v2818, %v2934
        %v2936 = vpop.f32.mrb[0].mxu0
        %v2937 = vpop.f32.mrb[0].mxu0
        %v2938 = vadd.f32 %v2818, %v2937
        %v2939 = vpop.f32.mrb[0].mxu0
        %2940 = vmatprep.mubr.bf16.mxu0 0
        %2941 = vmatmul.mubr.bf16.gmra.mrb[0].mxu0 %v2784
        %v2942 = vpop.f32.mrb[0].mxu0
        %v2943 = vadd.f32 %v2818, %v2942
        %v2944 = vpop.f32.mrb[0].mxu0
        %v2945 = vpop.f32.mrb[0].mxu0
        %v2946 = vadd.f32 %v2818, %v2945
        %v2947 = vpop.f32.mrb[0].mxu0
        %2948 = vmatprep.mubr.bf16.mxu0 0
        %2949 = vmatmul.mubr.bf16.gmra.mrb[0].mxu0 %v2785
        %v2950 = vpop.f32.mrb[0].mxu0
        %v2951 = vadd.f32 %v2818, %v2950
        %v2952 = vpop.f32.mrb[0].mxu0
        %v2953 = vpop.f32.mrb[0].mxu0
        %v2954 = vadd.f32 %v2818, %v2953
        %v2955 = vpop.f32.mrb[0].mxu0
        %2956 = vmatprep.mubr.bf16.mxu0 0
        %2957 = vmatmul.mubr.bf16.gmra.mrb[0].mxu0 %v2786
        %v2958 = vpop.f32.mrb[0].mxu0
        %v2959 = vadd.f32 %v2818, %v2958
        %v2960 = vpop.f32.mrb[0].mxu0
        %v2961 = vpop.f32.mrb[0].mxu0
        %v2962 = vadd.f32 %v2818, %v2961
        %v2963 = vpop.f32.mrb[0].mxu0
        %2964 = vmatprep.mubr.bf16.mxu0 0
        %2965 = vmatmul.mubr.bf16.gmra.mrb[0].mxu0 %v2787
        %v2966 = vpop.f32.mrb[0].mxu0
        %v2967 = vadd.f32 %v2818, %v2966
        %v2968 = vpop.f32.mrb[0].mxu0
        %v2969 = vpop.f32.mrb[0].mxu0
        %v2970 = vadd.f32 %v2818, %v2969
        %v2971 = vpop.f32.mrb[0].mxu0
        %2972 = vmatprep.mubr.bf16.mxu0 0
        %2973 = vmatmul.mubr.bf16.gmra.mrb[0].mxu0 %v2788
        %v2974 = vpop.f32.mrb[0].mxu0
        %v2975 = vadd.f32 %v2818, %v2974
        %v2976 = vpop.f32.mrb[0].mxu0
        %v2977 = vpop.f32.mrb[0].mxu0
        %v2978 = vadd.f32 %v2818, %v2977
        %v2979 = vpop.f32.mrb[0].mxu0
        %2980 = vmatprep.mubr.bf16.mxu0 0
        %2981 = vmatmul.mubr.bf16.gmra.mrb[0].mxu0 %v2789
        %v2982 = vpop.f32.mrb[0].mxu0
        %v2983 = vadd.f32 %v2818, %v2982
        %v2984 = vpop.f32.mrb[0].mxu0
        %v2985 = vpop.f32.mrb[0].mxu0
        %v2986 = vadd.f32 %v2818, %v2985
        %v2987 = vpop.f32.mrb[0].mxu0
        %2988 = vmatprep.mubr.bf16.mxu0 0
        %2989 = vmatmul.mubr.bf16.gmra.mrb[0].mxu0 %v2790
        %v2990 = vpop.f32.mrb[0].mxu0
        %v2991 = vadd.f32 %v2818, %v2990
        %v2992 = vpop.f32.mrb[0].mxu0
        %v2993 = vpop.f32.mrb[0].mxu0
        %v2994 = vadd.f32 %v2818, %v2993
        %v2995 = vpop.f32.mrb[0].mxu0
        %2996 = vmatprep.mubr.bf16.mxu0 0
        %2997 = vmatmul.mubr.bf16.gmra.mrb[0].mxu0 %v2791
        %v2998 = vpop.f32.mrb[0].mxu0
        %v2999 = vadd.f32 %v2818, %v2998
        %v3000 = vpop.f32.mrb[0].mxu0
        %v3001 = vpop.f32.mrb[0].mxu0
        %v3002 = vadd.f32 %v2818, %v3001
        %v3003 = vpop.f32.mrb[0].mxu0
        %3004 = vmatprep.mubr.bf16.mxu0 0
        %3005 = vmatmul.mubr.bf16.gmra.mrb[0].mxu0 %v2792
        %v3006 = vpop.f32.mrb[0].mxu0
        %v3007 = vadd.f32 %v2818, %v3006
        %v3008 = vpop.f32.mrb[0].mxu0
        %v3009 = vpop.f32.mrb[0].mxu0
        %v3010 = vadd.f32 %v2818, %v3009
        %v3011 = vpop.f32.mrb[0].mxu0
        %3012 = vmatprep.mubr.bf16.mxu0 0
        %3013 = vmatmul.mubr.bf16.gmra.mrb[0].mxu0 %v2793
        %v3014 = vpop.f32.mrb[0].mxu0
        %v3015 = vadd.f32 %v2818, %v3014
        %v3016 = vpop.f32.mrb[0].mxu0
        %v3017 = vpop.f32.mrb[0].mxu0
        %v3018 = vadd.f32 %v2818, %v3017
        %v3019 = vpop.f32.mrb[0].mxu0
        %3020 = vmatprep.mubr.bf16.mxu0 0
        %3021 = vmatmul.mubr.bf16.gmra.mrb[0].mxu0 %v2794
        %v3022 = vpop.f32.mrb[0].mxu0
        %v3023 = vadd.f32 %v2818, %v3022
        %v3024 = vpop.f32.mrb[0].mxu0
        %v3025 = vpop.f32.mrb[0].mxu0
        %v3026 = vadd.f32 %v2818, %v3025
        %v3027 = vpop.f32.mrb[0].mxu0
        %3028 = vdwg.mxu0
        %v3029 = vxor.u32 %v2903, 2147483648
        %v3030 = vxor.u32 %v2906, 2147483648
        %v3031 = vxor.u32 %v2911, 2147483648
        %v3032 = vxor.u32 %v2914, 2147483648
        %v3033 = vxor.u32 %v2919, 2147483648
        %v3034 = vxor.u32 %v2922, 2147483648
        %v3035 = vxor.u32 %v2927, 2147483648
        %v3036 = vxor.u32 %v2930, 2147483648
        %v3037 = vxor.u32 %v2935, 2147483648
        %v3038 = vxor.u32 %v2938, 2147483648
        %v3039 = vxor.u32 %v2943, 2147483648
        %v3040 = vxor.u32 %v2946, 2147483648
        %v3041 = vxor.u32 %v2951, 2147483648
        %v3042 = vxor.u32 %v2954, 2147483648
        %v3043 = vxor.u32 %v2959, 2147483648
        %v3044 = vxor.u32 %v2962, 2147483648
        %v3045 = vxor.u32 %v2967, 2147483648
        %v3046 = vxor.u32 %v2970, 2147483648
        %v3047 = vxor.u32 %v2975, 2147483648
        %v3048 = vxor.u32 %v2978, 2147483648
        %v3049 = vxor.u32 %v2983, 2147483648
        %v3050 = vxor.u32 %v2986, 2147483648
        %v3051 = vxor.u32 %v2991, 2147483648
        %v3052 = vxor.u32 %v2994, 2147483648
        %v3053 = vxor.u32 %v2999, 2147483648
        %v3054 = vxor.u32 %v3002, 2147483648
        %v3055 = vxor.u32 %v3007, 2147483648
        %v3056 = vxor.u32 %v3010, 2147483648
        %v3057 = vxor.u32 %v3015, 2147483648
        %v3058 = vxor.u32 %v3018, 2147483648
        %v3059 = vxor.u32 %v3023, 2147483648
        %v3060 = vxor.u32 %v3026, 2147483648
        %v3061 = vmul.f32 %v3029, 1.442695
        %v3062 = vpow.pop %v3061
        %v3063 = vmul.f32 %v3030, 1.442695
        %v3064 = vpow.pop %v3063
        %v3065 = vmul.f32 %v3031, 1.442695
        %v3066 = vpow.pop %v3065
        %v3067 = vmul.f32 %v3032, 1.442695
        %v3068 = vpow.pop %v3067
        %v3069 = vmul.f32 %v3033, 1.442695
        %v3070 = vpow.pop %v3069
        %v3071 = vmul.f32 %v3034, 1.442695
        %v3072 = vpow.pop %v3071
        %v3073 = vmul.f32 %v3035, 1.442695
        %v3074 = vpow.pop %v3073
        %v3075 = vmul.f32 %v3036, 1.442695
        %v3076 = vpow.pop %v3075
        %v3077 = vmul.f32 %v3037, 1.442695
        %v3078 = vpow.pop %v3077
        %v3079 = vmul.f32 %v3038, 1.442695
        %v3080 = vpow.pop %v3079
        %v3081 = vmul.f32 %v3039, 1.442695
        %v3082 = vpow.pop %v3081
        %v3083 = vmul.f32 %v3040, 1.442695
        %v3084 = vpow.pop %v3083
        %v3085 = vmul.f32 %v3041, 1.442695
        %v3086 = vpow.pop %v3085
        %v3087 = vmul.f32 %v3042, 1.442695
        %v3088 = vpow.pop %v3087
        %v3089 = vmul.f32 %v3043, 1.442695
        %v3090 = vpow.pop %v3089
        %v3091 = vmul.f32 %v3044, 1.442695
        %v3092 = vpow.pop %v3091
        %v3093 = vmul.f32 %v3045, 1.442695
        %v3094 = vpow.pop %v3093
        %v3095 = vmul.f32 %v3046, 1.442695
        %v3096 = vpow.pop %v3095
        %v3097 = vmul.f32 %v3047, 1.442695
        %v3098 = vpow.pop %v3097
        %v3099 = vmul.f32 %v3048, 1.442695
        %v3100 = vpow.pop %v3099
        %v3101 = vmul.f32 %v3049, 1.442695
        %v3102 = vpow.pop %v3101
        %v3103 = vmul.f32 %v3050, 1.442695
        %v3104 = vpow.pop %v3103
        %v3105 = vmul.f32 %v3051, 1.442695
        %v3106 = vpow.pop %v3105
        %v3107 = vmul.f32 %v3052, 1.442695
        %v3108 = vpow.pop %v3107
        %v3109 = vmul.f32 %v3053, 1.442695
        %v3110 = vpow.pop %v3109
        %v3111 = vmul.f32 %v3054, 1.442695
        %v3112 = vpow.pop %v3111
        %v3113 = vmul.f32 %v3055, 1.442695
        %v3114 = vpow.pop %v3113
        %v3115 = vmul.f32 %v3056, 1.442695
        %v3116 = vpow.pop %v3115
        %v3117 = vmul.f32 %v3057, 1.442695
        %v3118 = vpow.pop %v3117
        %v3119 = vmul.f32 %v3058, 1.442695
        %v3120 = vpow.pop %v3119
        %v3121 = vmul.f32 %v3059, 1.442695
        %v3122 = vpow.pop %v3121
        %v3123 = vmul.f32 %v3060, 1.442695
        %v3124 = vpow.pop %v3123
        %v3125 = vadd.f32 %v3062, 1.0
        %v3126 = vadd.f32 %v3064, 1.0
        %v3127 = vadd.f32 %v3066, 1.0
        %v3128 = vadd.f32 %v3068, 1.0
        %v3129 = vadd.f32 %v3070, 1.0
        %v3130 = vadd.f32 %v3072, 1.0
        %v3131 = vadd.f32 %v3074, 1.0
        %v3132 = vadd.f32 %v3076, 1.0
        %v3133 = vadd.f32 %v3078, 1.0
        %v3134 = vadd.f32 %v3080, 1.0
        %v3135 = vadd.f32 %v3082, 1.0
        %v3136 = vadd.f32 %v3084, 1.0
        %v3137 = vadd.f32 %v3086, 1.0
        %v3138 = vadd.f32 %v3088, 1.0
        %v3139 = vadd.f32 %v3090, 1.0
        %v3140 = vadd.f32 %v3092, 1.0
        %v3141 = vadd.f32 %v3094, 1.0
        %v3142 = vadd.f32 %v3096, 1.0
        %v3143 = vadd.f32 %v3098, 1.0
        %v3144 = vadd.f32 %v3100, 1.0
        %v3145 = vadd.f32 %v3102, 1.0
        %v3146 = vadd.f32 %v3104, 1.0
        %v3147 = vadd.f32 %v3106, 1.0
        %v3148 = vadd.f32 %v3108, 1.0
        %v3149 = vadd.f32 %v3110, 1.0
        %v3150 = vadd.f32 %v3112, 1.0
        %v3151 = vadd.f32 %v3114, 1.0
        %v3152 = vadd.f32 %v3116, 1.0
        %v3153 = vadd.f32 %v3118, 1.0
        %v3154 = vadd.f32 %v3120, 1.0
        %v3155 = vadd.f32 %v3122, 1.0
        %v3156 = vadd.f32 %v3124, 1.0
        %v3157 = vrcp.pop %v3125
        %v3158 = vmul.f32 1.0, %v3157
        %v3159 = vrcp.pop %v3126
        %v3160 = vmul.f32 1.0, %v3159
        %v3161 = vrcp.pop %v3127
        %v3162 = vmul.f32 1.0, %v3161
        %v3163 = vrcp.pop %v3128
        %v3164 = vmul.f32 1.0, %v3163
        %v3165 = vrcp.pop %v3129
        %v3166 = vmul.f32 1.0, %v3165
        %v3167 = vrcp.pop %v3130
        %v3168 = vmul.f32 1.0, %v3167
        %v3169 = vrcp.pop %v3131
        %v3170 = vmul.f32 1.0, %v3169
        %v3171 = vrcp.pop %v3132
        %v3172 = vmul.f32 1.0, %v3171
        %v3173 = vrcp.pop %v3133
        %v3174 = vmul.f32 1.0, %v3173
        %v3175 = vrcp.pop %v3134
        %v3176 = vmul.f32 1.0, %v3175
        %v3177 = vrcp.pop %v3135
        %v3178 = vmul.f32 1.0, %v3177
        %v3179 = vrcp.pop %v3136
        %v3180 = vmul.f32 1.0, %v3179
        %v3181 = vrcp.pop %v3137
        %v3182 = vmul.f32 1.0, %v3181
        %v3183 = vrcp.pop %v3138
        %v3184 = vmul.f32 1.0, %v3183
        %v3185 = vrcp.pop %v3139
        %v3186 = vmul.f32 1.0, %v3185
        %v3187 = vrcp.pop %v3140
        %v3188 = vmul.f32 1.0, %v3187
        %v3189 = vrcp.pop %v3141
        %v3190 = vmul.f32 1.0, %v3189
        %v3191 = vrcp.pop %v3142
        %v3192 = vmul.f32 1.0, %v3191
        %v3193 = vrcp.pop %v3143
        %v3194 = vmul.f32 1.0, %v3193
        %v3195 = vrcp.pop %v3144
        %v3196 = vmul.f32 1.0, %v3195
        %v3197 = vrcp.pop %v3145
        %v3198 = vmul.f32 1.0, %v3197
        %v3199 = vrcp.pop %v3146
        %v3200 = vmul.f32 1.0, %v3199
        %v3201 = vrcp.pop %v3147
        %v3202 = vmul.f32 1.0, %v3201
        %v3203 = vrcp.pop %v3148
        %v3204 = vmul.f32 1.0, %v3203
        %v3205 = vrcp.pop %v3149
        %v3206 = vmul.f32 1.0, %v3205
        %v3207 = vrcp.pop %v3150
        %v3208 = vmul.f32 1.0, %v3207
        %v3209 = vrcp.pop %v3151
        %v3210 = vmul.f32 1.0, %v3209
        %v3211 = vrcp.pop %v3152
        %v3212 = vmul.f32 1.0, %v3211
        %v3213 = vrcp.pop %v3153
        %v3214 = vmul.f32 1.0, %v3213
        %v3215 = vrcp.pop %v3154
        %v3216 = vmul.f32 1.0, %v3215
        %v3217 = vrcp.pop %v3155
        %v3218 = vmul.f32 1.0, %v3217
        %v3219 = vrcp.pop %v3156
        %v3220 = vmul.f32 1.0, %v3219
        %v3221 = vpack.c.bf16 %v3160, %v3158
        %v3222 = vpack.c.bf16 %v3164, %v3162
        %v3223 = vpack.c.bf16 %v3168, %v3166
        %v3224 = vpack.c.bf16 %v3172, %v3170
        %v3225 = vpack.c.bf16 %v3176, %v3174
        %v3226 = vpack.c.bf16 %v3180, %v3178
        %v3227 = vpack.c.bf16 %v3184, %v3182
        %v3228 = vpack.c.bf16 %v3188, %v3186
        %v3229 = vpack.c.bf16 %v3192, %v3190
        %v3230 = vpack.c.bf16 %v3196, %v3194
        %v3231 = vpack.c.bf16 %v3200, %v3198
        %v3232 = vpack.c.bf16 %v3204, %v3202
        %v3233 = vpack.c.bf16 %v3208, %v3206
        %v3234 = vpack.c.bf16 %v3212, %v3210
        %v3235 = vpack.c.bf16 %v3216, %v3214
        %v3236 = vpack.c.bf16 %v3220, %v3218
        %s3237 = scalar_lea.vmem %s6, 192
        %v3238 = vld [vmem:[%s3237] sm:$0xf]
        %v3239 = vld [vmem:[%s3237 + $0x4] sm:$0xf]
        %v3240 = vld [vmem:[%s3237 + $0x8] sm:$0xf]
        %v3241 = vld [vmem:[%s3237 + $0xc] sm:$0xf]
        %v3242 = vld [vmem:[%s3237 + $0x10] sm:$0xf]
        %v3243 = vld [vmem:[%s3237 + $0x14] sm:$0xf]
        %v3244 = vld [vmem:[%s3237 + $0x18] sm:$0xf]
        %v3245 = vld [vmem:[%s3237 + $0x1c] sm:$0xf]
        %v3246 = vld [vmem:[%s3237 + $0x20] sm:$0xf]
        %v3247 = vld [vmem:[%s3237 + $0x24] sm:$0xf]
        %v3248 = vld [vmem:[%s3237 + $0x28] sm:$0xf]
        %v3249 = vld [vmem:[%s3237 + $0x2c] sm:$0xf]
        %v3250 = vld [vmem:[%s3237 + $0x30] sm:$0xf]
        %v3251 = vld [vmem:[%s3237 + $0x34] sm:$0xf]
        %v3252 = vld [vmem:[%s3237 + $0x38] sm:$0xf]
        %v3253 = vld [vmem:[%s3237 + $0x3c] sm:$0xf]
        %s3254 = scalar_lea.vmem %s7, 3
        %v3255 = vld [vmem:[%s3254] sm:$0x1]
        %v3257 = vlaneseq
        %v3258 = vshrl.u32 %v3257, 7
        %v3259 = vsub.s32 0, %v3258
        %v3260 = vrot.slane %v3255, %v3259
        %v3278 = vunpack.c.l.b16 %v3238
        %v3279 = vunpack.c.l.b16 %v3239
        %v3280 = vunpack.c.l.b16 %v3240
        %v3281 = vunpack.c.l.b16 %v3241
        %v3282 = vunpack.c.l.b16 %v3242
        %v3283 = vunpack.c.l.b16 %v3243
        %v3284 = vunpack.c.l.b16 %v3244
        %v3285 = vunpack.c.l.b16 %v3245
        %v3286 = vunpack.c.l.b16 %v3246
        %v3287 = vunpack.c.l.b16 %v3247
        %v3288 = vunpack.c.l.b16 %v3248
        %v3289 = vunpack.c.l.b16 %v3249
        %v3290 = vunpack.c.l.b16 %v3250
        %v3291 = vunpack.c.l.b16 %v3251
        %v3292 = vunpack.c.l.b16 %v3252
        %v3293 = vunpack.c.l.b16 %v3253
        %v3294 = vpack.c.b16 %v3279, %v3278
        %v3295 = vpack.c.b16 %v3281, %v3280
        %v3296 = vpack.c.b16 %v3283, %v3282
        %v3297 = vpack.c.b16 %v3285, %v3284
        %v3298 = vpack.c.b16 %v3287, %v3286
        %v3299 = vpack.c.b16 %v3289, %v3288
        %v3300 = vpack.c.b16 %v3291, %v3290
        %v3301 = vpack.c.b16 %v3293, %v3292
        %3310 = vmatprep.subr.bf16.mxu0 0
        %3311 = vmatpush1.bf16.msra.mxu0 %v3294
        %3312 = vmatprep.subr.bf16.mxu0 0
        %3313 = vmatpush1.bf16.msra.mxu0 %v3295
        %3314 = vmatprep.subr.bf16.mxu0 0
        %3315 = vmatpush1.bf16.msra.mxu0 %v3296
        %3316 = vmatprep.subr.bf16.mxu0 0
        %3317 = vmatpush1.bf16.msra.mxu0 %v3297
        %3318 = vmatprep.subr.bf16.mxu0 0
        %3319 = vmatpush1.bf16.msra.mxu0 %v3298
        %3320 = vmatprep.subr.bf16.mxu0 0
        %3321 = vmatpush1.bf16.msra.mxu0 %v3299
        %3322 = vmatprep.subr.bf16.mxu0 0
        %3323 = vmatpush1.bf16.msra.mxu0 %v3300
        %3324 = vmatprep.subr.bf16.mxu0 0
        %3325 = vmatpush1.bf16.msra.mxu0 %v3301
        %3326 = vmatprep.subr.bf16.mxu0 0
        %3327 = vmatpush1.bf16.msra.mxu0 0
        %3328 = vmatprep.subr.bf16.mxu0 0
        %3329 = vmatpush1.bf16.msra.mxu0 0
        %3330 = vmatprep.subr.bf16.mxu0 0
        %3331 = vmatpush1.bf16.msra.mxu0 0
        %3332 = vmatprep.subr.bf16.mxu0 0
        %3333 = vmatpush1.bf16.msra.mxu0 0
        %3334 = vmatprep.subr.bf16.mxu0 0
        %3335 = vmatpush1.bf16.msra.mxu0 0
        %3336 = vmatprep.subr.bf16.mxu0 0
        %3337 = vmatpush1.bf16.msra.mxu0 0
        %3338 = vmatprep.subr.bf16.mxu0 0
        %3339 = vmatpush1.bf16.msra.mxu0 0
        %3340 = vmatprep.subr.bf16.mxu0 0
        %3341 = vmatpush1.bf16.msra.mxu0 0
        %3342 = vmatprep.mubr.bf16.mxu0 0
        %3343 = vmatmul.mubr.bf16.gmra.mrb[0].mxu0 %v3221
        %v3344 = vpop.f32.mrb[0].mxu0
        %v3345 = vadd.f32 %v3260, %v3344
        %v3346 = vpop.f32.mrb[0].mxu0
        %v3347 = vpop.f32.mrb[0].mxu0
        %v3348 = vadd.f32 %v3260, %v3347
        %v3349 = vpop.f32.mrb[0].mxu0
        %3350 = vmatprep.mubr.bf16.mxu0 0
        %3351 = vmatmul.mubr.bf16.gmra.mrb[0].mxu0 %v3222
        %v3352 = vpop.f32.mrb[0].mxu0
        %v3353 = vadd.f32 %v3260, %v3352
        %v3354 = vpop.f32.mrb[0].mxu0
        %v3355 = vpop.f32.mrb[0].mxu0
        %v3356 = vadd.f32 %v3260, %v3355
        %v3357 = vpop.f32.mrb[0].mxu0
        %3358 = vmatprep.mubr.bf16.mxu0 0
        %3359 = vmatmul.mubr.bf16.gmra.mrb[0].mxu0 %v3223
        %v3360 = vpop.f32.mrb[0].mxu0
        %v3361 = vadd.f32 %v3260, %v3360
        %v3362 = vpop.f32.mrb[0].mxu0
        %v3363 = vpop.f32.mrb[0].mxu0
        %v3364 = vadd.f32 %v3260, %v3363
        %v3365 = vpop.f32.mrb[0].mxu0
        %3366 = vmatprep.mubr.bf16.mxu0 0
        %3367 = vmatmul.mubr.bf16.gmra.mrb[0].mxu0 %v3224
        %v3368 = vpop.f32.mrb[0].mxu0
        %v3369 = vadd.f32 %v3260, %v3368
        %v3370 = vpop.f32.mrb[0].mxu0
        %v3371 = vpop.f32.mrb[0].mxu0
        %v3372 = vadd.f32 %v3260, %v3371
        %v3373 = vpop.f32.mrb[0].mxu0
        %3374 = vmatprep.mubr.bf16.mxu0 0
        %3375 = vmatmul.mubr.bf16.gmra.mrb[0].mxu0 %v3225
        %v3376 = vpop.f32.mrb[0].mxu0
        %v3377 = vadd.f32 %v3260, %v3376
        %v3378 = vpop.f32.mrb[0].mxu0
        %v3379 = vpop.f32.mrb[0].mxu0
        %v3380 = vadd.f32 %v3260, %v3379
        %v3381 = vpop.f32.mrb[0].mxu0
        %3382 = vmatprep.mubr.bf16.mxu0 0
        %3383 = vmatmul.mubr.bf16.gmra.mrb[0].mxu0 %v3226
        %v3384 = vpop.f32.mrb[0].mxu0
        %v3385 = vadd.f32 %v3260, %v3384
        %v3386 = vpop.f32.mrb[0].mxu0
        %v3387 = vpop.f32.mrb[0].mxu0
        %v3388 = vadd.f32 %v3260, %v3387
        %v3389 = vpop.f32.mrb[0].mxu0
        %3390 = vmatprep.mubr.bf16.mxu0 0
        %3391 = vmatmul.mubr.bf16.gmra.mrb[0].mxu0 %v3227
        %v3392 = vpop.f32.mrb[0].mxu0
        %v3393 = vadd.f32 %v3260, %v3392
        %v3394 = vpop.f32.mrb[0].mxu0
        %v3395 = vpop.f32.mrb[0].mxu0
        %v3396 = vadd.f32 %v3260, %v3395
        %v3397 = vpop.f32.mrb[0].mxu0
        %3398 = vmatprep.mubr.bf16.mxu0 0
        %3399 = vmatmul.mubr.bf16.gmra.mrb[0].mxu0 %v3228
        %v3400 = vpop.f32.mrb[0].mxu0
        %v3401 = vadd.f32 %v3260, %v3400
        %v3402 = vpop.f32.mrb[0].mxu0
        %v3403 = vpop.f32.mrb[0].mxu0
        %v3404 = vadd.f32 %v3260, %v3403
        %v3405 = vpop.f32.mrb[0].mxu0
        %3406 = vmatprep.mubr.bf16.mxu0 0
        %3407 = vmatmul.mubr.bf16.gmra.mrb[0].mxu0 %v3229
        %v3408 = vpop.f32.mrb[0].mxu0
        %v3409 = vadd.f32 %v3260, %v3408
        %v3410 = vpop.f32.mrb[0].mxu0
        %v3411 = vpop.f32.mrb[0].mxu0
        %v3412 = vadd.f32 %v3260, %v3411
        %v3413 = vpop.f32.mrb[0].mxu0
        %3414 = vmatprep.mubr.bf16.mxu0 0
        %3415 = vmatmul.mubr.bf16.gmra.mrb[0].mxu0 %v3230
        %v3416 = vpop.f32.mrb[0].mxu0
        %v3417 = vadd.f32 %v3260, %v3416
        %v3418 = vpop.f32.mrb[0].mxu0
        %v3419 = vpop.f32.mrb[0].mxu0
        %v3420 = vadd.f32 %v3260, %v3419
        %v3421 = vpop.f32.mrb[0].mxu0
        %3422 = vmatprep.mubr.bf16.mxu0 0
        %3423 = vmatmul.mubr.bf16.gmra.mrb[0].mxu0 %v3231
        %v3424 = vpop.f32.mrb[0].mxu0
        %v3425 = vadd.f32 %v3260, %v3424
        %v3426 = vpop.f32.mrb[0].mxu0
        %v3427 = vpop.f32.mrb[0].mxu0
        %v3428 = vadd.f32 %v3260, %v3427
        %v3429 = vpop.f32.mrb[0].mxu0
        %3430 = vmatprep.mubr.bf16.mxu0 0
        %3431 = vmatmul.mubr.bf16.gmra.mrb[0].mxu0 %v3232
        %v3432 = vpop.f32.mrb[0].mxu0
        %v3433 = vadd.f32 %v3260, %v3432
        %v3434 = vpop.f32.mrb[0].mxu0
        %v3435 = vpop.f32.mrb[0].mxu0
        %v3436 = vadd.f32 %v3260, %v3435
        %v3437 = vpop.f32.mrb[0].mxu0
        %3438 = vmatprep.mubr.bf16.mxu0 0
        %3439 = vmatmul.mubr.bf16.gmra.mrb[0].mxu0 %v3233
        %v3440 = vpop.f32.mrb[0].mxu0
        %v3441 = vadd.f32 %v3260, %v3440
        %v3442 = vpop.f32.mrb[0].mxu0
        %v3443 = vpop.f32.mrb[0].mxu0
        %v3444 = vadd.f32 %v3260, %v3443
        %v3445 = vpop.f32.mrb[0].mxu0
        %3446 = vmatprep.mubr.bf16.mxu0 0
        %3447 = vmatmul.mubr.bf16.gmra.mrb[0].mxu0 %v3234
        %v3448 = vpop.f32.mrb[0].mxu0
        %v3449 = vadd.f32 %v3260, %v3448
        %v3450 = vpop.f32.mrb[0].mxu0
        %v3451 = vpop.f32.mrb[0].mxu0
        %v3452 = vadd.f32 %v3260, %v3451
        %v3453 = vpop.f32.mrb[0].mxu0
        %3454 = vmatprep.mubr.bf16.mxu0 0
        %3455 = vmatmul.mubr.bf16.gmra.mrb[0].mxu0 %v3235
        %v3456 = vpop.f32.mrb[0].mxu0
        %v3457 = vadd.f32 %v3260, %v3456
        %v3458 = vpop.f32.mrb[0].mxu0
        %v3459 = vpop.f32.mrb[0].mxu0
        %v3460 = vadd.f32 %v3260, %v3459
        %v3461 = vpop.f32.mrb[0].mxu0
        %3462 = vmatprep.mubr.bf16.mxu0 0
        %3463 = vmatmul.mubr.bf16.gmra.mrb[0].mxu0 %v3236
        %v3464 = vpop.f32.mrb[0].mxu0
        %v3465 = vadd.f32 %v3260, %v3464
        %v3466 = vpop.f32.mrb[0].mxu0
        %v3467 = vpop.f32.mrb[0].mxu0
        %v3468 = vadd.f32 %v3260, %v3467
        %v3469 = vpop.f32.mrb[0].mxu0
        %3470 = vdwg.mxu0
        %v3471 = vxor.u32 %v3345, 2147483648
        %v3472 = vxor.u32 %v3348, 2147483648
        %v3473 = vxor.u32 %v3353, 2147483648
        %v3474 = vxor.u32 %v3356, 2147483648
        %v3475 = vxor.u32 %v3361, 2147483648
        %v3476 = vxor.u32 %v3364, 2147483648
        %v3477 = vxor.u32 %v3369, 2147483648
        %v3478 = vxor.u32 %v3372, 2147483648
        %v3479 = vxor.u32 %v3377, 2147483648
        %v3480 = vxor.u32 %v3380, 2147483648
        %v3481 = vxor.u32 %v3385, 2147483648
        %v3482 = vxor.u32 %v3388, 2147483648
        %v3483 = vxor.u32 %v3393, 2147483648
        %v3484 = vxor.u32 %v3396, 2147483648
        %v3485 = vxor.u32 %v3401, 2147483648
        %v3486 = vxor.u32 %v3404, 2147483648
        %v3487 = vxor.u32 %v3409, 2147483648
        %v3488 = vxor.u32 %v3412, 2147483648
        %v3489 = vxor.u32 %v3417, 2147483648
        %v3490 = vxor.u32 %v3420, 2147483648
        %v3491 = vxor.u32 %v3425, 2147483648
        %v3492 = vxor.u32 %v3428, 2147483648
        %v3493 = vxor.u32 %v3433, 2147483648
        %v3494 = vxor.u32 %v3436, 2147483648
        %v3495 = vxor.u32 %v3441, 2147483648
        %v3496 = vxor.u32 %v3444, 2147483648
        %v3497 = vxor.u32 %v3449, 2147483648
        %v3498 = vxor.u32 %v3452, 2147483648
        %v3499 = vxor.u32 %v3457, 2147483648
        %v3500 = vxor.u32 %v3460, 2147483648
        %v3501 = vxor.u32 %v3465, 2147483648
        %v3502 = vxor.u32 %v3468, 2147483648
        %v3503 = vmul.f32 %v3471, 1.442695
        %v3504 = vpow.pop %v3503
        %v3505 = vmul.f32 %v3472, 1.442695
        %v3506 = vpow.pop %v3505
        %v3507 = vmul.f32 %v3473, 1.442695
        %v3508 = vpow.pop %v3507
        %v3509 = vmul.f32 %v3474, 1.442695
        %v3510 = vpow.pop %v3509
        %v3511 = vmul.f32 %v3475, 1.442695
        %v3512 = vpow.pop %v3511
        %v3513 = vmul.f32 %v3476, 1.442695
        %v3514 = vpow.pop %v3513
        %v3515 = vmul.f32 %v3477, 1.442695
        %v3516 = vpow.pop %v3515
        %v3517 = vmul.f32 %v3478, 1.442695
        %v3518 = vpow.pop %v3517
        %v3519 = vmul.f32 %v3479, 1.442695
        %v3520 = vpow.pop %v3519
        %v3521 = vmul.f32 %v3480, 1.442695
        %v3522 = vpow.pop %v3521
        %v3523 = vmul.f32 %v3481, 1.442695
        %v3524 = vpow.pop %v3523
        %v3525 = vmul.f32 %v3482, 1.442695
        %v3526 = vpow.pop %v3525
        %v3527 = vmul.f32 %v3483, 1.442695
        %v3528 = vpow.pop %v3527
        %v3529 = vmul.f32 %v3484, 1.442695
        %v3530 = vpow.pop %v3529
        %v3531 = vmul.f32 %v3485, 1.442695
        %v3532 = vpow.pop %v3531
        %v3533 = vmul.f32 %v3486, 1.442695
        %v3534 = vpow.pop %v3533
        %v3535 = vmul.f32 %v3487, 1.442695
        %v3536 = vpow.pop %v3535
        %v3537 = vmul.f32 %v3488, 1.442695
        %v3538 = vpow.pop %v3537
        %v3539 = vmul.f32 %v3489, 1.442695
        %v3540 = vpow.pop %v3539
        %v3541 = vmul.f32 %v3490, 1.442695
        %v3542 = vpow.pop %v3541
        %v3543 = vmul.f32 %v3491, 1.442695
        %v3544 = vpow.pop %v3543
        %v3545 = vmul.f32 %v3492, 1.442695
        %v3546 = vpow.pop %v3545
        %v3547 = vmul.f32 %v3493, 1.442695
        %v3548 = vpow.pop %v3547
        %v3549 = vmul.f32 %v3494, 1.442695
        %v3550 = vpow.pop %v3549
        %v3551 = vmul.f32 %v3495, 1.442695
        %v3552 = vpow.pop %v3551
        %v3553 = vmul.f32 %v3496, 1.442695
        %v3554 = vpow.pop %v3553
        %v3555 = vmul.f32 %v3497, 1.442695
        %v3556 = vpow.pop %v3555
        %v3557 = vmul.f32 %v3498, 1.442695
        %v3558 = vpow.pop %v3557
        %v3559 = vmul.f32 %v3499, 1.442695
        %v3560 = vpow.pop %v3559
        %v3561 = vmul.f32 %v3500, 1.442695
        %v3562 = vpow.pop %v3561
        %v3563 = vmul.f32 %v3501, 1.442695
        %v3564 = vpow.pop %v3563
        %v3565 = vmul.f32 %v3502, 1.442695
        %v3566 = vpow.pop %v3565
        %v3567 = vadd.f32 %v3504, 1.0
        %v3568 = vadd.f32 %v3506, 1.0
        %v3569 = vadd.f32 %v3508, 1.0
        %v3570 = vadd.f32 %v3510, 1.0
        %v3571 = vadd.f32 %v3512, 1.0
        %v3572 = vadd.f32 %v3514, 1.0
        %v3573 = vadd.f32 %v3516, 1.0
        %v3574 = vadd.f32 %v3518, 1.0
        %v3575 = vadd.f32 %v3520, 1.0
        %v3576 = vadd.f32 %v3522, 1.0
        %v3577 = vadd.f32 %v3524, 1.0
        %v3578 = vadd.f32 %v3526, 1.0
        %v3579 = vadd.f32 %v3528, 1.0
        %v3580 = vadd.f32 %v3530, 1.0
        %v3581 = vadd.f32 %v3532, 1.0
        %v3582 = vadd.f32 %v3534, 1.0
        %v3583 = vadd.f32 %v3536, 1.0
        %v3584 = vadd.f32 %v3538, 1.0
        %v3585 = vadd.f32 %v3540, 1.0
        %v3586 = vadd.f32 %v3542, 1.0
        %v3587 = vadd.f32 %v3544, 1.0
        %v3588 = vadd.f32 %v3546, 1.0
        %v3589 = vadd.f32 %v3548, 1.0
        %v3590 = vadd.f32 %v3550, 1.0
        %v3591 = vadd.f32 %v3552, 1.0
        %v3592 = vadd.f32 %v3554, 1.0
        %v3593 = vadd.f32 %v3556, 1.0
        %v3594 = vadd.f32 %v3558, 1.0
        %v3595 = vadd.f32 %v3560, 1.0
        %v3596 = vadd.f32 %v3562, 1.0
        %v3597 = vadd.f32 %v3564, 1.0
        %v3598 = vadd.f32 %v3566, 1.0
        %v3599 = vrcp.pop %v3567
        %v3600 = vmul.f32 1.0, %v3599
        %v3601 = vrcp.pop %v3568
        %v3602 = vmul.f32 1.0, %v3601
        %v3603 = vrcp.pop %v3569
        %v3604 = vmul.f32 1.0, %v3603
        %v3605 = vrcp.pop %v3570
        %v3606 = vmul.f32 1.0, %v3605
        %v3607 = vrcp.pop %v3571
        %v3608 = vmul.f32 1.0, %v3607
        %v3609 = vrcp.pop %v3572
        %v3610 = vmul.f32 1.0, %v3609
        %v3611 = vrcp.pop %v3573
        %v3612 = vmul.f32 1.0, %v3611
        %v3613 = vrcp.pop %v3574
        %v3614 = vmul.f32 1.0, %v3613
        %v3615 = vrcp.pop %v3575
        %v3616 = vmul.f32 1.0, %v3615
        %v3617 = vrcp.pop %v3576
        %v3618 = vmul.f32 1.0, %v3617
        %v3619 = vrcp.pop %v3577
        %v3620 = vmul.f32 1.0, %v3619
        %v3621 = vrcp.pop %v3578
        %v3622 = vmul.f32 1.0, %v3621
        %v3623 = vrcp.pop %v3579
        %v3624 = vmul.f32 1.0, %v3623
        %v3625 = vrcp.pop %v3580
        %v3626 = vmul.f32 1.0, %v3625
        %v3627 = vrcp.pop %v3581
        %v3628 = vmul.f32 1.0, %v3627
        %v3629 = vrcp.pop %v3582
        %v3630 = vmul.f32 1.0, %v3629
        %v3631 = vrcp.pop %v3583
        %v3632 = vmul.f32 1.0, %v3631
        %v3633 = vrcp.pop %v3584
        %v3634 = vmul.f32 1.0, %v3633
        %v3635 = vrcp.pop %v3585
        %v3636 = vmul.f32 1.0, %v3635
        %v3637 = vrcp.pop %v3586
        %v3638 = vmul.f32 1.0, %v3637
        %v3639 = vrcp.pop %v3587
        %v3640 = vmul.f32 1.0, %v3639
        %v3641 = vrcp.pop %v3588
        %v3642 = vmul.f32 1.0, %v3641
        %v3643 = vrcp.pop %v3589
        %v3644 = vmul.f32 1.0, %v3643
        %v3645 = vrcp.pop %v3590
        %v3646 = vmul.f32 1.0, %v3645
        %v3647 = vrcp.pop %v3591
        %v3648 = vmul.f32 1.0, %v3647
        %v3649 = vrcp.pop %v3592
        %v3650 = vmul.f32 1.0, %v3649
        %v3651 = vrcp.pop %v3593
        %v3652 = vmul.f32 1.0, %v3651
        %v3653 = vrcp.pop %v3594
        %v3654 = vmul.f32 1.0, %v3653
        %v3655 = vrcp.pop %v3595
        %v3656 = vmul.f32 1.0, %v3655
        %v3657 = vrcp.pop %v3596
        %v3658 = vmul.f32 1.0, %v3657
        %v3659 = vrcp.pop %v3597
        %v3660 = vmul.f32 1.0, %v3659
        %v3661 = vrcp.pop %v3598
        %v3662 = vmul.f32 1.0, %v3661
        %v3663 = vld [vmem:[%s8] sm:$0x1]
        %v3665 = vlaneseq
        %v3666 = vshrl.u32 %v3665, 7
        %v3667 = vsub.s32 0, %v3666
        %v3668 = vrot.slane %v3663, %v3667
        %v3670 = vmul.f32 %v3600, %v3668
        %v3671 = vmul.f32 %v3602, %v3668
        %v3672 = vmul.f32 %v3604, %v3668
        %v3673 = vmul.f32 %v3606, %v3668
        %v3674 = vmul.f32 %v3608, %v3668
        %v3675 = vmul.f32 %v3610, %v3668
        %v3676 = vmul.f32 %v3612, %v3668
        %v3677 = vmul.f32 %v3614, %v3668
        %v3678 = vmul.f32 %v3616, %v3668
        %v3679 = vmul.f32 %v3618, %v3668
        %v3680 = vmul.f32 %v3620, %v3668
        %v3681 = vmul.f32 %v3622, %v3668
        %v3682 = vmul.f32 %v3624, %v3668
        %v3683 = vmul.f32 %v3626, %v3668
        %v3684 = vmul.f32 %v3628, %v3668
        %v3685 = vmul.f32 %v3630, %v3668
        %v3686 = vmul.f32 %v3632, %v3668
        %v3687 = vmul.f32 %v3634, %v3668
        %v3688 = vmul.f32 %v3636, %v3668
        %v3689 = vmul.f32 %v3638, %v3668
        %v3690 = vmul.f32 %v3640, %v3668
        %v3691 = vmul.f32 %v3642, %v3668
        %v3692 = vmul.f32 %v3644, %v3668
        %v3693 = vmul.f32 %v3646, %v3668
        %v3694 = vmul.f32 %v3648, %v3668
        %v3695 = vmul.f32 %v3650, %v3668
        %v3696 = vmul.f32 %v3652, %v3668
        %v3697 = vmul.f32 %v3654, %v3668
        %v3698 = vmul.f32 %v3656, %v3668
        %v3699 = vmul.f32 %v3658, %v3668
        %v3700 = vmul.f32 %v3660, %v3668
        %v3701 = vmul.f32 %v3662, %v3668
        %3702 = vadd.xlane.f32.xlu0 %v3670
        %v3703 = vpop.xlane.xlu0 %3702
        %3704 = vadd.xlane.f32.xlu0 %v3671
        %v3705 = vpop.xlane.xlu0 %3704
        %3706 = vadd.xlane.f32.xlu0 %v3672
        %v3707 = vpop.xlane.xlu0 %3706
        %3708 = vadd.xlane.f32.xlu0 %v3673
        %v3709 = vpop.xlane.xlu0 %3708
        %3710 = vadd.xlane.f32.xlu0 %v3674
        %v3711 = vpop.xlane.xlu0 %3710
        %3712 = vadd.xlane.f32.xlu0 %v3675
        %v3713 = vpop.xlane.xlu0 %3712
        %3714 = vadd.xlane.f32.xlu0 %v3676
        %v3715 = vpop.xlane.xlu0 %3714
        %3716 = vadd.xlane.f32.xlu0 %v3677
        %v3717 = vpop.xlane.xlu0 %3716
        %3718 = vadd.xlane.f32.xlu0 %v3678
        %v3719 = vpop.xlane.xlu0 %3718
        %3720 = vadd.xlane.f32.xlu0 %v3679
        %v3721 = vpop.xlane.xlu0 %3720
        %3722 = vadd.xlane.f32.xlu0 %v3680
        %v3723 = vpop.xlane.xlu0 %3722
        %3724 = vadd.xlane.f32.xlu0 %v3681
        %v3725 = vpop.xlane.xlu0 %3724
        %3726 = vadd.xlane.f32.xlu0 %v3682
        %v3727 = vpop.xlane.xlu0 %3726
        %3728 = vadd.xlane.f32.xlu0 %v3683
        %v3729 = vpop.xlane.xlu0 %3728
        %3730 = vadd.xlane.f32.xlu0 %v3684
        %v3731 = vpop.xlane.xlu0 %3730
        %3732 = vadd.xlane.f32.xlu0 %v3685
        %v3733 = vpop.xlane.xlu0 %3732
        %3734 = vadd.xlane.f32.xlu0 %v3686
        %v3735 = vpop.xlane.xlu0 %3734
        %3736 = vadd.xlane.f32.xlu0 %v3687
        %v3737 = vpop.xlane.xlu0 %3736
        %3738 = vadd.xlane.f32.xlu0 %v3688
        %v3739 = vpop.xlane.xlu0 %3738
        %3740 = vadd.xlane.f32.xlu0 %v3689
        %v3741 = vpop.xlane.xlu0 %3740
        %3742 = vadd.xlane.f32.xlu0 %v3690
        %v3743 = vpop.xlane.xlu0 %3742
        %3744 = vadd.xlane.f32.xlu0 %v3691
        %v3745 = vpop.xlane.xlu0 %3744
        %3746 = vadd.xlane.f32.xlu0 %v3692
        %v3747 = vpop.xlane.xlu0 %3746
        %3748 = vadd.xlane.f32.xlu0 %v3693
        %v3749 = vpop.xlane.xlu0 %3748
        %3750 = vadd.xlane.f32.xlu0 %v3694
        %v3751 = vpop.xlane.xlu0 %3750
        %3752 = vadd.xlane.f32.xlu0 %v3695
        %v3753 = vpop.xlane.xlu0 %3752
        %3754 = vadd.xlane.f32.xlu0 %v3696
        %v3755 = vpop.xlane.xlu0 %3754
        %3756 = vadd.xlane.f32.xlu0 %v3697
        %v3757 = vpop.xlane.xlu0 %3756
        %3758 = vadd.xlane.f32.xlu0 %v3698
        %v3759 = vpop.xlane.xlu0 %3758
        %3760 = vadd.xlane.f32.xlu0 %v3699
        %v3761 = vpop.xlane.xlu0 %3760
        %3762 = vadd.xlane.f32.xlu0 %v3700
        %v3763 = vpop.xlane.xlu0 %3762
        %3764 = vadd.xlane.f32.xlu0 %v3701
        %v3765 = vpop.xlane.xlu0 %3764
        %v3766 = vld [vmem:[#allocation2] sm:$0x1]
        %v3768 = vlaneseq
        %v3769 = vshrl.u32 %v3768, 7
        %v3770 = vsub.s32 0, %v3769
        %v3771 = vrot.slane %v3766, %v3770
        %v3773 = vadd.f32 %v3703, %v3771
        %v3774 = vadd.f32 %v3705, %v3771
        %v3775 = vadd.f32 %v3707, %v3771
        %v3776 = vadd.f32 %v3709, %v3771
        %v3777 = vadd.f32 %v3711, %v3771
        %v3778 = vadd.f32 %v3713, %v3771
        %v3779 = vadd.f32 %v3715, %v3771
        %v3780 = vadd.f32 %v3717, %v3771
        %v3781 = vadd.f32 %v3719, %v3771
        %v3782 = vadd.f32 %v3721, %v3771
        %v3783 = vadd.f32 %v3723, %v3771
        %v3784 = vadd.f32 %v3725, %v3771
        %v3785 = vadd.f32 %v3727, %v3771
        %v3786 = vadd.f32 %v3729, %v3771
        %v3787 = vadd.f32 %v3731, %v3771
        %v3788 = vadd.f32 %v3733, %v3771
        %v3789 = vadd.f32 %v3735, %v3771
        %v3790 = vadd.f32 %v3737, %v3771
        %v3791 = vadd.f32 %v3739, %v3771
        %v3792 = vadd.f32 %v3741, %v3771
        %v3793 = vadd.f32 %v3743, %v3771
        %v3794 = vadd.f32 %v3745, %v3771
        %v3795 = vadd.f32 %v3747, %v3771
        %v3796 = vadd.f32 %v3749, %v3771
        %v3797 = vadd.f32 %v3751, %v3771
        %v3798 = vadd.f32 %v3753, %v3771
        %v3799 = vadd.f32 %v3755, %v3771
        %v3800 = vadd.f32 %v3757, %v3771
        %v3801 = vadd.f32 %v3759, %v3771
        %v3802 = vadd.f32 %v3761, %v3771
        %v3803 = vadd.f32 %v3763, %v3771
        %v3804 = vadd.f32 %v3765, %v3771
        %vm3805 = vcmask 7168
        %3806 = vst.msk [vmem:[%s504] sm:$0xff] %vm3805, %v3773
        %3807 = vst.msk [vmem:[%s504 + $0x8] sm:$0xff] %vm3805, %v3774
        %3808 = vst.msk [vmem:[%s504 + $0x10] sm:$0xff] %vm3805, %v3775
        %3809 = vst.msk [vmem:[%s504 + $0x18] sm:$0xff] %vm3805, %v3776
        %3810 = vst.msk [vmem:[%s504 + $0x20] sm:$0xff] %vm3805, %v3777
        %3811 = vst.msk [vmem:[%s504 + $0x28] sm:$0xff] %vm3805, %v3778
        %3812 = vst.msk [vmem:[%s504 + $0x30] sm:$0xff] %vm3805, %v3779
        %3813 = vst.msk [vmem:[%s504 + $0x38] sm:$0xff] %vm3805, %v3780
        %3814 = vst.msk [vmem:[%s504 + $0x40] sm:$0xff] %vm3805, %v3781
        %3815 = vst.msk [vmem:[%s504 + $0x48] sm:$0xff] %vm3805, %v3782
        %3816 = vst.msk [vmem:[%s504 + $0x50] sm:$0xff] %vm3805, %v3783
        %3817 = vst.msk [vmem:[%s504 + $0x58] sm:$0xff] %vm3805, %v3784
        %3818 = vst.msk [vmem:[%s504 + $0x60] sm:$0xff] %vm3805, %v3785
        %3819 = vst.msk [vmem:[%s504 + $0x68] sm:$0xff] %vm3805, %v3786
        %3820 = vst.msk [vmem:[%s504 + $0x70] sm:$0xff] %vm3805, %v3787
        %3821 = vst.msk [vmem:[%s504 + $0x78] sm:$0xff] %vm3805, %v3788
        %3822 = vst.msk [vmem:[%s504 + $0x80] sm:$0xff] %vm3805, %v3789
        %3823 = vst.msk [vmem:[%s504 + $0x88] sm:$0xff] %vm3805, %v3790
        %3824 = vst.msk [vmem:[%s504 + $0x90] sm:$0xff] %vm3805, %v3791
        %3825 = vst.msk [vmem:[%s504 + $0x98] sm:$0xff] %vm3805, %v3792
        %3826 = vst.msk [vmem:[%s504 + $0xa0] sm:$0xff] %vm3805, %v3793
        %3827 = vst.msk [vmem:[%s504 + $0xa8] sm:$0xff] %vm3805, %v3794
        %3828 = vst.msk [vmem:[%s504 + $0xb0] sm:$0xff] %vm3805, %v3795
        %3829 = vst.msk [vmem:[%s504 + $0xb8] sm:$0xff] %vm3805, %v3796
        %3830 = vst.msk [vmem:[%s504 + $0xc0] sm:$0xff] %vm3805, %v3797
        %3831 = vst.msk [vmem:[%s504 + $0xc8] sm:$0xff] %vm3805, %v3798
        %3832 = vst.msk [vmem:[%s504 + $0xd0] sm:$0xff] %vm3805, %v3799
        %3833 = vst.msk [vmem:[%s504 + $0xd8] sm:$0xff] %vm3805, %v3800
        %3834 = vst.msk [vmem:[%s504 + $0xe0] sm:$0xff] %vm3805, %v3801
        %3835 = vst.msk [vmem:[%s504 + $0xe8] sm:$0xff] %vm3805, %v3802
        %3836 = vst.msk [vmem:[%s504 + $0xf0] sm:$0xff] %vm3805, %v3803
        %3837 = vst.msk [vmem:[%s504 + $0xf8] sm:$0xff] %vm3805, %v3804
        %v3838 = vmax.f32 %v3773, 1.0
        %v3839 = vmax.f32 %v3774, 1.0
        %v3840 = vmax.f32 %v3775, 1.0
        %v3841 = vmax.f32 %v3776, 1.0
        %v3842 = vmax.f32 %v3777, 1.0
        %v3843 = vmax.f32 %v3778, 1.0
        %v3844 = vmax.f32 %v3779, 1.0
        %v3845 = vmax.f32 %v3780, 1.0
        %v3846 = vmax.f32 %v3781, 1.0
        %v3847 = vmax.f32 %v3782, 1.0
        %v3848 = vmax.f32 %v3783, 1.0
        %v3849 = vmax.f32 %v3784, 1.0
        %v3850 = vmax.f32 %v3785, 1.0
        %v3851 = vmax.f32 %v3786, 1.0
        %v3852 = vmax.f32 %v3787, 1.0
        %v3853 = vmax.f32 %v3788, 1.0
        %v3854 = vmax.f32 %v3789, 1.0
        %v3855 = vmax.f32 %v3790, 1.0
        %v3856 = vmax.f32 %v3791, 1.0
        %v3857 = vmax.f32 %v3792, 1.0
        %v3858 = vmax.f32 %v3793, 1.0
        %v3859 = vmax.f32 %v3794, 1.0
        %v3860 = vmax.f32 %v3795, 1.0
        %v3861 = vmax.f32 %v3796, 1.0
        %v3862 = vmax.f32 %v3797, 1.0
        %v3863 = vmax.f32 %v3798, 1.0
        %v3864 = vmax.f32 %v3799, 1.0
        %v3865 = vmax.f32 %v3800, 1.0
        %v3866 = vmax.f32 %v3801, 1.0
        %v3867 = vmax.f32 %v3802, 1.0
        %v3868 = vmax.f32 %v3803, 1.0
        %v3869 = vmax.f32 %v3804, 1.0
        %v3870 = vmin.f32 %v3838, 5.0
        %v3871 = vmin.f32 %v3839, 5.0
        %v3872 = vmin.f32 %v3840, 5.0
        %v3873 = vmin.f32 %v3841, 5.0
        %v3874 = vmin.f32 %v3842, 5.0
        %v3875 = vmin.f32 %v3843, 5.0
        %v3876 = vmin.f32 %v3844, 5.0
        %v3877 = vmin.f32 %v3845, 5.0
        %v3878 = vmin.f32 %v3846, 5.0
        %v3879 = vmin.f32 %v3847, 5.0
        %v3880 = vmin.f32 %v3848, 5.0
        %v3881 = vmin.f32 %v3849, 5.0
        %v3882 = vmin.f32 %v3850, 5.0
        %v3883 = vmin.f32 %v3851, 5.0
        %v3884 = vmin.f32 %v3852, 5.0
        %v3885 = vmin.f32 %v3853, 5.0
        %v3886 = vmin.f32 %v3854, 5.0
        %v3887 = vmin.f32 %v3855, 5.0
        %v3888 = vmin.f32 %v3856, 5.0
        %v3889 = vmin.f32 %v3857, 5.0
        %v3890 = vmin.f32 %v3858, 5.0
        %v3891 = vmin.f32 %v3859, 5.0
        %v3892 = vmin.f32 %v3860, 5.0
        %v3893 = vmin.f32 %v3861, 5.0
        %v3894 = vmin.f32 %v3862, 5.0
        %v3895 = vmin.f32 %v3863, 5.0
        %v3896 = vmin.f32 %v3864, 5.0
        %v3897 = vmin.f32 %v3865, 5.0
        %v3898 = vmin.f32 %v3866, 5.0
        %v3899 = vmin.f32 %v3867, 5.0
        %v3900 = vmin.f32 %v3868, 5.0
        %v3901 = vmin.f32 %v3869, 5.0
        %v3902 = vcvt.f32.s32.to.zero.pseudo %v3870
        %v3903 = vcvt.f32.s32.to.zero.pseudo %v3871
        %v3904 = vcvt.f32.s32.to.zero.pseudo %v3872
        %v3905 = vcvt.f32.s32.to.zero.pseudo %v3873
        %v3906 = vcvt.f32.s32.to.zero.pseudo %v3874
        %v3907 = vcvt.f32.s32.to.zero.pseudo %v3875
        %v3908 = vcvt.f32.s32.to.zero.pseudo %v3876
        %v3909 = vcvt.f32.s32.to.zero.pseudo %v3877
        %v3910 = vcvt.f32.s32.to.zero.pseudo %v3878
        %v3911 = vcvt.f32.s32.to.zero.pseudo %v3879
        %v3912 = vcvt.f32.s32.to.zero.pseudo %v3880
        %v3913 = vcvt.f32.s32.to.zero.pseudo %v3881
        %v3914 = vcvt.f32.s32.to.zero.pseudo %v3882
        %v3915 = vcvt.f32.s32.to.zero.pseudo %v3883
        %v3916 = vcvt.f32.s32.to.zero.pseudo %v3884
        %v3917 = vcvt.f32.s32.to.zero.pseudo %v3885
        %v3918 = vcvt.f32.s32.to.zero.pseudo %v3886
        %v3919 = vcvt.f32.s32.to.zero.pseudo %v3887
        %v3920 = vcvt.f32.s32.to.zero.pseudo %v3888
        %v3921 = vcvt.f32.s32.to.zero.pseudo %v3889
        %v3922 = vcvt.f32.s32.to.zero.pseudo %v3890
        %v3923 = vcvt.f32.s32.to.zero.pseudo %v3891
        %v3924 = vcvt.f32.s32.to.zero.pseudo %v3892
        %v3925 = vcvt.f32.s32.to.zero.pseudo %v3893
        %v3926 = vcvt.f32.s32.to.zero.pseudo %v3894
        %v3927 = vcvt.f32.s32.to.zero.pseudo %v3895
        %v3928 = vcvt.f32.s32.to.zero.pseudo %v3896
        %v3929 = vcvt.f32.s32.to.zero.pseudo %v3897
        %v3930 = vcvt.f32.s32.to.zero.pseudo %v3898
        %v3931 = vcvt.f32.s32.to.zero.pseudo %v3899
        %v3932 = vcvt.f32.s32.to.zero.pseudo %v3900
        %v3933 = vcvt.f32.s32.to.zero.pseudo %v3901
        %v3934 = vld [vmem:[%s10] sm:$0xf]
        %v3935 = vld [vmem:[%s10 + $0x4] sm:$0xf]
        %v3936 = vld [vmem:[%s10 + $0x8] sm:$0xf]
        %v3937 = vld [vmem:[%s10 + $0xc] sm:$0xf]
        %v3938 = vld [vmem:[%s10 + $0x10] sm:$0xf]
        %v3939 = vld [vmem:[%s10 + $0x14] sm:$0xf]
        %v3940 = vld [vmem:[%s10 + $0x18] sm:$0xf]
        %v3941 = vld [vmem:[%s10 + $0x1c] sm:$0xf]
        %v3942 = vld [vmem:[%s12] sm:$0x1]
        %v3944 = vlaneseq
        %v3945 = vshrl.u32 %v3944, 7
        %v3946 = vsub.s32 0, %v3945
        %v3947 = vrot.slane %v3942, %v3946
        %v3957 = vunpack.c.l.b16 %v3934
        %v3958 = vunpack.c.l.b16 %v3935
        %v3959 = vunpack.c.l.b16 %v3936
        %v3960 = vunpack.c.l.b16 %v3937
        %v3961 = vunpack.c.l.b16 %v3938
        %v3962 = vunpack.c.l.b16 %v3939
        %v3963 = vunpack.c.l.b16 %v3940
        %v3964 = vunpack.c.l.b16 %v3941
        %v3965 = vpack.c.b16 %v3958, %v3957
        %v3966 = vpack.c.b16 %v3960, %v3959
        %v3967 = vpack.c.b16 %v3962, %v3961
        %v3968 = vpack.c.b16 %v3964, %v3963
        %3973 = vmatprep.subr.bf16.mxu0 0
        %3974 = vmatpush1.bf16.msra.mxu0 %v3965
        %3975 = vmatprep.subr.bf16.mxu0 0
        %3976 = vmatpush1.bf16.msra.mxu0 %v3966
        %3977 = vmatprep.subr.bf16.mxu0 0
        %3978 = vmatpush1.bf16.msra.mxu0 %v3967
        %3979 = vmatprep.subr.bf16.mxu0 0
        %3980 = vmatpush1.bf16.msra.mxu0 %v3968
        %3981 = vmatprep.subr.bf16.mxu0 0
        %3982 = vmatpush1.bf16.msra.mxu0 0
        %3983 = vmatprep.subr.bf16.mxu0 0
        %3984 = vmatpush1.bf16.msra.mxu0 0
        %3985 = vmatprep.subr.bf16.mxu0 0
        %3986 = vmatpush1.bf16.msra.mxu0 0
        %3987 = vmatprep.subr.bf16.mxu0 0
        %3988 = vmatpush1.bf16.msra.mxu0 0
        %3989 = vmatprep.subr.bf16.mxu0 0
        %3990 = vmatpush1.bf16.msra.mxu0 0
        %3991 = vmatprep.subr.bf16.mxu0 0
        %3992 = vmatpush1.bf16.msra.mxu0 0
        %3993 = vmatprep.subr.bf16.mxu0 0
        %3994 = vmatpush1.bf16.msra.mxu0 0
        %3995 = vmatprep.subr.bf16.mxu0 0
        %3996 = vmatpush1.bf16.msra.mxu0 0
        %3997 = vmatprep.subr.bf16.mxu0 0
        %3998 = vmatpush1.bf16.msra.mxu0 0
        %3999 = vmatprep.subr.bf16.mxu0 0
        %4000 = vmatpush1.bf16.msra.mxu0 0
        %4001 = vmatprep.subr.bf16.mxu0 0
        %4002 = vmatpush1.bf16.msra.mxu0 0
        %4003 = vmatprep.subr.bf16.mxu0 0
        %4004 = vmatpush1.bf16.msra.mxu0 0
        %4005 = vmatprep.mubr.bf16.mxu0 0
        %4006 = vmatmul.mubr.bf16.gmra.mrb[0].mxu0 %v1497
        %v4007 = vpop.f32.mrb[0].mxu0
        %v4008 = vadd.f32 %v3947, %v4007
        %v4009 = vpop.f32.mrb[0].mxu0
        %v4010 = vpop.f32.mrb[0].mxu0
        %v4011 = vadd.f32 %v3947, %v4010
        %v4012 = vpop.f32.mrb[0].mxu0
        %4013 = vmatprep.mubr.bf16.mxu0 0
        %4014 = vmatmul.mubr.bf16.gmra.mrb[0].mxu0 %v1500
        %v4015 = vpop.f32.mrb[0].mxu0
        %v4016 = vadd.f32 %v3947, %v4015
        %v4017 = vpop.f32.mrb[0].mxu0
        %v4018 = vpop.f32.mrb[0].mxu0
        %v4019 = vadd.f32 %v3947, %v4018
        %v4020 = vpop.f32.mrb[0].mxu0
        %4021 = vmatprep.mubr.bf16.mxu0 0
        %4022 = vmatmul.mubr.bf16.gmra.mrb[0].mxu0 %v1503
        %v4023 = vpop.f32.mrb[0].mxu0
        %v4024 = vadd.f32 %v3947, %v4023
        %v4025 = vpop.f32.mrb[0].mxu0
        %v4026 = vpop.f32.mrb[0].mxu0
        %v4027 = vadd.f32 %v3947, %v4026
        %v4028 = vpop.f32.mrb[0].mxu0
        %4029 = vmatprep.mubr.bf16.mxu0 0
        %4030 = vmatmul.mubr.bf16.gmra.mrb[0].mxu0 %v1506
        %v4031 = vpop.f32.mrb[0].mxu0
        %v4032 = vadd.f32 %v3947, %v4031
        %v4033 = vpop.f32.mrb[0].mxu0
        %v4034 = vpop.f32.mrb[0].mxu0
        %v4035 = vadd.f32 %v3947, %v4034
        %v4036 = vpop.f32.mrb[0].mxu0
        %4037 = vmatprep.mubr.bf16.mxu0 0
        %4038 = vmatmul.mubr.bf16.gmra.mrb[0].mxu0 %v1509
        %v4039 = vpop.f32.mrb[0].mxu0
        %v4040 = vadd.f32 %v3947, %v4039
        %v4041 = vpop.f32.mrb[0].mxu0
        %v4042 = vpop.f32.mrb[0].mxu0
        %v4043 = vadd.f32 %v3947, %v4042
        %v4044 = vpop.f32.mrb[0].mxu0
        %4045 = vmatprep.mubr.bf16.mxu0 0
        %4046 = vmatmul.mubr.bf16.gmra.mrb[0].mxu0 %v1512
        %v4047 = vpop.f32.mrb[0].mxu0
        %v4048 = vadd.f32 %v3947, %v4047
        %v4049 = vpop.f32.mrb[0].mxu0
        %v4050 = vpop.f32.mrb[0].mxu0
        %v4051 = vadd.f32 %v3947, %v4050
        %v4052 = vpop.f32.mrb[0].mxu0
        %4053 = vmatprep.mubr.bf16.mxu0 0
        %4054 = vmatmul.mubr.bf16.gmra.mrb[0].mxu0 %v1515
        %v4055 = vpop.f32.mrb[0].mxu0
        %v4056 = vadd.f32 %v3947, %v4055
        %v4057 = vpop.f32.mrb[0].mxu0
        %v4058 = vpop.f32.mrb[0].mxu0
        %v4059 = vadd.f32 %v3947, %v4058
        %v4060 = vpop.f32.mrb[0].mxu0
        %4061 = vmatprep.mubr.bf16.mxu0 0
        %4062 = vmatmul.mubr.bf16.gmra.mrb[0].mxu0 %v1518
        %v4063 = vpop.f32.mrb[0].mxu0
        %v4064 = vadd.f32 %v3947, %v4063
        %v4065 = vpop.f32.mrb[0].mxu0
        %v4066 = vpop.f32.mrb[0].mxu0
        %v4067 = vadd.f32 %v3947, %v4066
        %v4068 = vpop.f32.mrb[0].mxu0
        %4069 = vmatprep.mubr.bf16.mxu0 0
        %4070 = vmatmul.mubr.bf16.gmra.mrb[0].mxu0 %v1521
        %v4071 = vpop.f32.mrb[0].mxu0
        %v4072 = vadd.f32 %v3947, %v4071
        %v4073 = vpop.f32.mrb[0].mxu0
        %v4074 = vpop.f32.mrb[0].mxu0
        %v4075 = vadd.f32 %v3947, %v4074
        %v4076 = vpop.f32.mrb[0].mxu0
        %4077 = vmatprep.mubr.bf16.mxu0 0
        %4078 = vmatmul.mubr.bf16.gmra.mrb[0].mxu0 %v1524
        %v4079 = vpop.f32.mrb[0].mxu0
        %v4080 = vadd.f32 %v3947, %v4079
        %v4081 = vpop.f32.mrb[0].mxu0
        %v4082 = vpop.f32.mrb[0].mxu0
        %v4083 = vadd.f32 %v3947, %v4082
        %v4084 = vpop.f32.mrb[0].mxu0
        %4085 = vmatprep.mubr.bf16.mxu0 0
        %4086 = vmatmul.mubr.bf16.gmra.mrb[0].mxu0 %v1527
        %v4087 = vpop.f32.mrb[0].mxu0
        %v4088 = vadd.f32 %v3947, %v4087
        %v4089 = vpop.f32.mrb[0].mxu0
        %v4090 = vpop.f32.mrb[0].mxu0
        %v4091 = vadd.f32 %v3947, %v4090
        %v4092 = vpop.f32.mrb[0].mxu0
        %4093 = vmatprep.mubr.bf16.mxu0 0
        %4094 = vmatmul.mubr.bf16.gmra.mrb[0].mxu0 %v1530
        %v4095 = vpop.f32.mrb[0].mxu0
        %v4096 = vadd.f32 %v3947, %v4095
        %v4097 = vpop.f32.mrb[0].mxu0
        %v4098 = vpop.f32.mrb[0].mxu0
        %v4099 = vadd.f32 %v3947, %v4098
        %v4100 = vpop.f32.mrb[0].mxu0
        %4101 = vmatprep.mubr.bf16.mxu0 0
        %4102 = vmatmul.mubr.bf16.gmra.mrb[0].mxu0 %v1533
        %v4103 = vpop.f32.mrb[0].mxu0
        %v4104 = vadd.f32 %v3947, %v4103
        %v4105 = vpop.f32.mrb[0].mxu0
        %v4106 = vpop.f32.mrb[0].mxu0
        %v4107 = vadd.f32 %v3947, %v4106
        %v4108 = vpop.f32.mrb[0].mxu0
        %4109 = vmatprep.mubr.bf16.mxu0 0
        %4110 = vmatmul.mubr.bf16.gmra.mrb[0].mxu0 %v1536
        %v4111 = vpop.f32.mrb[0].mxu0
        %v4112 = vadd.f32 %v3947, %v4111
        %v4113 = vpop.f32.mrb[0].mxu0
        %v4114 = vpop.f32.mrb[0].mxu0
        %v4115 = vadd.f32 %v3947, %v4114
        %v4116 = vpop.f32.mrb[0].mxu0
        %4117 = vmatprep.mubr.bf16.mxu0 0
        %4118 = vmatmul.mubr.bf16.gmra.mrb[0].mxu0 %v1539
        %v4119 = vpop.f32.mrb[0].mxu0
        %v4120 = vadd.f32 %v3947, %v4119
        %v4121 = vpop.f32.mrb[0].mxu0
        %v4122 = vpop.f32.mrb[0].mxu0
        %v4123 = vadd.f32 %v3947, %v4122
        %v4124 = vpop.f32.mrb[0].mxu0
        %4125 = vmatprep.mubr.bf16.mxu0 0
        %4126 = vmatmul.mubr.bf16.gmra.mrb[0].mxu0 %v1542
        %v4127 = vpop.f32.mrb[0].mxu0
        %v4128 = vadd.f32 %v3947, %v4127
        %v4129 = vpop.f32.mrb[0].mxu0
        %v4130 = vpop.f32.mrb[0].mxu0
        %v4131 = vadd.f32 %v3947, %v4130
        %v4132 = vpop.f32.mrb[0].mxu0
        %4133 = vdwg.mxu0
        %vm4134 = vcmp.eq.s32.totalorder %v3902, 1
        %vm4135 = vcmp.eq.s32.totalorder %v3903, 1
        %vm4136 = vcmp.eq.s32.totalorder %v3904, 1
        %vm4137 = vcmp.eq.s32.totalorder %v3905, 1
        %vm4138 = vcmp.eq.s32.totalorder %v3906, 1
        %vm4139 = vcmp.eq.s32.totalorder %v3907, 1
        %vm4140 = vcmp.eq.s32.totalorder %v3908, 1
        %vm4141 = vcmp.eq.s32.totalorder %v3909, 1
        %vm4142 = vcmp.eq.s32.totalorder %v3910, 1
        %vm4143 = vcmp.eq.s32.totalorder %v3911, 1
        %vm4144 = vcmp.eq.s32.totalorder %v3912, 1
        %vm4145 = vcmp.eq.s32.totalorder %v3913, 1
        %vm4146 = vcmp.eq.s32.totalorder %v3914, 1
        %vm4147 = vcmp.eq.s32.totalorder %v3915, 1
        %vm4148 = vcmp.eq.s32.totalorder %v3916, 1
        %vm4149 = vcmp.eq.s32.totalorder %v3917, 1
        %vm4150 = vcmp.eq.s32.totalorder %v3918, 1
        %vm4151 = vcmp.eq.s32.totalorder %v3919, 1
        %vm4152 = vcmp.eq.s32.totalorder %v3920, 1
        %vm4153 = vcmp.eq.s32.totalorder %v3921, 1
        %vm4154 = vcmp.eq.s32.totalorder %v3922, 1
        %vm4155 = vcmp.eq.s32.totalorder %v3923, 1
        %vm4156 = vcmp.eq.s32.totalorder %v3924, 1
        %vm4157 = vcmp.eq.s32.totalorder %v3925, 1
        %vm4158 = vcmp.eq.s32.totalorder %v3926, 1
        %vm4159 = vcmp.eq.s32.totalorder %v3927, 1
        %vm4160 = vcmp.eq.s32.totalorder %v3928, 1
        %vm4161 = vcmp.eq.s32.totalorder %v3929, 1
        %vm4162 = vcmp.eq.s32.totalorder %v3930, 1
        %vm4163 = vcmp.eq.s32.totalorder %v3931, 1
        %vm4164 = vcmp.eq.s32.totalorder %v3932, 1
        %vm4165 = vcmp.eq.s32.totalorder %v3933, 1
        %v4166 = vsel %vm4134, 1, 0
        %v4167 = vsel %vm4135, 1, 0
        %v4168 = vsel %vm4136, 1, 0
        %v4169 = vsel %vm4137, 1, 0
        %v4170 = vsel %vm4138, 1, 0
        %v4171 = vsel %vm4139, 1, 0
        %v4172 = vsel %vm4140, 1, 0
        %v4173 = vsel %vm4141, 1, 0
        %v4174 = vsel %vm4142, 1, 0
        %v4175 = vsel %vm4143, 1, 0
        %v4176 = vsel %vm4144, 1, 0
        %v4177 = vsel %vm4145, 1, 0
        %v4178 = vsel %vm4146, 1, 0
        %v4179 = vsel %vm4147, 1, 0
        %v4180 = vsel %vm4148, 1, 0
        %v4181 = vsel %vm4149, 1, 0
        %v4182 = vsel %vm4150, 1, 0
        %v4183 = vsel %vm4151, 1, 0
        %v4184 = vsel %vm4152, 1, 0
        %v4185 = vsel %vm4153, 1, 0
        %v4186 = vsel %vm4154, 1, 0
        %v4187 = vsel %vm4155, 1, 0
        %v4188 = vsel %vm4156, 1, 0
        %v4189 = vsel %vm4157, 1, 0
        %v4190 = vsel %vm4158, 1, 0
        %v4191 = vsel %vm4159, 1, 0
        %v4192 = vsel %vm4160, 1, 0
        %v4193 = vsel %vm4161, 1, 0
        %v4194 = vsel %vm4162, 1, 0
        %v4195 = vsel %vm4163, 1, 0
        %v4196 = vsel %vm4164, 1, 0
        %v4197 = vsel %vm4165, 1, 0
        %v4198 = vcvt.s32.f32 %v4166
        %v4199 = vcvt.s32.f32 %v4167
        %v4200 = vcvt.s32.f32 %v4168
        %v4201 = vcvt.s32.f32 %v4169
        %v4202 = vcvt.s32.f32 %v4170
        %v4203 = vcvt.s32.f32 %v4171
        %v4204 = vcvt.s32.f32 %v4172
        %v4205 = vcvt.s32.f32 %v4173
        %v4206 = vcvt.s32.f32 %v4174
        %v4207 = vcvt.s32.f32 %v4175
        %v4208 = vcvt.s32.f32 %v4176
        %v4209 = vcvt.s32.f32 %v4177
        %v4210 = vcvt.s32.f32 %v4178
        %v4211 = vcvt.s32.f32 %v4179
        %v4212 = vcvt.s32.f32 %v4180
        %v4213 = vcvt.s32.f32 %v4181
        %v4214 = vcvt.s32.f32 %v4182
        %v4215 = vcvt.s32.f32 %v4183
        %v4216 = vcvt.s32.f32 %v4184
        %v4217 = vcvt.s32.f32 %v4185
        %v4218 = vcvt.s32.f32 %v4186
        %v4219 = vcvt.s32.f32 %v4187
        %v4220 = vcvt.s32.f32 %v4188
        %v4221 = vcvt.s32.f32 %v4189
        %v4222 = vcvt.s32.f32 %v4190
        %v4223 = vcvt.s32.f32 %v4191
        %v4224 = vcvt.s32.f32 %v4192
        %v4225 = vcvt.s32.f32 %v4193
        %v4226 = vcvt.s32.f32 %v4194
        %v4227 = vcvt.s32.f32 %v4195
        %v4228 = vcvt.s32.f32 %v4196
        %v4229 = vcvt.s32.f32 %v4197
        %v4230 = vld [vmem:[%s11] sm:$0x1]
        %4232 = vset.pattern.permute.xlu0 0
        %4233 = vperm.xlu0 %4232, %v4198
        %v4234 = vpop.permute.xlu0 %4233
        %4237 = vset.pattern.permute.xlu0 0
        %4238 = vperm.xlu0 %4237, %v4199
        %v4239 = vpop.permute.xlu0 %4238
        %4242 = vset.pattern.permute.xlu0 0
        %4243 = vperm.xlu0 %4242, %v4200
        %v4244 = vpop.permute.xlu0 %4243
        %4247 = vset.pattern.permute.xlu0 0
        %4248 = vperm.xlu0 %4247, %v4201
        %v4249 = vpop.permute.xlu0 %4248
        %4252 = vset.pattern.permute.xlu0 0
        %4253 = vperm.xlu0 %4252, %v4202
        %v4254 = vpop.permute.xlu0 %4253
        %4257 = vset.pattern.permute.xlu0 0
        %4258 = vperm.xlu0 %4257, %v4203
        %v4259 = vpop.permute.xlu0 %4258
        %4262 = vset.pattern.permute.xlu0 0
        %4263 = vperm.xlu0 %4262, %v4204
        %v4264 = vpop.permute.xlu0 %4263
        %4267 = vset.pattern.permute.xlu0 0
        %4268 = vperm.xlu0 %4267, %v4205
        %v4269 = vpop.permute.xlu0 %4268
        %4272 = vset.pattern.permute.xlu0 0
        %4273 = vperm.xlu0 %4272, %v4206
        %v4274 = vpop.permute.xlu0 %4273
        %4277 = vset.pattern.permute.xlu0 0
        %4278 = vperm.xlu0 %4277, %v4207
        %v4279 = vpop.permute.xlu0 %4278
        %4282 = vset.pattern.permute.xlu0 0
        %4283 = vperm.xlu0 %4282, %v4208
        %v4284 = vpop.permute.xlu0 %4283
        %4287 = vset.pattern.permute.xlu0 0
        %4288 = vperm.xlu0 %4287, %v4209
        %v4289 = vpop.permute.xlu0 %4288
        %4292 = vset.pattern.permute.xlu0 0
        %4293 = vperm.xlu0 %4292, %v4210
        %v4294 = vpop.permute.xlu0 %4293
        %4297 = vset.pattern.permute.xlu0 0
        %4298 = vperm.xlu0 %4297, %v4211
        %v4299 = vpop.permute.xlu0 %4298
        %4302 = vset.pattern.permute.xlu0 0
        %4303 = vperm.xlu0 %4302, %v4212
        %v4304 = vpop.permute.xlu0 %4303
        %4307 = vset.pattern.permute.xlu0 0
        %4308 = vperm.xlu0 %4307, %v4213
        %v4309 = vpop.permute.xlu0 %4308
        %4312 = vset.pattern.permute.xlu0 0
        %4313 = vperm.xlu0 %4312, %v4214
        %v4314 = vpop.permute.xlu0 %4313
        %4317 = vset.pattern.permute.xlu0 0
        %4318 = vperm.xlu0 %4317, %v4215
        %v4319 = vpop.permute.xlu0 %4318
        %4322 = vset.pattern.permute.xlu0 0
        %4323 = vperm.xlu0 %4322, %v4216
        %v4324 = vpop.permute.xlu0 %4323
        %4327 = vset.pattern.permute.xlu0 0
        %4328 = vperm.xlu0 %4327, %v4217
        %v4329 = vpop.permute.xlu0 %4328
        %4332 = vset.pattern.permute.xlu0 0
        %4333 = vperm.xlu0 %4332, %v4218
        %v4334 = vpop.permute.xlu0 %4333
        %4337 = vset.pattern.permute.xlu0 0
        %4338 = vperm.xlu0 %4337, %v4219
        %v4339 = vpop.permute.xlu0 %4338
        %4342 = vset.pattern.permute.xlu0 0
        %4343 = vperm.xlu0 %4342, %v4220
        %v4344 = vpop.permute.xlu0 %4343
        %4347 = vset.pattern.permute.xlu0 0
        %4348 = vperm.xlu0 %4347, %v4221
        %v4349 = vpop.permute.xlu0 %4348
        %4352 = vset.pattern.permute.xlu0 0
        %4353 = vperm.xlu0 %4352, %v4222
        %v4354 = vpop.permute.xlu0 %4353
        %4357 = vset.pattern.permute.xlu0 0
        %4358 = vperm.xlu0 %4357, %v4223
        %v4359 = vpop.permute.xlu0 %4358
        %4362 = vset.pattern.permute.xlu0 0
        %4363 = vperm.xlu0 %4362, %v4224
        %v4364 = vpop.permute.xlu0 %4363
        %4367 = vset.pattern.permute.xlu0 0
        %4368 = vperm.xlu0 %4367, %v4225
        %v4369 = vpop.permute.xlu0 %4368
        %4372 = vset.pattern.permute.xlu0 0
        %4373 = vperm.xlu0 %4372, %v4226
        %v4374 = vpop.permute.xlu0 %4373
        %4377 = vset.pattern.permute.xlu0 0
        %4378 = vperm.xlu0 %4377, %v4227
        %v4379 = vpop.permute.xlu0 %4378
        %4382 = vset.pattern.permute.xlu0 0
        %4383 = vperm.xlu0 %4382, %v4228
        %v4384 = vpop.permute.xlu0 %4383
        %4387 = vset.pattern.permute.xlu0 0
        %4388 = vperm.xlu0 %4387, %v4229
        %v4389 = vpop.permute.xlu0 %4388
        %v4391 = vlaneseq
        %v4392 = vshrl.u32 %v4391, 7
        %v4393 = vsub.s32 0, %v4392
        %v4394 = vrot.slane %v4230, %v4393
        %v4395 = vmul.f32 %v4234, %v4394
        %v4396 = vmul.f32 %v4239, %v4394
        %v4397 = vmul.f32 %v4244, %v4394
        %v4398 = vmul.f32 %v4249, %v4394
        %v4399 = vmul.f32 %v4254, %v4394
        %v4400 = vmul.f32 %v4259, %v4394
        %v4401 = vmul.f32 %v4264, %v4394
        %v4402 = vmul.f32 %v4269, %v4394
        %v4403 = vmul.f32 %v4274, %v4394
        %v4404 = vmul.f32 %v4279, %v4394
        %v4405 = vmul.f32 %v4284, %v4394
        %v4406 = vmul.f32 %v4289, %v4394
        %v4407 = vmul.f32 %v4294, %v4394
        %v4408 = vmul.f32 %v4299, %v4394
        %v4409 = vmul.f32 %v4304, %v4394
        %v4410 = vmul.f32 %v4309, %v4394
        %v4411 = vmul.f32 %v4314, %v4394
        %v4412 = vmul.f32 %v4319, %v4394
        %v4413 = vmul.f32 %v4324, %v4394
        %v4414 = vmul.f32 %v4329, %v4394
        %v4415 = vmul.f32 %v4334, %v4394
        %v4416 = vmul.f32 %v4339, %v4394
        %v4417 = vmul.f32 %v4344, %v4394
        %v4418 = vmul.f32 %v4349, %v4394
        %v4419 = vmul.f32 %v4354, %v4394
        %v4420 = vmul.f32 %v4359, %v4394
        %v4421 = vmul.f32 %v4364, %v4394
        %v4422 = vmul.f32 %v4369, %v4394
        %v4423 = vmul.f32 %v4374, %v4394
        %v4424 = vmul.f32 %v4379, %v4394
        %v4425 = vmul.f32 %v4384, %v4394
        %v4426 = vmul.f32 %v4389, %v4394
        %v4427 = vadd.f32 %v4008, %v4395
        %v4428 = vadd.f32 %v4011, %v4396
        %v4429 = vadd.f32 %v4016, %v4397
        %v4430 = vadd.f32 %v4019, %v4398
        %v4431 = vadd.f32 %v4024, %v4399
        %v4432 = vadd.f32 %v4027, %v4400
        %v4433 = vadd.f32 %v4032, %v4401
        %v4434 = vadd.f32 %v4035, %v4402
        %v4435 = vadd.f32 %v4040, %v4403
        %v4436 = vadd.f32 %v4043, %v4404
        %v4437 = vadd.f32 %v4048, %v4405
        %v4438 = vadd.f32 %v4051, %v4406
        %v4439 = vadd.f32 %v4056, %v4407
        %v4440 = vadd.f32 %v4059, %v4408
        %v4441 = vadd.f32 %v4064, %v4409
        %v4442 = vadd.f32 %v4067, %v4410
        %v4443 = vadd.f32 %v4072, %v4411
        %v4444 = vadd.f32 %v4075, %v4412
        %v4445 = vadd.f32 %v4080, %v4413
        %v4446 = vadd.f32 %v4083, %v4414
        %v4447 = vadd.f32 %v4088, %v4415
        %v4448 = vadd.f32 %v4091, %v4416
        %v4449 = vadd.f32 %v4096, %v4417
        %v4450 = vadd.f32 %v4099, %v4418
        %v4451 = vadd.f32 %v4104, %v4419
        %v4452 = vadd.f32 %v4107, %v4420
        %v4453 = vadd.f32 %v4112, %v4421
        %v4454 = vadd.f32 %v4115, %v4422
        %v4455 = vadd.f32 %v4120, %v4423
        %v4456 = vadd.f32 %v4123, %v4424
        %v4457 = vadd.f32 %v4128, %v4425
        %v4458 = vadd.f32 %v4131, %v4426
        %vm4459 = vcmp.eq.s32.totalorder %v3902, 2
        %vm4460 = vcmp.eq.s32.totalorder %v3903, 2
        %vm4461 = vcmp.eq.s32.totalorder %v3904, 2
        %vm4462 = vcmp.eq.s32.totalorder %v3905, 2
        %vm4463 = vcmp.eq.s32.totalorder %v3906, 2
        %vm4464 = vcmp.eq.s32.totalorder %v3907, 2
        %vm4465 = vcmp.eq.s32.totalorder %v3908, 2
        %vm4466 = vcmp.eq.s32.totalorder %v3909, 2
        %vm4467 = vcmp.eq.s32.totalorder %v3910, 2
        %vm4468 = vcmp.eq.s32.totalorder %v3911, 2
        %vm4469 = vcmp.eq.s32.totalorder %v3912, 2
        %vm4470 = vcmp.eq.s32.totalorder %v3913, 2
        %vm4471 = vcmp.eq.s32.totalorder %v3914, 2
        %vm4472 = vcmp.eq.s32.totalorder %v3915, 2
        %vm4473 = vcmp.eq.s32.totalorder %v3916, 2
        %vm4474 = vcmp.eq.s32.totalorder %v3917, 2
        %vm4475 = vcmp.eq.s32.totalorder %v3918, 2
        %vm4476 = vcmp.eq.s32.totalorder %v3919, 2
        %vm4477 = vcmp.eq.s32.totalorder %v3920, 2
        %vm4478 = vcmp.eq.s32.totalorder %v3921, 2
        %vm4479 = vcmp.eq.s32.totalorder %v3922, 2
        %vm4480 = vcmp.eq.s32.totalorder %v3923, 2
        %vm4481 = vcmp.eq.s32.totalorder %v3924, 2
        %vm4482 = vcmp.eq.s32.totalorder %v3925, 2
        %vm4483 = vcmp.eq.s32.totalorder %v3926, 2
        %vm4484 = vcmp.eq.s32.totalorder %v3927, 2
        %vm4485 = vcmp.eq.s32.totalorder %v3928, 2
        %vm4486 = vcmp.eq.s32.totalorder %v3929, 2
        %vm4487 = vcmp.eq.s32.totalorder %v3930, 2
        %vm4488 = vcmp.eq.s32.totalorder %v3931, 2
        %vm4489 = vcmp.eq.s32.totalorder %v3932, 2
        %vm4490 = vcmp.eq.s32.totalorder %v3933, 2
        %v4491 = vsel %vm4459, 1, 0
        %v4492 = vsel %vm4460, 1, 0
        %v4493 = vsel %vm4461, 1, 0
        %v4494 = vsel %vm4462, 1, 0
        %v4495 = vsel %vm4463, 1, 0
        %v4496 = vsel %vm4464, 1, 0
        %v4497 = vsel %vm4465, 1, 0
        %v4498 = vsel %vm4466, 1, 0
        %v4499 = vsel %vm4467, 1, 0
        %v4500 = vsel %vm4468, 1, 0
        %v4501 = vsel %vm4469, 1, 0
        %v4502 = vsel %vm4470, 1, 0
        %v4503 = vsel %vm4471, 1, 0
        %v4504 = vsel %vm4472, 1, 0
        %v4505 = vsel %vm4473, 1, 0
        %v4506 = vsel %vm4474, 1, 0
        %v4507 = vsel %vm4475, 1, 0
        %v4508 = vsel %vm4476, 1, 0
        %v4509 = vsel %vm4477, 1, 0
        %v4510 = vsel %vm4478, 1, 0
        %v4511 = vsel %vm4479, 1, 0
        %v4512 = vsel %vm4480, 1, 0
        %v4513 = vsel %vm4481, 1, 0
        %v4514 = vsel %vm4482, 1, 0
        %v4515 = vsel %vm4483, 1, 0
        %v4516 = vsel %vm4484, 1, 0
        %v4517 = vsel %vm4485, 1, 0
        %v4518 = vsel %vm4486, 1, 0
        %v4519 = vsel %vm4487, 1, 0
        %v4520 = vsel %vm4488, 1, 0
        %v4521 = vsel %vm4489, 1, 0
        %v4522 = vsel %vm4490, 1, 0
        %v4523 = vcvt.s32.f32 %v4491
        %v4524 = vcvt.s32.f32 %v4492
        %v4525 = vcvt.s32.f32 %v4493
        %v4526 = vcvt.s32.f32 %v4494
        %v4527 = vcvt.s32.f32 %v4495
        %v4528 = vcvt.s32.f32 %v4496
        %v4529 = vcvt.s32.f32 %v4497
        %v4530 = vcvt.s32.f32 %v4498
        %v4531 = vcvt.s32.f32 %v4499
        %v4532 = vcvt.s32.f32 %v4500
        %v4533 = vcvt.s32.f32 %v4501
        %v4534 = vcvt.s32.f32 %v4502
        %v4535 = vcvt.s32.f32 %v4503
        %v4536 = vcvt.s32.f32 %v4504
        %v4537 = vcvt.s32.f32 %v4505
        %v4538 = vcvt.s32.f32 %v4506
        %v4539 = vcvt.s32.f32 %v4507
        %v4540 = vcvt.s32.f32 %v4508
        %v4541 = vcvt.s32.f32 %v4509
        %v4542 = vcvt.s32.f32 %v4510
        %v4543 = vcvt.s32.f32 %v4511
        %v4544 = vcvt.s32.f32 %v4512
        %v4545 = vcvt.s32.f32 %v4513
        %v4546 = vcvt.s32.f32 %v4514
        %v4547 = vcvt.s32.f32 %v4515
        %v4548 = vcvt.s32.f32 %v4516
        %v4549 = vcvt.s32.f32 %v4517
        %v4550 = vcvt.s32.f32 %v4518
        %v4551 = vcvt.s32.f32 %v4519
        %v4552 = vcvt.s32.f32 %v4520
        %v4553 = vcvt.s32.f32 %v4521
        %v4554 = vcvt.s32.f32 %v4522
        %v4555 = vld [vmem:[%s11 + $0x1] sm:$0x1]
        %4557 = vset.pattern.permute.xlu0 0
        %4558 = vperm.xlu0 %4557, %v4523
        %v4559 = vpop.permute.xlu0 %4558
        %4562 = vset.pattern.permute.xlu0 0
        %4563 = vperm.xlu0 %4562, %v4524
        %v4564 = vpop.permute.xlu0 %4563
        %4567 = vset.pattern.permute.xlu0 0
        %4568 = vperm.xlu0 %4567, %v4525
        %v4569 = vpop.permute.xlu0 %4568
        %4572 = vset.pattern.permute.xlu0 0
        %4573 = vperm.xlu0 %4572, %v4526
        %v4574 = vpop.permute.xlu0 %4573
        %4577 = vset.pattern.permute.xlu0 0
        %4578 = vperm.xlu0 %4577, %v4527
        %v4579 = vpop.permute.xlu0 %4578
        %4582 = vset.pattern.permute.xlu0 0
        %4583 = vperm.xlu0 %4582, %v4528
        %v4584 = vpop.permute.xlu0 %4583
        %4587 = vset.pattern.permute.xlu0 0
        %4588 = vperm.xlu0 %4587, %v4529
        %v4589 = vpop.permute.xlu0 %4588
        %4592 = vset.pattern.permute.xlu0 0
        %4593 = vperm.xlu0 %4592, %v4530
        %v4594 = vpop.permute.xlu0 %4593
        %4597 = vset.pattern.permute.xlu0 0
        %4598 = vperm.xlu0 %4597, %v4531
        %v4599 = vpop.permute.xlu0 %4598
        %4602 = vset.pattern.permute.xlu0 0
        %4603 = vperm.xlu0 %4602, %v4532
        %v4604 = vpop.permute.xlu0 %4603
        %4607 = vset.pattern.permute.xlu0 0
        %4608 = vperm.xlu0 %4607, %v4533
        %v4609 = vpop.permute.xlu0 %4608
        %4612 = vset.pattern.permute.xlu0 0
        %4613 = vperm.xlu0 %4612, %v4534
        %v4614 = vpop.permute.xlu0 %4613
        %4617 = vset.pattern.permute.xlu0 0
        %4618 = vperm.xlu0 %4617, %v4535
        %v4619 = vpop.permute.xlu0 %4618
        %4622 = vset.pattern.permute.xlu0 0
        %4623 = vperm.xlu0 %4622, %v4536
        %v4624 = vpop.permute.xlu0 %4623
        %4627 = vset.pattern.permute.xlu0 0
        %4628 = vperm.xlu0 %4627, %v4537
        %v4629 = vpop.permute.xlu0 %4628
        %4632 = vset.pattern.permute.xlu0 0
        %4633 = vperm.xlu0 %4632, %v4538
        %v4634 = vpop.permute.xlu0 %4633
        %4637 = vset.pattern.permute.xlu0 0
        %4638 = vperm.xlu0 %4637, %v4539
        %v4639 = vpop.permute.xlu0 %4638
        %4642 = vset.pattern.permute.xlu0 0
        %4643 = vperm.xlu0 %4642, %v4540
        %v4644 = vpop.permute.xlu0 %4643
        %4647 = vset.pattern.permute.xlu0 0
        %4648 = vperm.xlu0 %4647, %v4541
        %v4649 = vpop.permute.xlu0 %4648
        %4652 = vset.pattern.permute.xlu0 0
        %4653 = vperm.xlu0 %4652, %v4542
        %v4654 = vpop.permute.xlu0 %4653
        %4657 = vset.pattern.permute.xlu0 0
        %4658 = vperm.xlu0 %4657, %v4543
        %v4659 = vpop.permute.xlu0 %4658
        %4662 = vset.pattern.permute.xlu0 0
        %4663 = vperm.xlu0 %4662, %v4544
        %v4664 = vpop.permute.xlu0 %4663
        %4667 = vset.pattern.permute.xlu0 0
        %4668 = vperm.xlu0 %4667, %v4545
        %v4669 = vpop.permute.xlu0 %4668
        %4672 = vset.pattern.permute.xlu0 0
        %4673 = vperm.xlu0 %4672, %v4546
        %v4674 = vpop.permute.xlu0 %4673
        %4677 = vset.pattern.permute.xlu0 0
        %4678 = vperm.xlu0 %4677, %v4547
        %v4679 = vpop.permute.xlu0 %4678
        %4682 = vset.pattern.permute.xlu0 0
        %4683 = vperm.xlu0 %4682, %v4548
        %v4684 = vpop.permute.xlu0 %4683
        %4687 = vset.pattern.permute.xlu0 0
        %4688 = vperm.xlu0 %4687, %v4549
        %v4689 = vpop.permute.xlu0 %4688
        %4692 = vset.pattern.permute.xlu0 0
        %4693 = vperm.xlu0 %4692, %v4550
        %v4694 = vpop.permute.xlu0 %4693
        %4697 = vset.pattern.permute.xlu0 0
        %4698 = vperm.xlu0 %4697, %v4551
        %v4699 = vpop.permute.xlu0 %4698
        %4702 = vset.pattern.permute.xlu0 0
        %4703 = vperm.xlu0 %4702, %v4552
        %v4704 = vpop.permute.xlu0 %4703
        %4707 = vset.pattern.permute.xlu0 0
        %4708 = vperm.xlu0 %4707, %v4553
        %v4709 = vpop.permute.xlu0 %4708
        %4712 = vset.pattern.permute.xlu0 0
        %4713 = vperm.xlu0 %4712, %v4554
        %v4714 = vpop.permute.xlu0 %4713
        %v4716 = vlaneseq
        %v4717 = vshrl.u32 %v4716, 7
        %v4718 = vsub.s32 0, %v4717
        %v4719 = vrot.slane %v4555, %v4718
        %v4720 = vmul.f32 %v4559, %v4719
        %v4721 = vmul.f32 %v4564, %v4719
        %v4722 = vmul.f32 %v4569, %v4719
        %v4723 = vmul.f32 %v4574, %v4719
        %v4724 = vmul.f32 %v4579, %v4719
        %v4725 = vmul.f32 %v4584, %v4719
        %v4726 = vmul.f32 %v4589, %v4719
        %v4727 = vmul.f32 %v4594, %v4719
        %v4728 = vmul.f32 %v4599, %v4719
        %v4729 = vmul.f32 %v4604, %v4719
        %v4730 = vmul.f32 %v4609, %v4719
        %v4731 = vmul.f32 %v4614, %v4719
        %v4732 = vmul.f32 %v4619, %v4719
        %v4733 = vmul.f32 %v4624, %v4719
        %v4734 = vmul.f32 %v4629, %v4719
        %v4735 = vmul.f32 %v4634, %v4719
        %v4736 = vmul.f32 %v4639, %v4719
        %v4737 = vmul.f32 %v4644, %v4719
        %v4738 = vmul.f32 %v4649, %v4719
        %v4739 = vmul.f32 %v4654, %v4719
        %v4740 = vmul.f32 %v4659, %v4719
        %v4741 = vmul.f32 %v4664, %v4719
        %v4742 = vmul.f32 %v4669, %v4719
        %v4743 = vmul.f32 %v4674, %v4719
        %v4744 = vmul.f32 %v4679, %v4719
        %v4745 = vmul.f32 %v4684, %v4719
        %v4746 = vmul.f32 %v4689, %v4719
        %v4747 = vmul.f32 %v4694, %v4719
        %v4748 = vmul.f32 %v4699, %v4719
        %v4749 = vmul.f32 %v4704, %v4719
        %v4750 = vmul.f32 %v4709, %v4719
        %v4751 = vmul.f32 %v4714, %v4719
        %v4752 = vadd.f32 %v4427, %v4720
        %v4753 = vadd.f32 %v4428, %v4721
        %v4754 = vadd.f32 %v4429, %v4722
        %v4755 = vadd.f32 %v4430, %v4723
        %v4756 = vadd.f32 %v4431, %v4724
        %v4757 = vadd.f32 %v4432, %v4725
        %v4758 = vadd.f32 %v4433, %v4726
        %v4759 = vadd.f32 %v4434, %v4727
        %v4760 = vadd.f32 %v4435, %v4728
        %v4761 = vadd.f32 %v4436, %v4729
        %v4762 = vadd.f32 %v4437, %v4730
        %v4763 = vadd.f32 %v4438, %v4731
        %v4764 = vadd.f32 %v4439, %v4732
        %v4765 = vadd.f32 %v4440, %v4733
        %v4766 = vadd.f32 %v4441, %v4734
        %v4767 = vadd.f32 %v4442, %v4735
        %v4768 = vadd.f32 %v4443, %v4736
        %v4769 = vadd.f32 %v4444, %v4737
        %v4770 = vadd.f32 %v4445, %v4738
        %v4771 = vadd.f32 %v4446, %v4739
        %v4772 = vadd.f32 %v4447, %v4740
        %v4773 = vadd.f32 %v4448, %v4741
        %v4774 = vadd.f32 %v4449, %v4742
        %v4775 = vadd.f32 %v4450, %v4743
        %v4776 = vadd.f32 %v4451, %v4744
        %v4777 = vadd.f32 %v4452, %v4745
        %v4778 = vadd.f32 %v4453, %v4746
        %v4779 = vadd.f32 %v4454, %v4747
        %v4780 = vadd.f32 %v4455, %v4748
        %v4781 = vadd.f32 %v4456, %v4749
        %v4782 = vadd.f32 %v4457, %v4750
        %v4783 = vadd.f32 %v4458, %v4751
        %vm4784 = vcmp.eq.s32.totalorder %v3902, 3
        %vm4785 = vcmp.eq.s32.totalorder %v3903, 3
        %vm4786 = vcmp.eq.s32.totalorder %v3904, 3
        %vm4787 = vcmp.eq.s32.totalorder %v3905, 3
        %vm4788 = vcmp.eq.s32.totalorder %v3906, 3
        %vm4789 = vcmp.eq.s32.totalorder %v3907, 3
        %vm4790 = vcmp.eq.s32.totalorder %v3908, 3
        %vm4791 = vcmp.eq.s32.totalorder %v3909, 3
        %vm4792 = vcmp.eq.s32.totalorder %v3910, 3
        %vm4793 = vcmp.eq.s32.totalorder %v3911, 3
        %vm4794 = vcmp.eq.s32.totalorder %v3912, 3
        %vm4795 = vcmp.eq.s32.totalorder %v3913, 3
        %vm4796 = vcmp.eq.s32.totalorder %v3914, 3
        %vm4797 = vcmp.eq.s32.totalorder %v3915, 3
        %vm4798 = vcmp.eq.s32.totalorder %v3916, 3
        %vm4799 = vcmp.eq.s32.totalorder %v3917, 3
        %vm4800 = vcmp.eq.s32.totalorder %v3918, 3
        %vm4801 = vcmp.eq.s32.totalorder %v3919, 3
        %vm4802 = vcmp.eq.s32.totalorder %v3920, 3
        %vm4803 = vcmp.eq.s32.totalorder %v3921, 3
        %vm4804 = vcmp.eq.s32.totalorder %v3922, 3
        %vm4805 = vcmp.eq.s32.totalorder %v3923, 3
        %vm4806 = vcmp.eq.s32.totalorder %v3924, 3
        %vm4807 = vcmp.eq.s32.totalorder %v3925, 3
        %vm4808 = vcmp.eq.s32.totalorder %v3926, 3
        %vm4809 = vcmp.eq.s32.totalorder %v3927, 3
        %vm4810 = vcmp.eq.s32.totalorder %v3928, 3
        %vm4811 = vcmp.eq.s32.totalorder %v3929, 3
        %vm4812 = vcmp.eq.s32.totalorder %v3930, 3
        %vm4813 = vcmp.eq.s32.totalorder %v3931, 3
        %vm4814 = vcmp.eq.s32.totalorder %v3932, 3
        %vm4815 = vcmp.eq.s32.totalorder %v3933, 3
        %v4816 = vsel %vm4784, 1, 0
        %v4817 = vsel %vm4785, 1, 0
        %v4818 = vsel %vm4786, 1, 0
        %v4819 = vsel %vm4787, 1, 0
        %v4820 = vsel %vm4788, 1, 0
        %v4821 = vsel %vm4789, 1, 0
        %v4822 = vsel %vm4790, 1, 0
        %v4823 = vsel %vm4791, 1, 0
        %v4824 = vsel %vm4792, 1, 0
        %v4825 = vsel %vm4793, 1, 0
        %v4826 = vsel %vm4794, 1, 0
        %v4827 = vsel %vm4795, 1, 0
        %v4828 = vsel %vm4796, 1, 0
        %v4829 = vsel %vm4797, 1, 0
        %v4830 = vsel %vm4798, 1, 0
        %v4831 = vsel %vm4799, 1, 0
        %v4832 = vsel %vm4800, 1, 0
        %v4833 = vsel %vm4801, 1, 0
        %v4834 = vsel %vm4802, 1, 0
        %v4835 = vsel %vm4803, 1, 0
        %v4836 = vsel %vm4804, 1, 0
        %v4837 = vsel %vm4805, 1, 0
        %v4838 = vsel %vm4806, 1, 0
        %v4839 = vsel %vm4807, 1, 0
        %v4840 = vsel %vm4808, 1, 0
        %v4841 = vsel %vm4809, 1, 0
        %v4842 = vsel %vm4810, 1, 0
        %v4843 = vsel %vm4811, 1, 0
        %v4844 = vsel %vm4812, 1, 0
        %v4845 = vsel %vm4813, 1, 0
        %v4846 = vsel %vm4814, 1, 0
        %v4847 = vsel %vm4815, 1, 0
        %v4848 = vcvt.s32.f32 %v4816
        %v4849 = vcvt.s32.f32 %v4817
        %v4850 = vcvt.s32.f32 %v4818
        %v4851 = vcvt.s32.f32 %v4819
        %v4852 = vcvt.s32.f32 %v4820
        %v4853 = vcvt.s32.f32 %v4821
        %v4854 = vcvt.s32.f32 %v4822
        %v4855 = vcvt.s32.f32 %v4823
        %v4856 = vcvt.s32.f32 %v4824
        %v4857 = vcvt.s32.f32 %v4825
        %v4858 = vcvt.s32.f32 %v4826
        %v4859 = vcvt.s32.f32 %v4827
        %v4860 = vcvt.s32.f32 %v4828
        %v4861 = vcvt.s32.f32 %v4829
        %v4862 = vcvt.s32.f32 %v4830
        %v4863 = vcvt.s32.f32 %v4831
        %v4864 = vcvt.s32.f32 %v4832
        %v4865 = vcvt.s32.f32 %v4833
        %v4866 = vcvt.s32.f32 %v4834
        %v4867 = vcvt.s32.f32 %v4835
        %v4868 = vcvt.s32.f32 %v4836
        %v4869 = vcvt.s32.f32 %v4837
        %v4870 = vcvt.s32.f32 %v4838
        %v4871 = vcvt.s32.f32 %v4839
        %v4872 = vcvt.s32.f32 %v4840
        %v4873 = vcvt.s32.f32 %v4841
        %v4874 = vcvt.s32.f32 %v4842
        %v4875 = vcvt.s32.f32 %v4843
        %v4876 = vcvt.s32.f32 %v4844
        %v4877 = vcvt.s32.f32 %v4845
        %v4878 = vcvt.s32.f32 %v4846
        %v4879 = vcvt.s32.f32 %v4847
        %v4880 = vld [vmem:[%s11 + $0x2] sm:$0x1]
        %4882 = vset.pattern.permute.xlu0 0
        %4883 = vperm.xlu0 %4882, %v4848
        %v4884 = vpop.permute.xlu0 %4883
        %4887 = vset.pattern.permute.xlu0 0
        %4888 = vperm.xlu0 %4887, %v4849
        %v4889 = vpop.permute.xlu0 %4888
        %4892 = vset.pattern.permute.xlu0 0
        %4893 = vperm.xlu0 %4892, %v4850
        %v4894 = vpop.permute.xlu0 %4893
        %4897 = vset.pattern.permute.xlu0 0
        %4898 = vperm.xlu0 %4897, %v4851
        %v4899 = vpop.permute.xlu0 %4898
        %4902 = vset.pattern.permute.xlu0 0
        %4903 = vperm.xlu0 %4902, %v4852
        %v4904 = vpop.permute.xlu0 %4903
        %4907 = vset.pattern.permute.xlu0 0
        %4908 = vperm.xlu0 %4907, %v4853
        %v4909 = vpop.permute.xlu0 %4908
        %4912 = vset.pattern.permute.xlu0 0
        %4913 = vperm.xlu0 %4912, %v4854
        %v4914 = vpop.permute.xlu0 %4913
        %4917 = vset.pattern.permute.xlu0 0
        %4918 = vperm.xlu0 %4917, %v4855
        %v4919 = vpop.permute.xlu0 %4918
        %4922 = vset.pattern.permute.xlu0 0
        %4923 = vperm.xlu0 %4922, %v4856
        %v4924 = vpop.permute.xlu0 %4923
        %4927 = vset.pattern.permute.xlu0 0
        %4928 = vperm.xlu0 %4927, %v4857
        %v4929 = vpop.permute.xlu0 %4928
        %4932 = vset.pattern.permute.xlu0 0
        %4933 = vperm.xlu0 %4932, %v4858
        %v4934 = vpop.permute.xlu0 %4933
        %4937 = vset.pattern.permute.xlu0 0
        %4938 = vperm.xlu0 %4937, %v4859
        %v4939 = vpop.permute.xlu0 %4938
        %4942 = vset.pattern.permute.xlu0 0
        %4943 = vperm.xlu0 %4942, %v4860
        %v4944 = vpop.permute.xlu0 %4943
        %4947 = vset.pattern.permute.xlu0 0
        %4948 = vperm.xlu0 %4947, %v4861
        %v4949 = vpop.permute.xlu0 %4948
        %4952 = vset.pattern.permute.xlu0 0
        %4953 = vperm.xlu0 %4952, %v4862
        %v4954 = vpop.permute.xlu0 %4953
        %4957 = vset.pattern.permute.xlu0 0
        %4958 = vperm.xlu0 %4957, %v4863
        %v4959 = vpop.permute.xlu0 %4958
        %4962 = vset.pattern.permute.xlu0 0
        %4963 = vperm.xlu0 %4962, %v4864
        %v4964 = vpop.permute.xlu0 %4963
        %4967 = vset.pattern.permute.xlu0 0
        %4968 = vperm.xlu0 %4967, %v4865
        %v4969 = vpop.permute.xlu0 %4968
        %4972 = vset.pattern.permute.xlu0 0
        %4973 = vperm.xlu0 %4972, %v4866
        %v4974 = vpop.permute.xlu0 %4973
        %4977 = vset.pattern.permute.xlu0 0
        %4978 = vperm.xlu0 %4977, %v4867
        %v4979 = vpop.permute.xlu0 %4978
        %4982 = vset.pattern.permute.xlu0 0
        %4983 = vperm.xlu0 %4982, %v4868
        %v4984 = vpop.permute.xlu0 %4983
        %4987 = vset.pattern.permute.xlu0 0
        %4988 = vperm.xlu0 %4987, %v4869
        %v4989 = vpop.permute.xlu0 %4988
        %4992 = vset.pattern.permute.xlu0 0
        %4993 = vperm.xlu0 %4992, %v4870
        %v4994 = vpop.permute.xlu0 %4993
        %4997 = vset.pattern.permute.xlu0 0
        %4998 = vperm.xlu0 %4997, %v4871
        %v4999 = vpop.permute.xlu0 %4998
        %5002 = vset.pattern.permute.xlu0 0
        %5003 = vperm.xlu0 %5002, %v4872
        %v5004 = vpop.permute.xlu0 %5003
        %5007 = vset.pattern.permute.xlu0 0
        %5008 = vperm.xlu0 %5007, %v4873
        %v5009 = vpop.permute.xlu0 %5008
        %5012 = vset.pattern.permute.xlu0 0
        %5013 = vperm.xlu0 %5012, %v4874
        %v5014 = vpop.permute.xlu0 %5013
        %5017 = vset.pattern.permute.xlu0 0
        %5018 = vperm.xlu0 %5017, %v4875
        %v5019 = vpop.permute.xlu0 %5018
        %5022 = vset.pattern.permute.xlu0 0
        %5023 = vperm.xlu0 %5022, %v4876
        %v5024 = vpop.permute.xlu0 %5023
        %5027 = vset.pattern.permute.xlu0 0
        %5028 = vperm.xlu0 %5027, %v4877
        %v5029 = vpop.permute.xlu0 %5028
        %5032 = vset.pattern.permute.xlu0 0
        %5033 = vperm.xlu0 %5032, %v4878
        %v5034 = vpop.permute.xlu0 %5033
        %5037 = vset.pattern.permute.xlu0 0
        %5038 = vperm.xlu0 %5037, %v4879
        %v5039 = vpop.permute.xlu0 %5038
        %v5041 = vlaneseq
        %v5042 = vshrl.u32 %v5041, 7
        %v5043 = vsub.s32 0, %v5042
        %v5044 = vrot.slane %v4880, %v5043
        %v5045 = vmul.f32 %v4884, %v5044
        %v5046 = vmul.f32 %v4889, %v5044
        %v5047 = vmul.f32 %v4894, %v5044
        %v5048 = vmul.f32 %v4899, %v5044
        %v5049 = vmul.f32 %v4904, %v5044
        %v5050 = vmul.f32 %v4909, %v5044
        %v5051 = vmul.f32 %v4914, %v5044
        %v5052 = vmul.f32 %v4919, %v5044
        %v5053 = vmul.f32 %v4924, %v5044
        %v5054 = vmul.f32 %v4929, %v5044
        %v5055 = vmul.f32 %v4934, %v5044
        %v5056 = vmul.f32 %v4939, %v5044
        %v5057 = vmul.f32 %v4944, %v5044
        %v5058 = vmul.f32 %v4949, %v5044
        %v5059 = vmul.f32 %v4954, %v5044
        %v5060 = vmul.f32 %v4959, %v5044
        %v5061 = vmul.f32 %v4964, %v5044
        %v5062 = vmul.f32 %v4969, %v5044
        %v5063 = vmul.f32 %v4974, %v5044
        %v5064 = vmul.f32 %v4979, %v5044
        %v5065 = vmul.f32 %v4984, %v5044
        %v5066 = vmul.f32 %v4989, %v5044
        %v5067 = vmul.f32 %v4994, %v5044
        %v5068 = vmul.f32 %v4999, %v5044
        %v5069 = vmul.f32 %v5004, %v5044
        %v5070 = vmul.f32 %v5009, %v5044
        %v5071 = vmul.f32 %v5014, %v5044
        %v5072 = vmul.f32 %v5019, %v5044
        %v5073 = vmul.f32 %v5024, %v5044
        %v5074 = vmul.f32 %v5029, %v5044
        %v5075 = vmul.f32 %v5034, %v5044
        %v5076 = vmul.f32 %v5039, %v5044
        %v5077 = vadd.f32 %v4752, %v5045
        %v5078 = vadd.f32 %v4753, %v5046
        %v5079 = vadd.f32 %v4754, %v5047
        %v5080 = vadd.f32 %v4755, %v5048
        %v5081 = vadd.f32 %v4756, %v5049
        %v5082 = vadd.f32 %v4757, %v5050
        %v5083 = vadd.f32 %v4758, %v5051
        %v5084 = vadd.f32 %v4759, %v5052
        %v5085 = vadd.f32 %v4760, %v5053
        %v5086 = vadd.f32 %v4761, %v5054
        %v5087 = vadd.f32 %v4762, %v5055
        %v5088 = vadd.f32 %v4763, %v5056
        %v5089 = vadd.f32 %v4764, %v5057
        %v5090 = vadd.f32 %v4765, %v5058
        %v5091 = vadd.f32 %v4766, %v5059
        %v5092 = vadd.f32 %v4767, %v5060
        %v5093 = vadd.f32 %v4768, %v5061
        %v5094 = vadd.f32 %v4769, %v5062
        %v5095 = vadd.f32 %v4770, %v5063
        %v5096 = vadd.f32 %v4771, %v5064
        %v5097 = vadd.f32 %v4772, %v5065
        %v5098 = vadd.f32 %v4773, %v5066
        %v5099 = vadd.f32 %v4774, %v5067
        %v5100 = vadd.f32 %v4775, %v5068
        %v5101 = vadd.f32 %v4776, %v5069
        %v5102 = vadd.f32 %v4777, %v5070
        %v5103 = vadd.f32 %v4778, %v5071
        %v5104 = vadd.f32 %v4779, %v5072
        %v5105 = vadd.f32 %v4780, %v5073
        %v5106 = vadd.f32 %v4781, %v5074
        %v5107 = vadd.f32 %v4782, %v5075
        %v5108 = vadd.f32 %v4783, %v5076
        %vm5109 = vcmp.eq.s32.totalorder %v3902, 4
        %vm5110 = vcmp.eq.s32.totalorder %v3903, 4
        %vm5111 = vcmp.eq.s32.totalorder %v3904, 4
        %vm5112 = vcmp.eq.s32.totalorder %v3905, 4
        %vm5113 = vcmp.eq.s32.totalorder %v3906, 4
        %vm5114 = vcmp.eq.s32.totalorder %v3907, 4
        %vm5115 = vcmp.eq.s32.totalorder %v3908, 4
        %vm5116 = vcmp.eq.s32.totalorder %v3909, 4
        %vm5117 = vcmp.eq.s32.totalorder %v3910, 4
        %vm5118 = vcmp.eq.s32.totalorder %v3911, 4
        %vm5119 = vcmp.eq.s32.totalorder %v3912, 4
        %vm5120 = vcmp.eq.s32.totalorder %v3913, 4
        %vm5121 = vcmp.eq.s32.totalorder %v3914, 4
        %vm5122 = vcmp.eq.s32.totalorder %v3915, 4
        %vm5123 = vcmp.eq.s32.totalorder %v3916, 4
        %vm5124 = vcmp.eq.s32.totalorder %v3917, 4
        %vm5125 = vcmp.eq.s32.totalorder %v3918, 4
        %vm5126 = vcmp.eq.s32.totalorder %v3919, 4
        %vm5127 = vcmp.eq.s32.totalorder %v3920, 4
        %vm5128 = vcmp.eq.s32.totalorder %v3921, 4
        %vm5129 = vcmp.eq.s32.totalorder %v3922, 4
        %vm5130 = vcmp.eq.s32.totalorder %v3923, 4
        %vm5131 = vcmp.eq.s32.totalorder %v3924, 4
        %vm5132 = vcmp.eq.s32.totalorder %v3925, 4
        %vm5133 = vcmp.eq.s32.totalorder %v3926, 4
        %vm5134 = vcmp.eq.s32.totalorder %v3927, 4
        %vm5135 = vcmp.eq.s32.totalorder %v3928, 4
        %vm5136 = vcmp.eq.s32.totalorder %v3929, 4
        %vm5137 = vcmp.eq.s32.totalorder %v3930, 4
        %vm5138 = vcmp.eq.s32.totalorder %v3931, 4
        %vm5139 = vcmp.eq.s32.totalorder %v3932, 4
        %vm5140 = vcmp.eq.s32.totalorder %v3933, 4
        %v5141 = vsel %vm5109, 1, 0
        %v5142 = vsel %vm5110, 1, 0
        %v5143 = vsel %vm5111, 1, 0
        %v5144 = vsel %vm5112, 1, 0
        %v5145 = vsel %vm5113, 1, 0
        %v5146 = vsel %vm5114, 1, 0
        %v5147 = vsel %vm5115, 1, 0
        %v5148 = vsel %vm5116, 1, 0
        %v5149 = vsel %vm5117, 1, 0
        %v5150 = vsel %vm5118, 1, 0
        %v5151 = vsel %vm5119, 1, 0
        %v5152 = vsel %vm5120, 1, 0
        %v5153 = vsel %vm5121, 1, 0
        %v5154 = vsel %vm5122, 1, 0
        %v5155 = vsel %vm5123, 1, 0
        %v5156 = vsel %vm5124, 1, 0
        %v5157 = vsel %vm5125, 1, 0
        %v5158 = vsel %vm5126, 1, 0
        %v5159 = vsel %vm5127, 1, 0
        %v5160 = vsel %vm5128, 1, 0
        %v5161 = vsel %vm5129, 1, 0
        %v5162 = vsel %vm5130, 1, 0
        %v5163 = vsel %vm5131, 1, 0
        %v5164 = vsel %vm5132, 1, 0
        %v5165 = vsel %vm5133, 1, 0
        %v5166 = vsel %vm5134, 1, 0
        %v5167 = vsel %vm5135, 1, 0
        %v5168 = vsel %vm5136, 1, 0
        %v5169 = vsel %vm5137, 1, 0
        %v5170 = vsel %vm5138, 1, 0
        %v5171 = vsel %vm5139, 1, 0
        %v5172 = vsel %vm5140, 1, 0
        %v5173 = vcvt.s32.f32 %v5141
        %v5174 = vcvt.s32.f32 %v5142
        %v5175 = vcvt.s32.f32 %v5143
        %v5176 = vcvt.s32.f32 %v5144
        %v5177 = vcvt.s32.f32 %v5145
        %v5178 = vcvt.s32.f32 %v5146
        %v5179 = vcvt.s32.f32 %v5147
        %v5180 = vcvt.s32.f32 %v5148
        %v5181 = vcvt.s32.f32 %v5149
        %v5182 = vcvt.s32.f32 %v5150
        %v5183 = vcvt.s32.f32 %v5151
        %v5184 = vcvt.s32.f32 %v5152
        %v5185 = vcvt.s32.f32 %v5153
        %v5186 = vcvt.s32.f32 %v5154
        %v5187 = vcvt.s32.f32 %v5155
        %v5188 = vcvt.s32.f32 %v5156
        %v5189 = vcvt.s32.f32 %v5157
        %v5190 = vcvt.s32.f32 %v5158
        %v5191 = vcvt.s32.f32 %v5159
        %v5192 = vcvt.s32.f32 %v5160
        %v5193 = vcvt.s32.f32 %v5161
        %v5194 = vcvt.s32.f32 %v5162
        %v5195 = vcvt.s32.f32 %v5163
        %v5196 = vcvt.s32.f32 %v5164
        %v5197 = vcvt.s32.f32 %v5165
        %v5198 = vcvt.s32.f32 %v5166
        %v5199 = vcvt.s32.f32 %v5167
        %v5200 = vcvt.s32.f32 %v5168
        %v5201 = vcvt.s32.f32 %v5169
        %v5202 = vcvt.s32.f32 %v5170
        %v5203 = vcvt.s32.f32 %v5171
        %v5204 = vcvt.s32.f32 %v5172
        %v5205 = vld [vmem:[%s11 + $0x3] sm:$0x1]
        %5207 = vset.pattern.permute.xlu0 0
        %5208 = vperm.xlu0 %5207, %v5173
        %v5209 = vpop.permute.xlu0 %5208
        %5212 = vset.pattern.permute.xlu0 0
        %5213 = vperm.xlu0 %5212, %v5174
        %v5214 = vpop.permute.xlu0 %5213
        %5217 = vset.pattern.permute.xlu0 0
        %5218 = vperm.xlu0 %5217, %v5175
        %v5219 = vpop.permute.xlu0 %5218
        %5222 = vset.pattern.permute.xlu0 0
        %5223 = vperm.xlu0 %5222, %v5176
        %v5224 = vpop.permute.xlu0 %5223
        %5227 = vset.pattern.permute.xlu0 0
        %5228 = vperm.xlu0 %5227, %v5177
        %v5229 = vpop.permute.xlu0 %5228
        %5232 = vset.pattern.permute.xlu0 0
        %5233 = vperm.xlu0 %5232, %v5178
        %v5234 = vpop.permute.xlu0 %5233
        %5237 = vset.pattern.permute.xlu0 0
        %5238 = vperm.xlu0 %5237, %v5179
        %v5239 = vpop.permute.xlu0 %5238
        %5242 = vset.pattern.permute.xlu0 0
        %5243 = vperm.xlu0 %5242, %v5180
        %v5244 = vpop.permute.xlu0 %5243
        %5247 = vset.pattern.permute.xlu0 0
        %5248 = vperm.xlu0 %5247, %v5181
        %v5249 = vpop.permute.xlu0 %5248
        %5252 = vset.pattern.permute.xlu0 0
        %5253 = vperm.xlu0 %5252, %v5182
        %v5254 = vpop.permute.xlu0 %5253
        %5257 = vset.pattern.permute.xlu0 0
        %5258 = vperm.xlu0 %5257, %v5183
        %v5259 = vpop.permute.xlu0 %5258
        %5262 = vset.pattern.permute.xlu0 0
        %5263 = vperm.xlu0 %5262, %v5184
        %v5264 = vpop.permute.xlu0 %5263
        %5267 = vset.pattern.permute.xlu0 0
        %5268 = vperm.xlu0 %5267, %v5185
        %v5269 = vpop.permute.xlu0 %5268
        %5272 = vset.pattern.permute.xlu0 0
        %5273 = vperm.xlu0 %5272, %v5186
        %v5274 = vpop.permute.xlu0 %5273
        %5277 = vset.pattern.permute.xlu0 0
        %5278 = vperm.xlu0 %5277, %v5187
        %v5279 = vpop.permute.xlu0 %5278
        %5282 = vset.pattern.permute.xlu0 0
        %5283 = vperm.xlu0 %5282, %v5188
        %v5284 = vpop.permute.xlu0 %5283
        %5287 = vset.pattern.permute.xlu0 0
        %5288 = vperm.xlu0 %5287, %v5189
        %v5289 = vpop.permute.xlu0 %5288
        %5292 = vset.pattern.permute.xlu0 0
        %5293 = vperm.xlu0 %5292, %v5190
        %v5294 = vpop.permute.xlu0 %5293
        %5297 = vset.pattern.permute.xlu0 0
        %5298 = vperm.xlu0 %5297, %v5191
        %v5299 = vpop.permute.xlu0 %5298
        %5302 = vset.pattern.permute.xlu0 0
        %5303 = vperm.xlu0 %5302, %v5192
        %v5304 = vpop.permute.xlu0 %5303
        %5307 = vset.pattern.permute.xlu0 0
        %5308 = vperm.xlu0 %5307, %v5193
        %v5309 = vpop.permute.xlu0 %5308
        %5312 = vset.pattern.permute.xlu0 0
        %5313 = vperm.xlu0 %5312, %v5194
        %v5314 = vpop.permute.xlu0 %5313
        %5317 = vset.pattern.permute.xlu0 0
        %5318 = vperm.xlu0 %5317, %v5195
        %v5319 = vpop.permute.xlu0 %5318
        %5322 = vset.pattern.permute.xlu0 0
        %5323 = vperm.xlu0 %5322, %v5196
        %v5324 = vpop.permute.xlu0 %5323
        %5327 = vset.pattern.permute.xlu0 0
        %5328 = vperm.xlu0 %5327, %v5197
        %v5329 = vpop.permute.xlu0 %5328
        %5332 = vset.pattern.permute.xlu0 0
        %5333 = vperm.xlu0 %5332, %v5198
        %v5334 = vpop.permute.xlu0 %5333
        %5337 = vset.pattern.permute.xlu0 0
        %5338 = vperm.xlu0 %5337, %v5199
        %v5339 = vpop.permute.xlu0 %5338
        %5342 = vset.pattern.permute.xlu0 0
        %5343 = vperm.xlu0 %5342, %v5200
        %v5344 = vpop.permute.xlu0 %5343
        %5347 = vset.pattern.permute.xlu0 0
        %5348 = vperm.xlu0 %5347, %v5201
        %v5349 = vpop.permute.xlu0 %5348
        %5352 = vset.pattern.permute.xlu0 0
        %5353 = vperm.xlu0 %5352, %v5202
        %v5354 = vpop.permute.xlu0 %5353
        %5357 = vset.pattern.permute.xlu0 0
        %5358 = vperm.xlu0 %5357, %v5203
        %v5359 = vpop.permute.xlu0 %5358
        %5362 = vset.pattern.permute.xlu0 0
        %5363 = vperm.xlu0 %5362, %v5204
        %v5364 = vpop.permute.xlu0 %5363
        %v5366 = vlaneseq
        %v5367 = vshrl.u32 %v5366, 7
        %v5368 = vsub.s32 0, %v5367
        %v5369 = vrot.slane %v5205, %v5368
        %v5370 = vmul.f32 %v5209, %v5369
        %v5371 = vmul.f32 %v5214, %v5369
        %v5372 = vmul.f32 %v5219, %v5369
        %v5373 = vmul.f32 %v5224, %v5369
        %v5374 = vmul.f32 %v5229, %v5369
        %v5375 = vmul.f32 %v5234, %v5369
        %v5376 = vmul.f32 %v5239, %v5369
        %v5377 = vmul.f32 %v5244, %v5369
        %v5378 = vmul.f32 %v5249, %v5369
        %v5379 = vmul.f32 %v5254, %v5369
        %v5380 = vmul.f32 %v5259, %v5369
        %v5381 = vmul.f32 %v5264, %v5369
        %v5382 = vmul.f32 %v5269, %v5369
        %v5383 = vmul.f32 %v5274, %v5369
        %v5384 = vmul.f32 %v5279, %v5369
        %v5385 = vmul.f32 %v5284, %v5369
        %v5386 = vmul.f32 %v5289, %v5369
        %v5387 = vmul.f32 %v5294, %v5369
        %v5388 = vmul.f32 %v5299, %v5369
        %v5389 = vmul.f32 %v5304, %v5369
        %v5390 = vmul.f32 %v5309, %v5369
        %v5391 = vmul.f32 %v5314, %v5369
        %v5392 = vmul.f32 %v5319, %v5369
        %v5393 = vmul.f32 %v5324, %v5369
        %v5394 = vmul.f32 %v5329, %v5369
        %v5395 = vmul.f32 %v5334, %v5369
        %v5396 = vmul.f32 %v5339, %v5369
        %v5397 = vmul.f32 %v5344, %v5369
        %v5398 = vmul.f32 %v5349, %v5369
        %v5399 = vmul.f32 %v5354, %v5369
        %v5400 = vmul.f32 %v5359, %v5369
        %v5401 = vmul.f32 %v5364, %v5369
        %v5402 = vadd.f32 %v5077, %v5370
        %v5403 = vadd.f32 %v5078, %v5371
        %v5404 = vadd.f32 %v5079, %v5372
        %v5405 = vadd.f32 %v5080, %v5373
        %v5406 = vadd.f32 %v5081, %v5374
        %v5407 = vadd.f32 %v5082, %v5375
        %v5408 = vadd.f32 %v5083, %v5376
        %v5409 = vadd.f32 %v5084, %v5377
        %v5410 = vadd.f32 %v5085, %v5378
        %v5411 = vadd.f32 %v5086, %v5379
        %v5412 = vadd.f32 %v5087, %v5380
        %v5413 = vadd.f32 %v5088, %v5381
        %v5414 = vadd.f32 %v5089, %v5382
        %v5415 = vadd.f32 %v5090, %v5383
        %v5416 = vadd.f32 %v5091, %v5384
        %v5417 = vadd.f32 %v5092, %v5385
        %v5418 = vadd.f32 %v5093, %v5386
        %v5419 = vadd.f32 %v5094, %v5387
        %v5420 = vadd.f32 %v5095, %v5388
        %v5421 = vadd.f32 %v5096, %v5389
        %v5422 = vadd.f32 %v5097, %v5390
        %v5423 = vadd.f32 %v5098, %v5391
        %v5424 = vadd.f32 %v5099, %v5392
        %v5425 = vadd.f32 %v5100, %v5393
        %v5426 = vadd.f32 %v5101, %v5394
        %v5427 = vadd.f32 %v5102, %v5395
        %v5428 = vadd.f32 %v5103, %v5396
        %v5429 = vadd.f32 %v5104, %v5397
        %v5430 = vadd.f32 %v5105, %v5398
        %v5431 = vadd.f32 %v5106, %v5399
        %v5432 = vadd.f32 %v5107, %v5400
        %v5433 = vadd.f32 %v5108, %v5401
        %vm5434 = vcmp.eq.s32.totalorder %v3902, 5
        %vm5435 = vcmp.eq.s32.totalorder %v3903, 5
        %vm5436 = vcmp.eq.s32.totalorder %v3904, 5
        %vm5437 = vcmp.eq.s32.totalorder %v3905, 5
        %vm5438 = vcmp.eq.s32.totalorder %v3906, 5
        %vm5439 = vcmp.eq.s32.totalorder %v3907, 5
        %vm5440 = vcmp.eq.s32.totalorder %v3908, 5
        %vm5441 = vcmp.eq.s32.totalorder %v3909, 5
        %vm5442 = vcmp.eq.s32.totalorder %v3910, 5
        %vm5443 = vcmp.eq.s32.totalorder %v3911, 5
        %vm5444 = vcmp.eq.s32.totalorder %v3912, 5
        %vm5445 = vcmp.eq.s32.totalorder %v3913, 5
        %vm5446 = vcmp.eq.s32.totalorder %v3914, 5
        %vm5447 = vcmp.eq.s32.totalorder %v3915, 5
        %vm5448 = vcmp.eq.s32.totalorder %v3916, 5
        %vm5449 = vcmp.eq.s32.totalorder %v3917, 5
        %vm5450 = vcmp.eq.s32.totalorder %v3918, 5
        %vm5451 = vcmp.eq.s32.totalorder %v3919, 5
        %vm5452 = vcmp.eq.s32.totalorder %v3920, 5
        %vm5453 = vcmp.eq.s32.totalorder %v3921, 5
        %vm5454 = vcmp.eq.s32.totalorder %v3922, 5
        %vm5455 = vcmp.eq.s32.totalorder %v3923, 5
        %vm5456 = vcmp.eq.s32.totalorder %v3924, 5
        %vm5457 = vcmp.eq.s32.totalorder %v3925, 5
        %vm5458 = vcmp.eq.s32.totalorder %v3926, 5
        %vm5459 = vcmp.eq.s32.totalorder %v3927, 5
        %vm5460 = vcmp.eq.s32.totalorder %v3928, 5
        %vm5461 = vcmp.eq.s32.totalorder %v3929, 5
        %vm5462 = vcmp.eq.s32.totalorder %v3930, 5
        %vm5463 = vcmp.eq.s32.totalorder %v3931, 5
        %vm5464 = vcmp.eq.s32.totalorder %v3932, 5
        %vm5465 = vcmp.eq.s32.totalorder %v3933, 5
        %v5466 = vsel %vm5434, 1, 0
        %v5467 = vsel %vm5435, 1, 0
        %v5468 = vsel %vm5436, 1, 0
        %v5469 = vsel %vm5437, 1, 0
        %v5470 = vsel %vm5438, 1, 0
        %v5471 = vsel %vm5439, 1, 0
        %v5472 = vsel %vm5440, 1, 0
        %v5473 = vsel %vm5441, 1, 0
        %v5474 = vsel %vm5442, 1, 0
        %v5475 = vsel %vm5443, 1, 0
        %v5476 = vsel %vm5444, 1, 0
        %v5477 = vsel %vm5445, 1, 0
        %v5478 = vsel %vm5446, 1, 0
        %v5479 = vsel %vm5447, 1, 0
        %v5480 = vsel %vm5448, 1, 0
        %v5481 = vsel %vm5449, 1, 0
        %v5482 = vsel %vm5450, 1, 0
        %v5483 = vsel %vm5451, 1, 0
        %v5484 = vsel %vm5452, 1, 0
        %v5485 = vsel %vm5453, 1, 0
        %v5486 = vsel %vm5454, 1, 0
        %v5487 = vsel %vm5455, 1, 0
        %v5488 = vsel %vm5456, 1, 0
        %v5489 = vsel %vm5457, 1, 0
        %v5490 = vsel %vm5458, 1, 0
        %v5491 = vsel %vm5459, 1, 0
        %v5492 = vsel %vm5460, 1, 0
        %v5493 = vsel %vm5461, 1, 0
        %v5494 = vsel %vm5462, 1, 0
        %v5495 = vsel %vm5463, 1, 0
        %v5496 = vsel %vm5464, 1, 0
        %v5497 = vsel %vm5465, 1, 0
        %v5498 = vcvt.s32.f32 %v5466
        %v5499 = vcvt.s32.f32 %v5467
        %v5500 = vcvt.s32.f32 %v5468
        %v5501 = vcvt.s32.f32 %v5469
        %v5502 = vcvt.s32.f32 %v5470
        %v5503 = vcvt.s32.f32 %v5471
        %v5504 = vcvt.s32.f32 %v5472
        %v5505 = vcvt.s32.f32 %v5473
        %v5506 = vcvt.s32.f32 %v5474
        %v5507 = vcvt.s32.f32 %v5475
        %v5508 = vcvt.s32.f32 %v5476
        %v5509 = vcvt.s32.f32 %v5477
        %v5510 = vcvt.s32.f32 %v5478
        %v5511 = vcvt.s32.f32 %v5479
        %v5512 = vcvt.s32.f32 %v5480
        %v5513 = vcvt.s32.f32 %v5481
        %v5514 = vcvt.s32.f32 %v5482
        %v5515 = vcvt.s32.f32 %v5483
        %v5516 = vcvt.s32.f32 %v5484
        %v5517 = vcvt.s32.f32 %v5485
        %v5518 = vcvt.s32.f32 %v5486
        %v5519 = vcvt.s32.f32 %v5487
        %v5520 = vcvt.s32.f32 %v5488
        %v5521 = vcvt.s32.f32 %v5489
        %v5522 = vcvt.s32.f32 %v5490
        %v5523 = vcvt.s32.f32 %v5491
        %v5524 = vcvt.s32.f32 %v5492
        %v5525 = vcvt.s32.f32 %v5493
        %v5526 = vcvt.s32.f32 %v5494
        %v5527 = vcvt.s32.f32 %v5495
        %v5528 = vcvt.s32.f32 %v5496
        %v5529 = vcvt.s32.f32 %v5497
        %v5530 = vld [vmem:[%s11 + $0x4] sm:$0x1]
        %5532 = vset.pattern.permute.xlu0 0
        %5533 = vperm.xlu0 %5532, %v5498
        %v5534 = vpop.permute.xlu0 %5533
        %5537 = vset.pattern.permute.xlu0 0
        %5538 = vperm.xlu0 %5537, %v5499
        %v5539 = vpop.permute.xlu0 %5538
        %5542 = vset.pattern.permute.xlu0 0
        %5543 = vperm.xlu0 %5542, %v5500
        %v5544 = vpop.permute.xlu0 %5543
        %5547 = vset.pattern.permute.xlu0 0
        %5548 = vperm.xlu0 %5547, %v5501
        %v5549 = vpop.permute.xlu0 %5548
        %5552 = vset.pattern.permute.xlu0 0
        %5553 = vperm.xlu0 %5552, %v5502
        %v5554 = vpop.permute.xlu0 %5553
        %5557 = vset.pattern.permute.xlu0 0
        %5558 = vperm.xlu0 %5557, %v5503
        %v5559 = vpop.permute.xlu0 %5558
        %5562 = vset.pattern.permute.xlu0 0
        %5563 = vperm.xlu0 %5562, %v5504
        %v5564 = vpop.permute.xlu0 %5563
        %5567 = vset.pattern.permute.xlu0 0
        %5568 = vperm.xlu0 %5567, %v5505
        %v5569 = vpop.permute.xlu0 %5568
        %5572 = vset.pattern.permute.xlu0 0
        %5573 = vperm.xlu0 %5572, %v5506
        %v5574 = vpop.permute.xlu0 %5573
        %5577 = vset.pattern.permute.xlu0 0
        %5578 = vperm.xlu0 %5577, %v5507
        %v5579 = vpop.permute.xlu0 %5578
        %5582 = vset.pattern.permute.xlu0 0
        %5583 = vperm.xlu0 %5582, %v5508
        %v5584 = vpop.permute.xlu0 %5583
        %5587 = vset.pattern.permute.xlu0 0
        %5588 = vperm.xlu0 %5587, %v5509
        %v5589 = vpop.permute.xlu0 %5588
        %5592 = vset.pattern.permute.xlu0 0
        %5593 = vperm.xlu0 %5592, %v5510
        %v5594 = vpop.permute.xlu0 %5593
        %5597 = vset.pattern.permute.xlu0 0
        %5598 = vperm.xlu0 %5597, %v5511
        %v5599 = vpop.permute.xlu0 %5598
        %5602 = vset.pattern.permute.xlu0 0
        %5603 = vperm.xlu0 %5602, %v5512
        %v5604 = vpop.permute.xlu0 %5603
        %5607 = vset.pattern.permute.xlu0 0
        %5608 = vperm.xlu0 %5607, %v5513
        %v5609 = vpop.permute.xlu0 %5608
        %5612 = vset.pattern.permute.xlu0 0
        %5613 = vperm.xlu0 %5612, %v5514
        %v5614 = vpop.permute.xlu0 %5613
        %5617 = vset.pattern.permute.xlu0 0
        %5618 = vperm.xlu0 %5617, %v5515
        %v5619 = vpop.permute.xlu0 %5618
        %5622 = vset.pattern.permute.xlu0 0
        %5623 = vperm.xlu0 %5622, %v5516
        %v5624 = vpop.permute.xlu0 %5623
        %5627 = vset.pattern.permute.xlu0 0
        %5628 = vperm.xlu0 %5627, %v5517
        %v5629 = vpop.permute.xlu0 %5628
        %5632 = vset.pattern.permute.xlu0 0
        %5633 = vperm.xlu0 %5632, %v5518
        %v5634 = vpop.permute.xlu0 %5633
        %5637 = vset.pattern.permute.xlu0 0
        %5638 = vperm.xlu0 %5637, %v5519
        %v5639 = vpop.permute.xlu0 %5638
        %5642 = vset.pattern.permute.xlu0 0
        %5643 = vperm.xlu0 %5642, %v5520
        %v5644 = vpop.permute.xlu0 %5643
        %5647 = vset.pattern.permute.xlu0 0
        %5648 = vperm.xlu0 %5647, %v5521
        %v5649 = vpop.permute.xlu0 %5648
        %5652 = vset.pattern.permute.xlu0 0
        %5653 = vperm.xlu0 %5652, %v5522
        %v5654 = vpop.permute.xlu0 %5653
        %5657 = vset.pattern.permute.xlu0 0
        %5658 = vperm.xlu0 %5657, %v5523
        %v5659 = vpop.permute.xlu0 %5658
        %5662 = vset.pattern.permute.xlu0 0
        %5663 = vperm.xlu0 %5662, %v5524
        %v5664 = vpop.permute.xlu0 %5663
        %5667 = vset.pattern.permute.xlu0 0
        %5668 = vperm.xlu0 %5667, %v5525
        %v5669 = vpop.permute.xlu0 %5668
        %5672 = vset.pattern.permute.xlu0 0
        %5673 = vperm.xlu0 %5672, %v5526
        %v5674 = vpop.permute.xlu0 %5673
        %5677 = vset.pattern.permute.xlu0 0
        %5678 = vperm.xlu0 %5677, %v5527
        %v5679 = vpop.permute.xlu0 %5678
        %5682 = vset.pattern.permute.xlu0 0
        %5683 = vperm.xlu0 %5682, %v5528
        %v5684 = vpop.permute.xlu0 %5683
        %5687 = vset.pattern.permute.xlu0 0
        %5688 = vperm.xlu0 %5687, %v5529
        %v5689 = vpop.permute.xlu0 %5688
        %v5691 = vlaneseq
        %v5692 = vshrl.u32 %v5691, 7
        %v5693 = vsub.s32 0, %v5692
        %v5694 = vrot.slane %v5530, %v5693
        %v5695 = vmul.f32 %v5534, %v5694
        %v5696 = vmul.f32 %v5539, %v5694
        %v5697 = vmul.f32 %v5544, %v5694
        %v5698 = vmul.f32 %v5549, %v5694
        %v5699 = vmul.f32 %v5554, %v5694
        %v5700 = vmul.f32 %v5559, %v5694
        %v5701 = vmul.f32 %v5564, %v5694
        %v5702 = vmul.f32 %v5569, %v5694
        %v5703 = vmul.f32 %v5574, %v5694
        %v5704 = vmul.f32 %v5579, %v5694
        %v5705 = vmul.f32 %v5584, %v5694
        %v5706 = vmul.f32 %v5589, %v5694
        %v5707 = vmul.f32 %v5594, %v5694
        %v5708 = vmul.f32 %v5599, %v5694
        %v5709 = vmul.f32 %v5604, %v5694
        %v5710 = vmul.f32 %v5609, %v5694
        %v5711 = vmul.f32 %v5614, %v5694
        %v5712 = vmul.f32 %v5619, %v5694
        %v5713 = vmul.f32 %v5624, %v5694
        %v5714 = vmul.f32 %v5629, %v5694
        %v5715 = vmul.f32 %v5634, %v5694
        %v5716 = vmul.f32 %v5639, %v5694
        %v5717 = vmul.f32 %v5644, %v5694
        %v5718 = vmul.f32 %v5649, %v5694
        %v5719 = vmul.f32 %v5654, %v5694
        %v5720 = vmul.f32 %v5659, %v5694
        %v5721 = vmul.f32 %v5664, %v5694
        %v5722 = vmul.f32 %v5669, %v5694
        %v5723 = vmul.f32 %v5674, %v5694
        %v5724 = vmul.f32 %v5679, %v5694
        %v5725 = vmul.f32 %v5684, %v5694
        %v5726 = vmul.f32 %v5689, %v5694
        %v5727 = vadd.f32 %v5402, %v5695
        %v5728 = vadd.f32 %v5403, %v5696
        %v5729 = vadd.f32 %v5404, %v5697
        %v5730 = vadd.f32 %v5405, %v5698
        %v5731 = vadd.f32 %v5406, %v5699
        %v5732 = vadd.f32 %v5407, %v5700
        %v5733 = vadd.f32 %v5408, %v5701
        %v5734 = vadd.f32 %v5409, %v5702
        %v5735 = vadd.f32 %v5410, %v5703
        %v5736 = vadd.f32 %v5411, %v5704
        %v5737 = vadd.f32 %v5412, %v5705
        %v5738 = vadd.f32 %v5413, %v5706
        %v5739 = vadd.f32 %v5414, %v5707
        %v5740 = vadd.f32 %v5415, %v5708
        %v5741 = vadd.f32 %v5416, %v5709
        %v5742 = vadd.f32 %v5417, %v5710
        %v5743 = vadd.f32 %v5418, %v5711
        %v5744 = vadd.f32 %v5419, %v5712
        %v5745 = vadd.f32 %v5420, %v5713
        %v5746 = vadd.f32 %v5421, %v5714
        %v5747 = vadd.f32 %v5422, %v5715
        %v5748 = vadd.f32 %v5423, %v5716
        %v5749 = vadd.f32 %v5424, %v5717
        %v5750 = vadd.f32 %v5425, %v5718
        %v5751 = vadd.f32 %v5426, %v5719
        %v5752 = vadd.f32 %v5427, %v5720
        %v5753 = vadd.f32 %v5428, %v5721
        %v5754 = vadd.f32 %v5429, %v5722
        %v5755 = vadd.f32 %v5430, %v5723
        %v5756 = vadd.f32 %v5431, %v5724
        %v5757 = vadd.f32 %v5432, %v5725
        %v5758 = vadd.f32 %v5433, %v5726
        %v5759 = vtanh.pop %v5727
        %v5760 = vtanh.pop %v5728
        %v5761 = vtanh.pop %v5729
        %v5762 = vtanh.pop %v5730
        %v5763 = vtanh.pop %v5731
        %v5764 = vtanh.pop %v5732
        %v5765 = vtanh.pop %v5733
        %v5766 = vtanh.pop %v5734
        %v5767 = vtanh.pop %v5735
        %v5768 = vtanh.pop %v5736
        %v5769 = vtanh.pop %v5737
        %v5770 = vtanh.pop %v5738
        %v5771 = vtanh.pop %v5739
        %v5772 = vtanh.pop %v5740
        %v5773 = vtanh.pop %v5741
        %v5774 = vtanh.pop %v5742
        %v5775 = vtanh.pop %v5743
        %v5776 = vtanh.pop %v5744
        %v5777 = vtanh.pop %v5745
        %v5778 = vtanh.pop %v5746
        %v5779 = vtanh.pop %v5747
        %v5780 = vtanh.pop %v5748
        %v5781 = vtanh.pop %v5749
        %v5782 = vtanh.pop %v5750
        %v5783 = vtanh.pop %v5751
        %v5784 = vtanh.pop %v5752
        %v5785 = vtanh.pop %v5753
        %v5786 = vtanh.pop %v5754
        %v5787 = vtanh.pop %v5755
        %v5788 = vtanh.pop %v5756
        %v5789 = vtanh.pop %v5757
        %v5790 = vtanh.pop %v5758
        %5791 = vst [vmem:[%s487] sm:$0xff] %v5759
        %5792 = vst [vmem:[%s487 + $0x8] sm:$0xff] %v5760
        %5793 = vst [vmem:[%s487 + $0x10] sm:$0xff] %v5761
        %5794 = vst [vmem:[%s487 + $0x18] sm:$0xff] %v5762
        %5795 = vst [vmem:[%s487 + $0x20] sm:$0xff] %v5763
        %5796 = vst [vmem:[%s487 + $0x28] sm:$0xff] %v5764
        %5797 = vst [vmem:[%s487 + $0x30] sm:$0xff] %v5765
        %5798 = vst [vmem:[%s487 + $0x38] sm:$0xff] %v5766
        %5799 = vst [vmem:[%s487 + $0x40] sm:$0xff] %v5767
        %5800 = vst [vmem:[%s487 + $0x48] sm:$0xff] %v5768
        %5801 = vst [vmem:[%s487 + $0x50] sm:$0xff] %v5769
        %5802 = vst [vmem:[%s487 + $0x58] sm:$0xff] %v5770
        %5803 = vst [vmem:[%s487 + $0x60] sm:$0xff] %v5771
        %5804 = vst [vmem:[%s487 + $0x68] sm:$0xff] %v5772
        %5805 = vst [vmem:[%s487 + $0x70] sm:$0xff] %v5773
        %5806 = vst [vmem:[%s487 + $0x78] sm:$0xff] %v5774
        %5807 = vst [vmem:[%s487 + $0x80] sm:$0xff] %v5775
        %5808 = vst [vmem:[%s487 + $0x88] sm:$0xff] %v5776
        %5809 = vst [vmem:[%s487 + $0x90] sm:$0xff] %v5777
        %5810 = vst [vmem:[%s487 + $0x98] sm:$0xff] %v5778
        %5811 = vst [vmem:[%s487 + $0xa0] sm:$0xff] %v5779
        %5812 = vst [vmem:[%s487 + $0xa8] sm:$0xff] %v5780
        %5813 = vst [vmem:[%s487 + $0xb0] sm:$0xff] %v5781
        %5814 = vst [vmem:[%s487 + $0xb8] sm:$0xff] %v5782
        %5815 = vst [vmem:[%s487 + $0xc0] sm:$0xff] %v5783
        %5816 = vst [vmem:[%s487 + $0xc8] sm:$0xff] %v5784
        %5817 = vst [vmem:[%s487 + $0xd0] sm:$0xff] %v5785
        %5818 = vst [vmem:[%s487 + $0xd8] sm:$0xff] %v5786
        %5819 = vst [vmem:[%s487 + $0xe0] sm:$0xff] %v5787
        %5820 = vst [vmem:[%s487 + $0xe8] sm:$0xff] %v5788
        %5821 = vst [vmem:[%s487 + $0xf0] sm:$0xff] %v5789
        %5822 = vst [vmem:[%s487 + $0xf8] sm:$0xff] %v5790
        %s5823 = smul.u32 32, %s31
        %p5824 = scmp.lt.s32.totalorder %s5823, 63
        %s5825 = scalar_select %p5824, %s5823, 63
        %s5826 = smul.addr %s5825, 8
        %s5827 = scalar_lea.vmem %s13, %s5826
        %s5828 = sand.u32 %s348, 1
        %s5829 = scalar_lea.sflag [#allocation4], %s5828
        %s5830 = sand.u32 %s348, 1
        %s5831 = smul.addr %s5830, 256
        %s5832 = scalar_lea.vmem [#allocation3], %s5831
        // Predicated region
        $region73: #{nrt_encoder_forward.1} parent=71 // pred_check
          %p5833 = pneg %p332
        $region74: #{nrt_encoder_forward.1} parent=71 // pred_check_branch
          %5835 = sbr.rel (%p5833) target = $region76
        $region75: #{nrt_encoder_forward.1} parent=71 // pred_region
          %s5836 = smul.u32 32, %s31
        $region76: #{nrt_encoder_forward.1} parent=71 // pred_fallthru
          _
        // Predicated region
        $region77: #{nrt_encoder_forward.1} parent=71 // pred_check
          %p5837 = pneg %p358
        $region78: #{nrt_encoder_forward.1} parent=71 // pred_check_branch
          %5839 = sbr.rel (%p5837) target = $region80
        $region79: #{nrt_encoder_forward.1} parent=71 // pred_region
          %s5840 = smul.u32 32, %s31
          %s5842 = ssub.s32 4096, 4096
          %5843 = vsyncadd %s5829, %s5842
          %s5844 = smul.addr %s5840, 128
          %s5845 = scalar_lea.hbm %s14, %s5844
          %s5846 = sshll.u32 %s5832, 4
          %s5847 = int_to_ptr.vmem [resolvable:$true] %s5846
          %5852 = dma.vmem_to_hbm [thread:$0]  %s5847, 4096, %s5845, %s5829, 128, 128, 8
        $region80: #{nrt_encoder_forward.1} parent=71 // pred_fallthru
          _
      $region72: #{nrt_encoder_forward.1} parent=5 // pred_fallthru
        _
      %p5853 = scmp.le.s32.totalorder 2, %s26
      // Predicated region
      $region81: #{nrt_encoder_forward.1} parent=5 // pred_check
        %p5854 = pneg %p5853
      $region82: #{nrt_encoder_forward.1} parent=5 // pred_check_branch
        %5856 = sbr.rel (%p5854) target = $region84
      $region83: #{nrt_encoder_forward.1} parent=5 // pred_region
        %s5857 = ssub.s32 %s26, 2
        // Predicated region
        $region85: #{nrt_encoder_forward.1} parent=83 // pred_check
          %p5858 = pneg %p338
        $region86: #{nrt_encoder_forward.1} parent=83 // pred_check_branch
          %5860 = sbr.rel (%p5858) target = $region88
        $region87: #{nrt_encoder_forward.1} parent=83 // pred_region
          %s5861 = smul.u32 32, %s32
          %p5862 = scmp.lt.s32.totalorder %s5861, 63
          %s5863 = scalar_select %p5862, %s5861, 63
          %s5864 = smul.addr %s5863, 8
          %s5865 = scalar_lea.vmem %s13, %s5864
        $region88: #{nrt_encoder_forward.1} parent=83 // pred_fallthru
          _
        // Predicated region
        $region89: #{nrt_encoder_forward.1} parent=83 // pred_check
          %p5866 = pneg %p364
        $region90: #{nrt_encoder_forward.1} parent=83 // pred_check_branch
          %5868 = sbr.rel (%p5866) target = $region92
        $region91: #{nrt_encoder_forward.1} parent=83 // pred_region
          %s5869 = sand.u32 %s349, 1
          %s5870 = scalar_lea.sflag [#allocation4], %s5869
          %s5871 = sand.u32 %s349, 1
          %s5872 = smul.addr %s5871, 256
          %s5873 = scalar_lea.vmem [#allocation3], %s5872
          %5874 = dma.done %s5870, 4096
        $region92: #{nrt_encoder_forward.1} parent=83 // pred_fallthru
          _
      $region84: #{nrt_encoder_forward.1} parent=5 // pred_fallthru
        _
    $region6: #{nrt_encoder_forward.1} parent=1 // loop_footer
      %s30 = sadd.s32 1, %s26
    $region7: #{nrt_encoder_forward.1} parent=1 // loop_footer_branch
      %25 = sbr.rel target = $region3
    $region8: #{nrt_encoder_forward.1} parent=1 // loop_exit
      _
    %5875 = vsyncpa [#allocation4], 1
    %s5876 = scalar_lea.sflag [#allocation4], 1
    %5877 = vsyncpa %s5876, 1

</llo_original>
